<compile_context>
chip_gen: v5e
topology: v5e:2x2
jax: 0.10.0
libtpu: 0.0.40
codegen_flags: <defaults>
</compile_context>

<pallas_src>
import functools

import jax
import jax.numpy as jnp
from jax.experimental import pallas as pl
from jax.experimental.pallas import tpu as pltpu


# ----------------------------------------------------------------------------
# Model configuration (small, shape-consistent with DragoNNFruit)
# ----------------------------------------------------------------------------
SEQ_LEN = 128          # stands in for 2114
TRIM = 32              # stands in for 557 -> OUT_LEN = SEQ_LEN - 2*TRIM
OUT_LEN = SEQ_LEN - 2 * TRIM
N_FILTERS = 64         # channels per branch
N_TOT = 2 * N_FILTERS  # fused lanes: 0-63 bias branch, 64-127 accessibility
ICONV_K = 21
DCONV_K = 3
FCONV_K = 15
DILATIONS = (2, 4)     # shared by both branches (required for the fusion)
N_DLAYERS = len(DILATIONS)
N_CELL_INPUTS = 32
N_CTRL_NODES = 64
N_CTRL_OUT = 64

_MAX_PAD = max(DILATIONS) * (DCONV_K - 1) // 2
HALO = 16                                   # >= max pad, bf16-vreg (16-row) aligned
LPAD = SEQ_LEN + 2 * HALO                   # per-example padded row span
ICOL = ((ICONV_K * 4 + 127) // 128) * 128   # 84 -> 128 lane-dense iconv im2col
FPAD = (FCONV_K - 1) // 2

assert HALO >= _MAX_PAD
assert TRIM >= FPAD, "profile head window must stay inside the sequence"
assert SEQ_LEN % 16 == 0 and LPAD % 16 == 0


# ----------------------------------------------------------------------------
# The fused kernel: TB whole DragoNNFruit forwards per grid step.
# ----------------------------------------------------------------------------
def _fused_kernel(xcols_ref, dynb_ref, rd_ref, wi_ref, bi_ref,
                  wd0_ref, wd1_ref, wf_ref,
                  out_ref,
                  hpad_f32, hpad_b16,
                  *, tb):
    L = SEQ_LEN

    # (1) Re-zero only the bf16 halo rows (read by the dilated taps, never
    #     written): one bf16 vreg per halo, and correct even when the
    #     'parallel' grid axis is split across TensorCores.
    zhalo = jnp.zeros((HALO, N_TOT), jnp.bfloat16)
    for e in range(tb):
        hpad_b16[pl.ds(e * LPAD, HALO), :] = zhalo
        hpad_b16[pl.ds(e * LPAD + HALO + L, HALO), :] = zhalo

    dynb = dynb_ref[...]                                   # (tb, N_DLAYERS, 128)

    # (2) Fused initial conv: both branches, all tb examples, one MXU matmul.
    xc = xcols_ref[...].reshape(tb * L, ICOL)              # bf16 (layout-free)
    h0 = jnp.dot(xc, wi_ref[...], preferred_element_type=jnp.float32)
    h0 = jnp.maximum(h0 + bi_ref[...], 0.0)                # (tb*L, 128) f32
    for e in range(tb):
        he = h0[e * L:(e + 1) * L]
        hpad_f32[pl.ds(e * LPAD + HALO, L), :] = he        # f32 residual carry
        hpad_b16[pl.ds(e * LPAD + HALO, L), :] = he.astype(jnp.bfloat16)

    # (3) Dilated residual layers: three direct sublane-shifted tap matmuls
    #     with block-diagonal (bias||acc) weights -- no im2col staging copies.
    m = tb * LPAD - 2 * HALO

    def dilated_layer(wd_ref, li, dilation, keep_b16):
        pad = dilation * (DCONV_K - 1) // 2
        acc = jnp.dot(hpad_b16[pl.ds(HALO - pad, m), :], wd_ref[0],
                      preferred_element_type=jnp.float32)
        for k in range(1, DCONV_K):
            acc = acc + jnp.dot(
                hpad_b16[pl.ds(HALO - pad + k * dilation, m), :], wd_ref[k],
                preferred_element_type=jnp.float32)
        for e in range(tb):
            a = jnp.maximum(acc[e * LPAD:e * LPAD + L] + dynb[e, li], 0.0)
            hn = hpad_f32[pl.ds(e * LPAD + HALO, L), :] + a
            hpad_f32[pl.ds(e * LPAD + HALO, L), :] = hn
            if keep_b16:                                   # last layer: bf16 dead
                hpad_b16[pl.ds(e * LPAD + HALO, L), :] = hn.astype(jnp.bfloat16)

    wd_refs = (wd0_ref, wd1_ref)
    for li, d in enumerate(DILATIONS):
        dilated_layer(wd_refs[li], li, d, keep_b16=(li + 1 < N_DLAYERS))

    # (4) Fused profile heads (bias + accessibility collapse into one channel
    #     sum over 128 lanes) + read depth; lane-dense (OUT_LEN on lanes) store.
    wf = wf_ref[...]                                       # (FCONV_K, 128) f32
    step0 = pl.program_id(0) * tb
    for e in range(tb):
        base = e * LPAD + HALO + TRIM - FPAD
        acc = hpad_f32[pl.ds(base, OUT_LEN), :] * wf[0:1, :]
        for k in range(1, FCONV_K):
            acc = acc + hpad_f32[pl.ds(base + k, OUT_LEN), :] * wf[k:k + 1, :]
        y = jnp.sum(acc, axis=-1)                          # (OUT_LEN,)
        out_ref[0, e, :] = rd_ref[step0 + e, 0] + y


# ----------------------------------------------------------------------------
# Wrapper: weight packing, input im2col, controller MLP, pallas_call plumbing
# ----------------------------------------------------------------------------
def _im2col_input(x_blc):
    """(B, L, 4) one-hot -> (B, L, ICOL) bf16; column k*4+c = x_pad[:, l+k, c]."""
    B, L, C = x_blc.shape
    pad = (ICONV_K - 1) // 2
    xp = jnp.pad(x_blc, ((0, 0), (pad, pad), (0, 0)))
    cols = jnp.concatenate([xp[:, k:k + L, :] for k in range(ICONV_K)], axis=-1)
    cols = jnp.pad(cols, ((0, 0), (0, 0), (0, ICOL - ICONV_K * C)))
    return cols.astype(jnp.bfloat16)


def _pack_iconv_w(wb, wa):
    """Two (K, 4, 64) iconv weights -> one (ICOL, 128) bf16 (bias || acc)."""
    def flat(w):
        K, C, F = w.shape
        return jnp.pad(w.reshape(K * C, F), ((0, ICOL - K * C), (0, 0)))
    return jnp.concatenate([flat(wb), flat(wa)], axis=-1).astype(jnp.bfloat16)


def _pack_dconv_w(wb, wa):
    """Two (K, 64, 64) dilated weights -> (K, 128, 128) block-diagonal bf16."""
    K, F, _ = wb.shape
    w = jnp.zeros((K, 2 * F, 2 * F), jnp.float32)
    w = w.at[:, :F, :F].set(wb)
    w = w.at[:, F:, F:].set(wa)
    return w.astype(jnp.bfloat16)


@jax.jit
def dragonnfruit_forward(params, X_ncw, cell_states, read_depths):
    """X_ncw: (B, 4, SEQ_LEN) one-hot (PyTorch NCW), cell_states: (B, 32),
    read_depths: (B, 1)  ->  (B, OUT_LEN)."""
    B = X_ncw.shape[0]
    tb = 2 if B % 2 == 0 else 1          # examples per grid step
    nstep = B // tb

    x = jnp.transpose(X_ncw, (0, 2, 1)).astype(jnp.float32)          # (B, L, 4)
    xcols = _im2col_input(x)                                         # (B, L, ICOL)

    pb, pa = params["bias"], params["acc"]
    ctrl = pa["controller"]

    # Controller MLP + per-layer dynamic biases: batched XLA matmuls (hoisted).
    cs = cell_states.astype(jnp.float32)
    c = jax.nn.relu(cs @ ctrl["w_in"] + ctrl["b_in"])
    c = jax.nn.relu(c @ ctrl["w_hidden"] + ctrl["b_hidden"])
    c = jax.nn.relu(c @ ctrl["w_out"] + ctrl["b_out"])
    rows = []
    for i in range(N_DLAYERS):
        dyn = c @ pa["bias_fc_w"][i] + pa["bias_fc_b"][i]            # (B, 64)
        stat = jnp.broadcast_to(pb["rconv_b"][i][None, :], (B, N_FILTERS))
        rows.append(jnp.concatenate([stat, dyn], axis=-1))           # (B, 128)
    dynb = jnp.stack(rows, axis=1)                                   # (B, 2, 128)

    # Fold both profile-head biases into read_depths (exact re-association).
    rd_plus = (read_depths.astype(jnp.float32)
               + pb["fconv_b"][0] + pa["fconv_b"][0]).reshape(B, 1)

    wi = _pack_iconv_w(pb["iconv_w"], pa["iconv_w"])                 # (ICOL, 128)
    bi = jnp.concatenate([pb["iconv_b"], pa["iconv_b"]]).reshape(1, N_TOT)
    wd0 = _pack_dconv_w(pb["rconv_w"][0], pa["dconv_w"][0])          # (3,128,128)
    wd1 = _pack_dconv_w(pb["rconv_w"][1], pa["dconv_w"][1])
    wf = jnp.concatenate([pb["fconv_w"][:, :, 0], pa["fconv_w"][:, :, 0]],
                         axis=-1).astype(jnp.float32)                # (15, 128)

    def per_step_spec(shape):
        nd = len(shape)
        return pl.BlockSpec((tb,) + tuple(shape[1:]),
                            lambda b: (b,) + (0,) * (nd - 1))

    def whole_spec(shape):
        nd = len(shape)
        return pl.BlockSpec(tuple(shape), lambda b: (0,) * nd)

    in_specs = [
        per_step_spec(xcols.shape),
        per_step_spec(dynb.shape),
        pl.BlockSpec((B, 1), lambda b: (0, 0),
                     memory_space=pltpu.MemorySpace.SMEM),
        whole_spec(wi.shape), whole_spec(bi.shape),
        whole_spec(wd0.shape), whole_spec(wd1.shape), whole_spec(wf.shape),
    ]

    flops = B * (2 * SEQ_LEN * ICOL * N_TOT
                 + N_DLAYERS * DCONV_K * 2 * SEQ_LEN * N_TOT * N_TOT
                 + 2 * OUT_LEN * N_TOT * FCONV_K)
    bytes_accessed = (xcols.size * 2 + dynb.size * 4 + rd_plus.size * 4
                      + wi.size * 2 + bi.size * 4 + wd0.size * 2 + wd1.size * 2
                      + wf.size * 4 + B * OUT_LEN * 4)

    out = pl.pallas_call(
        functools.partial(_fused_kernel, tb=tb),
        out_shape=jax.ShapeDtypeStruct((nstep, tb, OUT_LEN), jnp.float32),
        grid=(nstep,),
        in_specs=in_specs,
        out_specs=pl.BlockSpec((1, tb, OUT_LEN), lambda b: (b, 0, 0)),
        scratch_shapes=[
            pltpu.VMEM((tb * LPAD, N_TOT), jnp.float32),    # f32 residual carry
            pltpu.VMEM((tb * LPAD, N_TOT), jnp.bfloat16),   # bf16 MXU tap mirror
        ],
        compiler_params=pltpu.CompilerParams(
            dimension_semantics=("parallel",)),
        cost_estimate=pl.CostEstimate(flops=int(flops), transcendentals=0,
                                      bytes_accessed=int(bytes_accessed)),
    )(xcols, dynb, rd_plus, wi, bi, wd0, wd1, wf)

    return out.reshape(B, OUT_LEN)


# ----------------------------------------------------------------------------
# Parameter init + pure-JAX reference (for a correctness check)
# ----------------------------------------------------------------------------
def _init(key, shape, scale=0.05):
    return scale * jax.random.normal(key, shape, dtype=jnp.float32)


def init_params(key):
    ks = iter(jax.random.split(key, 64))
    bias = {
        "iconv_w": _init(next(ks), (ICONV_K, 4, N_FILTERS)),
        "iconv_b": _init(next(ks), (N_FILTERS,)),
        "rconv_w": [_init(next(ks), (DCONV_K, N_FILTERS, N_FILTERS))
                    for _ in DILATIONS],
        "rconv_b": [_init(next(ks), (N_FILTERS,)) for _ in DILATIONS],
        "fconv_w": _init(next(ks), (FCONV_K, N_FILTERS, 1)),
        "fconv_b": _init(next(ks), (1,)),
    }
    ctrl = {
        "w_in": _init(next(ks), (N_CELL_INPUTS, N_CTRL_NODES)),
        "b_in": _init(next(ks), (N_CTRL_NODES,)),
        "w_hidden": _init(next(ks), (N_CTRL_NODES, N_CTRL_NODES)),
        "b_hidden": _init(next(ks), (N_CTRL_NODES,)),
        "w_out": _init(next(ks), (N_CTRL_NODES, N_CTRL_OUT)),
        "b_out": _init(next(ks), (N_CTRL_OUT,)),
    }
    acc = {
        "controller": ctrl,
        "iconv_w": _init(next(ks), (ICONV_K, 4, N_FILTERS)),
        "iconv_b": _init(next(ks), (N_FILTERS,)),
        "dconv_w": [_init(next(ks), (DCONV_K, N_FILTERS, N_FILTERS))
                    for _ in DILATIONS],
        "bias_fc_w": [_init(next(ks), (N_CTRL_OUT, N_FILTERS))
                      for _ in DILATIONS],
        "bias_fc_b": [_init(next(ks), (N_FILTERS,)) for _ in DILATIONS],
        "fconv_w": _init(next(ks), (FCONV_K, N_FILTERS, 1)),
        "fconv_b": _init(next(ks), (1,)),
    }
    return {"bias": bias, "acc": acc}


def _ref_forward(params, X_ncw, cell_states, read_depths):
    """Plain-JAX f32 reference of the same forward pass."""
    x = jnp.transpose(X_ncw, (0, 2, 1)).astype(jnp.float32)
    pb, pa = params["bias"], params["acc"]

    def conv(h, w, b, dilation=1):
        B, L, _ = h.shape
        K, _, Cout = w.shape
        pad = dilation * (K - 1) // 2
        hp = jnp.pad(h, ((0, 0), (pad, pad), (0, 0)))
        out = jnp.zeros((B, L, Cout), jnp.float32) + b[None, None, :]
        for k in range(K):
            out = out + jnp.einsum("blc,cf->blf",
                                   hp[:, k * dilation:k * dilation + L, :], w[k])
        return out

    # frozen bias BPNet
    h = jax.nn.relu(conv(x, pb["iconv_w"], pb["iconv_b"]))
    for i, d in enumerate(DILATIONS):
        h = h + jax.nn.relu(conv(h, pb["rconv_w"][i], pb["rconv_b"][i], d))
    y_bias = conv(h, pb["fconv_w"], pb["fconv_b"])[:, TRIM:SEQ_LEN - TRIM, 0]

    # controller MLP
    ctrl = pa["controller"]
    c = jax.nn.relu(cell_states @ ctrl["w_in"] + ctrl["b_in"])
    c = jax.nn.relu(c @ ctrl["w_hidden"] + ctrl["b_hidden"])
    c = jax.nn.relu(c @ ctrl["w_out"] + ctrl["b_out"])

    # dynamic accessibility BPNet
    zb = jnp.zeros((N_FILTERS,), jnp.float32)
    h = jax.nn.relu(conv(x, pa["iconv_w"], pa["iconv_b"]))
    for i, d in enumerate(DILATIONS):
        dyn = c @ pa["bias_fc_w"][i] + pa["bias_fc_b"][i]
        h = h + jax.nn.relu(conv(h, pa["dconv_w"][i], zb, d) + dyn[:, None, :])
    y_acc = conv(h, pa["fconv_w"], pa["fconv_b"])[:, TRIM:SEQ_LEN - TRIM, 0]

    return read_depths + y_bias + y_acc


# ----------------------------------------------------------------------------
# Driver
# ----------------------------------------------------------------------------
if __name__ == "__main__":
    key = jax.random.PRNGKey(0)
    k_params, k_seq, k_cell, k_rd = jax.random.split(key, 4)

    params = init_params(k_params)

    B = 4
    tokens = jax.random.randint(k_seq, (B, SEQ_LEN), 0, 4)
    X = jnp.transpose(jax.nn.one_hot(tokens, 4, dtype=jnp.float32), (0, 2, 1))
    cell_states = jax.random.normal(k_cell, (B, N_CELL_INPUTS), jnp.float32)
    read_depths = jax.random.uniform(k_rd, (B, 1), jnp.float32, 1.0, 5.0)

    y = dragonnfruit_forward(params, X, cell_states, read_depths)
    y = jax.block_until_ready(y)

    assert y.shape == (B, OUT_LEN), y.shape
    assert bool(jnp.all(jnp.isfinite(y)))

    y_ref = _ref_forward(params, X, cell_states, read_depths)
    max_err = float(jnp.max(jnp.abs(y - y_ref)))
    assert max_err < 3e-2, max_err

    # TODO(synk): fit/_train_step/predict/predict_cross/Logger are host-side
    # training / batching orchestration and are not part of the kernelized
    # forward pass.
    print("KERNEL_OK")
</pallas_src>

<mosaic_0001>
module attributes {stable_mosaic.version = 11 : i64} {
  func.func @_fused_kernel(%arg0: i32, %arg1: memref<2x128x128xbf16, #tpu.memory_space<vmem>>, %arg2: memref<2x2x128xf32, #tpu.memory_space<vmem>>, %arg3: memref<4x1xf32, #tpu.memory_space<smem>>, %arg4: memref<128x128xbf16, #tpu.memory_space<vmem>>, %arg5: memref<1x128xf32, #tpu.memory_space<vmem>>, %arg6: memref<3x128x128xbf16, #tpu.memory_space<vmem>>, %arg7: memref<3x128x128xbf16, #tpu.memory_space<vmem>>, %arg8: memref<15x128xf32, #tpu.memory_space<vmem>>, %arg9: memref<1x2x64xf32, #tpu.memory_space<vmem>>, %arg10: memref<320x128xf32, #tpu.memory_space<vmem>>, %arg11: memref<320x128xbf16, #tpu.memory_space<vmem>>) attributes {dimension_semantics = [#tpu.dimension_semantics<parallel>], iteration_bounds = array<i64: 2>, scalar_prefetch = 0 : i64, scratch_operands = 2 : i64, tpu.core_type = #tpu.core_type<tc>, window_params = [{transform_indices = @transform_0, window_bounds = array<i64: 2, 128, 128>}, {transform_indices = @transform_1, window_bounds = array<i64: 2, 2, 128>}, {transform_indices = @transform_2, window_bounds = array<i64: 4, 1>}, {pipeline_mode = #tpu.pipeline_mode<synchronous>, transform_indices = @transform_3, window_bounds = array<i64: 128, 128>}, {pipeline_mode = #tpu.pipeline_mode<synchronous>, transform_indices = @transform_4, window_bounds = array<i64: 1, 128>}, {pipeline_mode = #tpu.pipeline_mode<synchronous>, transform_indices = @transform_5, window_bounds = array<i64: 3, 128, 128>}, {pipeline_mode = #tpu.pipeline_mode<synchronous>, transform_indices = @transform_6, window_bounds = array<i64: 3, 128, 128>}, {pipeline_mode = #tpu.pipeline_mode<synchronous>, transform_indices = @transform_7, window_bounds = array<i64: 15, 128>}, {transform_indices = @transform_8, window_bounds = array<i64: 1, 2, 64>}]} {
    %cst = arith.constant 0.000000e+00 : bf16
    %0 = vector.broadcast %cst : bf16 to vector<16x128xbf16>
    %c0 = arith.constant 0 : index
    %c0_0 = arith.constant 0 : index
    %1 = vector.load %arg11[%c0, %c0_0] : memref<320x128xbf16, #tpu.memory_space<vmem>>, vector<16x128xbf16>
    tpu.vector_store %arg11[%c0, %c0_0], %0 {strides = array<i32>} : memref<320x128xbf16, #tpu.memory_space<vmem>>, vector<16x128xbf16>,
    %c144 = arith.constant 144 : index
    %c0_1 = arith.constant 0 : index
    %2 = vector.load %arg11[%c144, %c0_1] : memref<320x128xbf16, #tpu.memory_space<vmem>>, vector<16x128xbf16>
    tpu.vector_store %arg11[%c144, %c0_1], %0 {strides = array<i32>} : memref<320x128xbf16, #tpu.memory_space<vmem>>, vector<16x128xbf16>,
    %c160 = arith.constant 160 : index
    %c0_2 = arith.constant 0 : index
    %3 = vector.load %arg11[%c160, %c0_2] : memref<320x128xbf16, #tpu.memory_space<vmem>>, vector<16x128xbf16>
    tpu.vector_store %arg11[%c160, %c0_2], %0 {strides = array<i32>} : memref<320x128xbf16, #tpu.memory_space<vmem>>, vector<16x128xbf16>,
    %c304 = arith.constant 304 : index
    %c0_3 = arith.constant 0 : index
    %4 = vector.load %arg11[%c304, %c0_3] : memref<320x128xbf16, #tpu.memory_space<vmem>>, vector<16x128xbf16>
    tpu.vector_store %arg11[%c304, %c0_3], %0 {strides = array<i32>} : memref<320x128xbf16, #tpu.memory_space<vmem>>, vector<16x128xbf16>,
    %c0_4 = arith.constant 0 : index
    %c0_5 = arith.constant 0 : index
    %c0_6 = arith.constant 0 : index
    %5 = vector.load %arg2[%c0_4, %c0_5, %c0_6] : memref<2x2x128xf32, #tpu.memory_space<vmem>>, vector<2x2x128xf32>
    %c0_7 = arith.constant 0 : index
    %c0_8 = arith.constant 0 : index
    %c0_9 = arith.constant 0 : index
    %6 = vector.load %arg1[%c0_7, %c0_8, %c0_9] : memref<2x128x128xbf16, #tpu.memory_space<vmem>>, vector<2x128x128xbf16>
    %7 = vector.shape_cast %6 : vector<2x128x128xbf16> to vector<256x128xbf16>
    %c0_10 = arith.constant 0 : index
    %c0_11 = arith.constant 0 : index
    %8 = vector.load %arg4[%c0_10, %c0_11] : memref<128x128xbf16, #tpu.memory_space<vmem>>, vector<128x128xbf16>
    %cst_12 = arith.constant dense<0.000000e+00> : vector<256x128xf32>
    %9 = tpu.matmul %7, %8, %cst_12 {dimension_numbers = #tpu.dot_dimension_numbers<[1], [0], [0], [1], [0, 0, 1, 1], [], []>} : vector<256x128xbf16>, vector<128x128xbf16>, vector<256x128xf32> -> vector<256x128xf32>
    %c0_13 = arith.constant 0 : index
    %c0_14 = arith.constant 0 : index
    %10 = vector.load %arg5[%c0_13, %c0_14] : memref<1x128xf32, #tpu.memory_space<vmem>>, vector<1x128xf32>
    %11 = vector.broadcast %10 : vector<1x128xf32> to vector<256x128xf32>
    %12 = arith.addf %9, %11 : vector<256x128xf32>
    %cst_15 = arith.constant 0.000000e+00 : f32
    %13 = vector.broadcast %cst_15 : f32 to vector<256x128xf32>
    %14 = arith.maximumf %12, %13 : vector<256x128xf32>
    %15 = vector.extract_strided_slice %14 {offsets = [0, 0], sizes = [128, 128], strides = [1, 1]} : vector<256x128xf32> to vector<128x128xf32>
    %c16 = arith.constant 16 : index
    %c0_16 = arith.constant 0 : index
    %16 = vector.load %arg10[%c16, %c0_16] : memref<320x128xf32, #tpu.memory_space<vmem>>, vector<128x128xf32>
    tpu.vector_store %arg10[%c16, %c0_16], %15 {strides = array<i32>} : memref<320x128xf32, #tpu.memory_space<vmem>>, vector<128x128xf32>,
    %17 = arith.truncf %15 : vector<128x128xf32> to vector<128x128xbf16>
    %c16_17 = arith.constant 16 : index
    %c0_18 = arith.constant 0 : index
    %18 = vector.load %arg11[%c16_17, %c0_18] : memref<320x128xbf16, #tpu.memory_space<vmem>>, vector<128x128xbf16>
    tpu.vector_store %arg11[%c16_17, %c0_18], %17 {strides = array<i32>} : memref<320x128xbf16, #tpu.memory_space<vmem>>, vector<128x128xbf16>,
    %19 = vector.extract_strided_slice %14 {offsets = [128, 0], sizes = [128, 128], strides = [1, 1]} : vector<256x128xf32> to vector<128x128xf32>
    %c176 = arith.constant 176 : index
    %c0_19 = arith.constant 0 : index
    %20 = vector.load %arg10[%c176, %c0_19] : memref<320x128xf32, #tpu.memory_space<vmem>>, vector<128x128xf32>
    tpu.vector_store %arg10[%c176, %c0_19], %19 {strides = array<i32>} : memref<320x128xf32, #tpu.memory_space<vmem>>, vector<128x128xf32>,
    %21 = arith.truncf %19 : vector<128x128xf32> to vector<128x128xbf16>
    %c176_20 = arith.constant 176 : index
    %c0_21 = arith.constant 0 : index
    %22 = vector.load %arg11[%c176_20, %c0_21] : memref<320x128xbf16, #tpu.memory_space<vmem>>, vector<128x128xbf16>
    tpu.vector_store %arg11[%c176_20, %c0_21], %21 {strides = array<i32>} : memref<320x128xbf16, #tpu.memory_space<vmem>>, vector<128x128xbf16>,
    %c14 = arith.constant 14 : index
    %c0_22 = arith.constant 0 : index
    %23 = vector.load %arg11[%c14, %c0_22] : memref<320x128xbf16, #tpu.memory_space<vmem>>, vector<288x128xbf16>
    %c0_23 = arith.constant 0 : index
    %c0_24 = arith.constant 0 : index
    %c0_25 = arith.constant 0 : index
    %24 = vector.load %arg6[%c0_23, %c0_24, %c0_25] : memref<3x128x128xbf16, #tpu.memory_space<vmem>>, vector<1x128x128xbf16>
    %25 = vector.shape_cast %24 : vector<1x128x128xbf16> to vector<128x128xbf16>
    %cst_26 = arith.constant dense<0.000000e+00> : vector<288x128xf32>
    %26 = tpu.matmul %23, %25, %cst_26 {dimension_numbers = #tpu.dot_dimension_numbers<[1], [0], [0], [1], [0, 0, 1, 1], [], []>} : vector<288x128xbf16>, vector<128x128xbf16>, vector<288x128xf32> -> vector<288x128xf32>
    %c16_27 = arith.constant 16 : index
    %c0_28 = arith.constant 0 : index
    %27 = vector.load %arg11[%c16_27, %c0_28] : memref<320x128xbf16, #tpu.memory_space<vmem>>, vector<288x128xbf16>
    %c1 = arith.constant 1 : index
    %c0_29 = arith.constant 0 : index
    %c0_30 = arith.constant 0 : index
    %28 = vector.load %arg6[%c1, %c0_29, %c0_30] : memref<3x128x128xbf16, #tpu.memory_space<vmem>>, vector<1x128x128xbf16>
    %29 = vector.shape_cast %28 : vector<1x128x128xbf16> to vector<128x128xbf16>
    %cst_31 = arith.constant dense<0.000000e+00> : vector<288x128xf32>
    %30 = tpu.matmul %27, %29, %cst_31 {dimension_numbers = #tpu.dot_dimension_numbers<[1], [0], [0], [1], [0, 0, 1, 1], [], []>} : vector<288x128xbf16>, vector<128x128xbf16>, vector<288x128xf32> -> vector<288x128xf32>
    %31 = arith.addf %26, %30 : vector<288x128xf32>
    %c18 = arith.constant 18 : index
    %c0_32 = arith.constant 0 : index
    %32 = vector.load %arg11[%c18, %c0_32] : memref<320x128xbf16, #tpu.memory_space<vmem>>, vector<288x128xbf16>
    %c2 = arith.constant 2 : index
    %c0_33 = arith.constant 0 : index
    %c0_34 = arith.constant 0 : index
    %33 = vector.load %arg6[%c2, %c0_33, %c0_34] : memref<3x128x128xbf16, #tpu.memory_space<vmem>>, vector<1x128x128xbf16>
    %34 = vector.shape_cast %33 : vector<1x128x128xbf16> to vector<128x128xbf16>
    %cst_35 = arith.constant dense<0.000000e+00> : vector<288x128xf32>
    %35 = tpu.matmul %32, %34, %cst_35 {dimension_numbers = #tpu.dot_dimension_numbers<[1], [0], [0], [1], [0, 0, 1, 1], [], []>} : vector<288x128xbf16>, vector<128x128xbf16>, vector<288x128xf32> -> vector<288x128xf32>
    %36 = arith.addf %31, %35 : vector<288x128xf32>
    %37 = vector.extract_strided_slice %36 {offsets = [0, 0], sizes = [128, 128], strides = [1, 1]} : vector<288x128xf32> to vector<128x128xf32>
    %38 = vector.extract_strided_slice %5 {offsets = [0, 0, 0], sizes = [1, 1, 128], strides = [1, 1, 1]} : vector<2x2x128xf32> to vector<1x1x128xf32>
    %39 = vector.shape_cast %38 : vector<1x1x128xf32> to vector<128xf32>
    %40 = vector.shape_cast %39 : vector<128xf32> to vector<1x128xf32>
    %41 = vector.broadcast %40 : vector<1x128xf32> to vector<128x128xf32>
    %42 = arith.addf %37, %41 : vector<128x128xf32>
    %cst_36 = arith.constant 0.000000e+00 : f32
    %43 = vector.broadcast %cst_36 : f32 to vector<128x128xf32>
    %44 = arith.maximumf %42, %43 : vector<128x128xf32>
    %c16_37 = arith.constant 16 : index
    %c0_38 = arith.constant 0 : index
    %45 = vector.load %arg10[%c16_37, %c0_38] : memref<320x128xf32, #tpu.memory_space<vmem>>, vector<128x128xf32>
    %46 = arith.addf %45, %44 : vector<128x128xf32>
    %c16_39 = arith.constant 16 : index
    %c0_40 = arith.constant 0 : index
    %47 = vector.load %arg10[%c16_39, %c0_40] : memref<320x128xf32, #tpu.memory_space<vmem>>, vector<128x128xf32>
    tpu.vector_store %arg10[%c16_39, %c0_40], %46 {strides = array<i32>} : memref<320x128xf32, #tpu.memory_space<vmem>>, vector<128x128xf32>,
    %48 = arith.truncf %46 : vector<128x128xf32> to vector<128x128xbf16>
    %c16_41 = arith.constant 16 : index
    %c0_42 = arith.constant 0 : index
    %49 = vector.load %arg11[%c16_41, %c0_42] : memref<320x128xbf16, #tpu.memory_space<vmem>>, vector<128x128xbf16>
    tpu.vector_store %arg11[%c16_41, %c0_42], %48 {strides = array<i32>} : memref<320x128xbf16, #tpu.memory_space<vmem>>, vector<128x128xbf16>,
    %50 = vector.extract_strided_slice %36 {offsets = [160, 0], sizes = [128, 128], strides = [1, 1]} : vector<288x128xf32> to vector<128x128xf32>
    %51 = vector.extract_strided_slice %5 {offsets = [1, 0, 0], sizes = [1, 1, 128], strides = [1, 1, 1]} : vector<2x2x128xf32> to vector<1x1x128xf32>
    %52 = vector.shape_cast %51 : vector<1x1x128xf32> to vector<128xf32>
    %53 = vector.shape_cast %52 : vector<128xf32> to vector<1x128xf32>
    %54 = vector.broadcast %53 : vector<1x128xf32> to vector<128x128xf32>
    %55 = arith.addf %50, %54 : vector<128x128xf32>
    %cst_43 = arith.constant 0.000000e+00 : f32
    %56 = vector.broadcast %cst_43 : f32 to vector<128x128xf32>
    %57 = arith.maximumf %55, %56 : vector<128x128xf32>
    %c176_44 = arith.constant 176 : index
    %c0_45 = arith.constant 0 : index
    %58 = vector.load %arg10[%c176_44, %c0_45] : memref<320x128xf32, #tpu.memory_space<vmem>>, vector<128x128xf32>
    %59 = arith.addf %58, %57 : vector<128x128xf32>
    %c176_46 = arith.constant 176 : index
    %c0_47 = arith.constant 0 : index
    %60 = vector.load %arg10[%c176_46, %c0_47] : memref<320x128xf32, #tpu.memory_space<vmem>>, vector<128x128xf32>
    tpu.vector_store %arg10[%c176_46, %c0_47], %59 {strides = array<i32>} : memref<320x128xf32, #tpu.memory_space<vmem>>, vector<128x128xf32>,
    %61 = arith.truncf %59 : vector<128x128xf32> to vector<128x128xbf16>
    %c176_48 = arith.constant 176 : index
    %c0_49 = arith.constant 0 : index
    %62 = vector.load %arg11[%c176_48, %c0_49] : memref<320x128xbf16, #tpu.memory_space<vmem>>, vector<128x128xbf16>
    tpu.vector_store %arg11[%c176_48, %c0_49], %61 {strides = array<i32>} : memref<320x128xbf16, #tpu.memory_space<vmem>>, vector<128x128xbf16>,
    %c12 = arith.constant 12 : index
    %c0_50 = arith.constant 0 : index
    %63 = vector.load %arg11[%c12, %c0_50] : memref<320x128xbf16, #tpu.memory_space<vmem>>, vector<288x128xbf16>
    %c0_51 = arith.constant 0 : index
    %c0_52 = arith.constant 0 : index
    %c0_53 = arith.constant 0 : index
    %64 = vector.load %arg7[%c0_51, %c0_52, %c0_53] : memref<3x128x128xbf16, #tpu.memory_space<vmem>>, vector<1x128x128xbf16>
    %65 = vector.shape_cast %64 : vector<1x128x128xbf16> to vector<128x128xbf16>
    %cst_54 = arith.constant dense<0.000000e+00> : vector<288x128xf32>
    %66 = tpu.matmul %63, %65, %cst_54 {dimension_numbers = #tpu.dot_dimension_numbers<[1], [0], [0], [1], [0, 0, 1, 1], [], []>} : vector<288x128xbf16>, vector<128x128xbf16>, vector<288x128xf32> -> vector<288x128xf32>
    %c16_55 = arith.constant 16 : index
    %c0_56 = arith.constant 0 : index
    %67 = vector.load %arg11[%c16_55, %c0_56] : memref<320x128xbf16, #tpu.memory_space<vmem>>, vector<288x128xbf16>
    %c1_57 = arith.constant 1 : index
    %c0_58 = arith.constant 0 : index
    %c0_59 = arith.constant 0 : index
    %68 = vector.load %arg7[%c1_57, %c0_58, %c0_59] : memref<3x128x128xbf16, #tpu.memory_space<vmem>>, vector<1x128x128xbf16>
    %69 = vector.shape_cast %68 : vector<1x128x128xbf16> to vector<128x128xbf16>
    %cst_60 = arith.constant dense<0.000000e+00> : vector<288x128xf32>
    %70 = tpu.matmul %67, %69, %cst_60 {dimension_numbers = #tpu.dot_dimension_numbers<[1], [0], [0], [1], [0, 0, 1, 1], [], []>} : vector<288x128xbf16>, vector<128x128xbf16>, vector<288x128xf32> -> vector<288x128xf32>
    %71 = arith.addf %66, %70 : vector<288x128xf32>
    %c20 = arith.constant 20 : index
    %c0_61 = arith.constant 0 : index
    %72 = vector.load %arg11[%c20, %c0_61] : memref<320x128xbf16, #tpu.memory_space<vmem>>, vector<288x128xbf16>
    %c2_62 = arith.constant 2 : index
    %c0_63 = arith.constant 0 : index
    %c0_64 = arith.constant 0 : index
    %73 = vector.load %arg7[%c2_62, %c0_63, %c0_64] : memref<3x128x128xbf16, #tpu.memory_space<vmem>>, vector<1x128x128xbf16>
    %74 = vector.shape_cast %73 : vector<1x128x128xbf16> to vector<128x128xbf16>
    %cst_65 = arith.constant dense<0.000000e+00> : vector<288x128xf32>
    %75 = tpu.matmul %72, %74, %cst_65 {dimension_numbers = #tpu.dot_dimension_numbers<[1], [0], [0], [1], [0, 0, 1, 1], [], []>} : vector<288x128xbf16>, vector<128x128xbf16>, vector<288x128xf32> -> vector<288x128xf32>
    %76 = arith.addf %71, %75 : vector<288x128xf32>
    %77 = vector.extract_strided_slice %76 {offsets = [0, 0], sizes = [128, 128], strides = [1, 1]} : vector<288x128xf32> to vector<128x128xf32>
    %78 = vector.extract_strided_slice %5 {offsets = [0, 1, 0], sizes = [1, 1, 128], strides = [1, 1, 1]} : vector<2x2x128xf32> to vector<1x1x128xf32>
    %79 = vector.shape_cast %78 : vector<1x1x128xf32> to vector<128xf32>
    %80 = vector.shape_cast %79 : vector<128xf32> to vector<1x128xf32>
    %81 = vector.broadcast %80 : vector<1x128xf32> to vector<128x128xf32>
    %82 = arith.addf %77, %81 : vector<128x128xf32>
    %cst_66 = arith.constant 0.000000e+00 : f32
    %83 = vector.broadcast %cst_66 : f32 to vector<128x128xf32>
    %84 = arith.maximumf %82, %83 : vector<128x128xf32>
    %c16_67 = arith.constant 16 : index
    %c0_68 = arith.constant 0 : index
    %85 = vector.load %arg10[%c16_67, %c0_68] : memref<320x128xf32, #tpu.memory_space<vmem>>, vector<128x128xf32>
    %86 = arith.addf %85, %84 : vector<128x128xf32>
    %c16_69 = arith.constant 16 : index
    %c0_70 = arith.constant 0 : index
    %87 = vector.load %arg10[%c16_69, %c0_70] : memref<320x128xf32, #tpu.memory_space<vmem>>, vector<128x128xf32>
    tpu.vector_store %arg10[%c16_69, %c0_70], %86 {strides = array<i32>} : memref<320x128xf32, #tpu.memory_space<vmem>>, vector<128x128xf32>,
    %88 = vector.extract_strided_slice %76 {offsets = [160, 0], sizes = [128, 128], strides = [1, 1]} : vector<288x128xf32> to vector<128x128xf32>
    %89 = vector.extract_strided_slice %5 {offsets = [1, 1, 0], sizes = [1, 1, 128], strides = [1, 1, 1]} : vector<2x2x128xf32> to vector<1x1x128xf32>
    %90 = vector.shape_cast %89 : vector<1x1x128xf32> to vector<128xf32>
    %91 = vector.shape_cast %90 : vector<128xf32> to vector<1x128xf32>
    %92 = vector.broadcast %91 : vector<1x128xf32> to vector<128x128xf32>
    %93 = arith.addf %88, %92 : vector<128x128xf32>
    %cst_71 = arith.constant 0.000000e+00 : f32
    %94 = vector.broadcast %cst_71 : f32 to vector<128x128xf32>
    %95 = arith.maximumf %93, %94 : vector<128x128xf32>
    %c176_72 = arith.constant 176 : index
    %c0_73 = arith.constant 0 : index
    %96 = vector.load %arg10[%c176_72, %c0_73] : memref<320x128xf32, #tpu.memory_space<vmem>>, vector<128x128xf32>
    %97 = arith.addf %96, %95 : vector<128x128xf32>
    %c176_74 = arith.constant 176 : index
    %c0_75 = arith.constant 0 : index
    %98 = vector.load %arg10[%c176_74, %c0_75] : memref<320x128xf32, #tpu.memory_space<vmem>>, vector<128x128xf32>
    tpu.vector_store %arg10[%c176_74, %c0_75], %97 {strides = array<i32>} : memref<320x128xf32, #tpu.memory_space<vmem>>, vector<128x128xf32>,
    %c0_76 = arith.constant 0 : index
    %c0_77 = arith.constant 0 : index
    %99 = vector.load %arg8[%c0_76, %c0_77] : memref<15x128xf32, #tpu.memory_space<vmem>>, vector<15x128xf32>
    %c2_i32 = arith.constant 2 : i32
    %100 = arith.muli %arg0, %c2_i32 : i32
    %c41 = arith.constant 41 : index
    %c0_78 = arith.constant 0 : index
    %101 = vector.load %arg10[%c41, %c0_78] : memref<320x128xf32, #tpu.memory_space<vmem>>, vector<64x128xf32>
    %102 = vector.extract_strided_slice %99 {offsets = [0, 0], sizes = [1, 128], strides = [1, 1]} : vector<15x128xf32> to vector<1x128xf32>
    %103 = vector.broadcast %102 : vector<1x128xf32> to vector<64x128xf32>
    %104 = arith.mulf %101, %103 : vector<64x128xf32>
    %c42 = arith.constant 42 : index
    %c0_79 = arith.constant 0 : index
    %105 = vector.load %arg10[%c42, %c0_79] : memref<320x128xf32, #tpu.memory_space<vmem>>, vector<64x128xf32>
    %106 = vector.extract_strided_slice %99 {offsets = [1, 0], sizes = [1, 128], strides = [1, 1]} : vector<15x128xf32> to vector<1x128xf32>
    %107 = vector.broadcast %106 : vector<1x128xf32> to vector<64x128xf32>
    %108 = arith.mulf %105, %107 : vector<64x128xf32>
    %109 = arith.addf %104, %108 : vector<64x128xf32>
    %c43 = arith.constant 43 : index
    %c0_80 = arith.constant 0 : index
    %110 = vector.load %arg10[%c43, %c0_80] : memref<320x128xf32, #tpu.memory_space<vmem>>, vector<64x128xf32>
    %111 = vector.extract_strided_slice %99 {offsets = [2, 0], sizes = [1, 128], strides = [1, 1]} : vector<15x128xf32> to vector<1x128xf32>
    %112 = vector.broadcast %111 : vector<1x128xf32> to vector<64x128xf32>
    %113 = arith.mulf %110, %112 : vector<64x128xf32>
    %114 = arith.addf %109, %113 : vector<64x128xf32>
    %c44 = arith.constant 44 : index
    %c0_81 = arith.constant 0 : index
    %115 = vector.load %arg10[%c44, %c0_81] : memref<320x128xf32, #tpu.memory_space<vmem>>, vector<64x128xf32>
    %116 = vector.extract_strided_slice %99 {offsets = [3, 0], sizes = [1, 128], strides = [1, 1]} : vector<15x128xf32> to vector<1x128xf32>
    %117 = vector.broadcast %116 : vector<1x128xf32> to vector<64x128xf32>
    %118 = arith.mulf %115, %117 : vector<64x128xf32>
    %119 = arith.addf %114, %118 : vector<64x128xf32>
    %c45 = arith.constant 45 : index
    %c0_82 = arith.constant 0 : index
    %120 = vector.load %arg10[%c45, %c0_82] : memref<320x128xf32, #tpu.memory_space<vmem>>, vector<64x128xf32>
    %121 = vector.extract_strided_slice %99 {offsets = [4, 0], sizes = [1, 128], strides = [1, 1]} : vector<15x128xf32> to vector<1x128xf32>
    %122 = vector.broadcast %121 : vector<1x128xf32> to vector<64x128xf32>
    %123 = arith.mulf %120, %122 : vector<64x128xf32>
    %124 = arith.addf %119, %123 : vector<64x128xf32>
    %c46 = arith.constant 46 : index
    %c0_83 = arith.constant 0 : index
    %125 = vector.load %arg10[%c46, %c0_83] : memref<320x128xf32, #tpu.memory_space<vmem>>, vector<64x128xf32>
    %126 = vector.extract_strided_slice %99 {offsets = [5, 0], sizes = [1, 128], strides = [1, 1]} : vector<15x128xf32> to vector<1x128xf32>
    %127 = vector.broadcast %126 : vector<1x128xf32> to vector<64x128xf32>
    %128 = arith.mulf %125, %127 : vector<64x128xf32>
    %129 = arith.addf %124, %128 : vector<64x128xf32>
    %c47 = arith.constant 47 : index
    %c0_84 = arith.constant 0 : index
    %130 = vector.load %arg10[%c47, %c0_84] : memref<320x128xf32, #tpu.memory_space<vmem>>, vector<64x128xf32>
    %131 = vector.extract_strided_slice %99 {offsets = [6, 0], sizes = [1, 128], strides = [1, 1]} : vector<15x128xf32> to vector<1x128xf32>
    %132 = vector.broadcast %131 : vector<1x128xf32> to vector<64x128xf32>
    %133 = arith.mulf %130, %132 : vector<64x128xf32>
    %134 = arith.addf %129, %133 : vector<64x128xf32>
    %c48 = arith.constant 48 : index
    %c0_85 = arith.constant 0 : index
    %135 = vector.load %arg10[%c48, %c0_85] : memref<320x128xf32, #tpu.memory_space<vmem>>, vector<64x128xf32>
    %136 = vector.extract_strided_slice %99 {offsets = [7, 0], sizes = [1, 128], strides = [1, 1]} : vector<15x128xf32> to vector<1x128xf32>
    %137 = vector.broadcast %136 : vector<1x128xf32> to vector<64x128xf32>
    %138 = arith.mulf %135, %137 : vector<64x128xf32>
    %139 = arith.addf %134, %138 : vector<64x128xf32>
    %c49 = arith.constant 49 : index
    %c0_86 = arith.constant 0 : index
    %140 = vector.load %arg10[%c49, %c0_86] : memref<320x128xf32, #tpu.memory_space<vmem>>, vector<64x128xf32>
    %141 = vector.extract_strided_slice %99 {offsets = [8, 0], sizes = [1, 128], strides = [1, 1]} : vector<15x128xf32> to vector<1x128xf32>
    %142 = vector.broadcast %141 : vector<1x128xf32> to vector<64x128xf32>
    %143 = arith.mulf %140, %142 : vector<64x128xf32>
    %144 = arith.addf %139, %143 : vector<64x128xf32>
    %c50 = arith.constant 50 : index
    %c0_87 = arith.constant 0 : index
    %145 = vector.load %arg10[%c50, %c0_87] : memref<320x128xf32, #tpu.memory_space<vmem>>, vector<64x128xf32>
    %146 = vector.extract_strided_slice %99 {offsets = [9, 0], sizes = [1, 128], strides = [1, 1]} : vector<15x128xf32> to vector<1x128xf32>
    %147 = vector.broadcast %146 : vector<1x128xf32> to vector<64x128xf32>
    %148 = arith.mulf %145, %147 : vector<64x128xf32>
    %149 = arith.addf %144, %148 : vector<64x128xf32>
    %c51 = arith.constant 51 : index
    %c0_88 = arith.constant 0 : index
    %150 = vector.load %arg10[%c51, %c0_88] : memref<320x128xf32, #tpu.memory_space<vmem>>, vector<64x128xf32>
    %151 = vector.extract_strided_slice %99 {offsets = [10, 0], sizes = [1, 128], strides = [1, 1]} : vector<15x128xf32> to vector<1x128xf32>
    %152 = vector.broadcast %151 : vector<1x128xf32> to vector<64x128xf32>
    %153 = arith.mulf %150, %152 : vector<64x128xf32>
    %154 = arith.addf %149, %153 : vector<64x128xf32>
    %c52 = arith.constant 52 : index
    %c0_89 = arith.constant 0 : index
    %155 = vector.load %arg10[%c52, %c0_89] : memref<320x128xf32, #tpu.memory_space<vmem>>, vector<64x128xf32>
    %156 = vector.extract_strided_slice %99 {offsets = [11, 0], sizes = [1, 128], strides = [1, 1]} : vector<15x128xf32> to vector<1x128xf32>
    %157 = vector.broadcast %156 : vector<1x128xf32> to vector<64x128xf32>
    %158 = arith.mulf %155, %157 : vector<64x128xf32>
    %159 = arith.addf %154, %158 : vector<64x128xf32>
    %c53 = arith.constant 53 : index
    %c0_90 = arith.constant 0 : index
    %160 = vector.load %arg10[%c53, %c0_90] : memref<320x128xf32, #tpu.memory_space<vmem>>, vector<64x128xf32>
    %161 = vector.extract_strided_slice %99 {offsets = [12, 0], sizes = [1, 128], strides = [1, 1]} : vector<15x128xf32> to vector<1x128xf32>
    %162 = vector.broadcast %161 : vector<1x128xf32> to vector<64x128xf32>
    %163 = arith.mulf %160, %162 : vector<64x128xf32>
    %164 = arith.addf %159, %163 : vector<64x128xf32>
    %c54 = arith.constant 54 : index
    %c0_91 = arith.constant 0 : index
    %165 = vector.load %arg10[%c54, %c0_91] : memref<320x128xf32, #tpu.memory_space<vmem>>, vector<64x128xf32>
    %166 = vector.extract_strided_slice %99 {offsets = [13, 0], sizes = [1, 128], strides = [1, 1]} : vector<15x128xf32> to vector<1x128xf32>
    %167 = vector.broadcast %166 : vector<1x128xf32> to vector<64x128xf32>
    %168 = arith.mulf %165, %167 : vector<64x128xf32>
    %169 = arith.addf %164, %168 : vector<64x128xf32>
    %c55 = arith.constant 55 : index
    %c0_92 = arith.constant 0 : index
    %170 = vector.load %arg10[%c55, %c0_92] : memref<320x128xf32, #tpu.memory_space<vmem>>, vector<64x128xf32>
    %171 = vector.extract_strided_slice %99 {offsets = [14, 0], sizes = [1, 128], strides = [1, 1]} : vector<15x128xf32> to vector<1x128xf32>
    %172 = vector.broadcast %171 : vector<1x128xf32> to vector<64x128xf32>
    %173 = arith.mulf %170, %172 : vector<64x128xf32>
    %174 = arith.addf %169, %173 : vector<64x128xf32>
    %cst_93 = arith.constant dense<0.000000e+00> : vector<64xf32>
    %175 = vector.multi_reduction <add>, %174, %cst_93 [1] : vector<64x128xf32> to vector<64xf32>
    %c0_i32 = arith.constant 0 : i32
    %176 = arith.addi %100, %c0_i32 : i32
    %177 = arith.index_cast %176 : i32 to index
    %c0_94 = arith.constant 0 : index
    %178 = memref.load %arg3[%177, %c0_94] : memref<4x1xf32, #tpu.memory_space<smem>>
    %179 = vector.broadcast %178 : f32 to vector<64xf32>
    %180 = arith.addf %179, %175 : vector<64xf32>
    %c0_95 = arith.constant 0 : index
    %c0_96 = arith.constant 0 : index
    %c0_97 = arith.constant 0 : index
    %181 = vector.load %arg9[%c0_95, %c0_96, %c0_97] : memref<1x2x64xf32, #tpu.memory_space<vmem>>, vector<1x1x64xf32>
    %182 = vector.shape_cast %181 : vector<1x1x64xf32> to vector<64xf32>
    %183 = vector.shape_cast %180 : vector<64xf32> to vector<1x1x64xf32>
    tpu.vector_store %arg9[%c0_95, %c0_96, %c0_97], %183 {strides = array<i32>} : memref<1x2x64xf32, #tpu.memory_space<vmem>>, vector<1x1x64xf32>,
    %c201 = arith.constant 201 : index
    %c0_98 = arith.constant 0 : index
    %184 = vector.load %arg10[%c201, %c0_98] : memref<320x128xf32, #tpu.memory_space<vmem>>, vector<64x128xf32>
    %185 = vector.extract_strided_slice %99 {offsets = [0, 0], sizes = [1, 128], strides = [1, 1]} : vector<15x128xf32> to vector<1x128xf32>
    %186 = vector.broadcast %185 : vector<1x128xf32> to vector<64x128xf32>
    %187 = arith.mulf %184, %186 : vector<64x128xf32>
    %c202 = arith.constant 202 : index
    %c0_99 = arith.constant 0 : index
    %188 = vector.load %arg10[%c202, %c0_99] : memref<320x128xf32, #tpu.memory_space<vmem>>, vector<64x128xf32>
    %189 = vector.extract_strided_slice %99 {offsets = [1, 0], sizes = [1, 128], strides = [1, 1]} : vector<15x128xf32> to vector<1x128xf32>
    %190 = vector.broadcast %189 : vector<1x128xf32> to vector<64x128xf32>
    %191 = arith.mulf %188, %190 : vector<64x128xf32>
    %192 = arith.addf %187, %191 : vector<64x128xf32>
    %c203 = arith.constant 203 : index
    %c0_100 = arith.constant 0 : index
    %193 = vector.load %arg10[%c203, %c0_100] : memref<320x128xf32, #tpu.memory_space<vmem>>, vector<64x128xf32>
    %194 = vector.extract_strided_slice %99 {offsets = [2, 0], sizes = [1, 128], strides = [1, 1]} : vector<15x128xf32> to vector<1x128xf32>
    %195 = vector.broadcast %194 : vector<1x128xf32> to vector<64x128xf32>
    %196 = arith.mulf %193, %195 : vector<64x128xf32>
    %197 = arith.addf %192, %196 : vector<64x128xf32>
    %c204 = arith.constant 204 : index
    %c0_101 = arith.constant 0 : index
    %198 = vector.load %arg10[%c204, %c0_101] : memref<320x128xf32, #tpu.memory_space<vmem>>, vector<64x128xf32>
    %199 = vector.extract_strided_slice %99 {offsets = [3, 0], sizes = [1, 128], strides = [1, 1]} : vector<15x128xf32> to vector<1x128xf32>
    %200 = vector.broadcast %199 : vector<1x128xf32> to vector<64x128xf32>
    %201 = arith.mulf %198, %200 : vector<64x128xf32>
    %202 = arith.addf %197, %201 : vector<64x128xf32>
    %c205 = arith.constant 205 : index
    %c0_102 = arith.constant 0 : index
    %203 = vector.load %arg10[%c205, %c0_102] : memref<320x128xf32, #tpu.memory_space<vmem>>, vector<64x128xf32>
    %204 = vector.extract_strided_slice %99 {offsets = [4, 0], sizes = [1, 128], strides = [1, 1]} : vector<15x128xf32> to vector<1x128xf32>
    %205 = vector.broadcast %204 : vector<1x128xf32> to vector<64x128xf32>
    %206 = arith.mulf %203, %205 : vector<64x128xf32>
    %207 = arith.addf %202, %206 : vector<64x128xf32>
    %c206 = arith.constant 206 : index
    %c0_103 = arith.constant 0 : index
    %208 = vector.load %arg10[%c206, %c0_103] : memref<320x128xf32, #tpu.memory_space<vmem>>, vector<64x128xf32>
    %209 = vector.extract_strided_slice %99 {offsets = [5, 0], sizes = [1, 128], strides = [1, 1]} : vector<15x128xf32> to vector<1x128xf32>
    %210 = vector.broadcast %209 : vector<1x128xf32> to vector<64x128xf32>
    %211 = arith.mulf %208, %210 : vector<64x128xf32>
    %212 = arith.addf %207, %211 : vector<64x128xf32>
    %c207 = arith.constant 207 : index
    %c0_104 = arith.constant 0 : index
    %213 = vector.load %arg10[%c207, %c0_104] : memref<320x128xf32, #tpu.memory_space<vmem>>, vector<64x128xf32>
    %214 = vector.extract_strided_slice %99 {offsets = [6, 0], sizes = [1, 128], strides = [1, 1]} : vector<15x128xf32> to vector<1x128xf32>
    %215 = vector.broadcast %214 : vector<1x128xf32> to vector<64x128xf32>
    %216 = arith.mulf %213, %215 : vector<64x128xf32>
    %217 = arith.addf %212, %216 : vector<64x128xf32>
    %c208 = arith.constant 208 : index
    %c0_105 = arith.constant 0 : index
    %218 = vector.load %arg10[%c208, %c0_105] : memref<320x128xf32, #tpu.memory_space<vmem>>, vector<64x128xf32>
    %219 = vector.extract_strided_slice %99 {offsets = [7, 0], sizes = [1, 128], strides = [1, 1]} : vector<15x128xf32> to vector<1x128xf32>
    %220 = vector.broadcast %219 : vector<1x128xf32> to vector<64x128xf32>
    %221 = arith.mulf %218, %220 : vector<64x128xf32>
    %222 = arith.addf %217, %221 : vector<64x128xf32>
    %c209 = arith.constant 209 : index
    %c0_106 = arith.constant 0 : index
    %223 = vector.load %arg10[%c209, %c0_106] : memref<320x128xf32, #tpu.memory_space<vmem>>, vector<64x128xf32>
    %224 = vector.extract_strided_slice %99 {offsets = [8, 0], sizes = [1, 128], strides = [1, 1]} : vector<15x128xf32> to vector<1x128xf32>
    %225 = vector.broadcast %224 : vector<1x128xf32> to vector<64x128xf32>
    %226 = arith.mulf %223, %225 : vector<64x128xf32>
    %227 = arith.addf %222, %226 : vector<64x128xf32>
    %c210 = arith.constant 210 : index
    %c0_107 = arith.constant 0 : index
    %228 = vector.load %arg10[%c210, %c0_107] : memref<320x128xf32, #tpu.memory_space<vmem>>, vector<64x128xf32>
    %229 = vector.extract_strided_slice %99 {offsets = [9, 0], sizes = [1, 128], strides = [1, 1]} : vector<15x128xf32> to vector<1x128xf32>
    %230 = vector.broadcast %229 : vector<1x128xf32> to vector<64x128xf32>
    %231 = arith.mulf %228, %230 : vector<64x128xf32>
    %232 = arith.addf %227, %231 : vector<64x128xf32>
    %c211 = arith.constant 211 : index
    %c0_108 = arith.constant 0 : index
    %233 = vector.load %arg10[%c211, %c0_108] : memref<320x128xf32, #tpu.memory_space<vmem>>, vector<64x128xf32>
    %234 = vector.extract_strided_slice %99 {offsets = [10, 0], sizes = [1, 128], strides = [1, 1]} : vector<15x128xf32> to vector<1x128xf32>
    %235 = vector.broadcast %234 : vector<1x128xf32> to vector<64x128xf32>
    %236 = arith.mulf %233, %235 : vector<64x128xf32>
    %237 = arith.addf %232, %236 : vector<64x128xf32>
    %c212 = arith.constant 212 : index
    %c0_109 = arith.constant 0 : index
    %238 = vector.load %arg10[%c212, %c0_109] : memref<320x128xf32, #tpu.memory_space<vmem>>, vector<64x128xf32>
    %239 = vector.extract_strided_slice %99 {offsets = [11, 0], sizes = [1, 128], strides = [1, 1]} : vector<15x128xf32> to vector<1x128xf32>
    %240 = vector.broadcast %239 : vector<1x128xf32> to vector<64x128xf32>
    %241 = arith.mulf %238, %240 : vector<64x128xf32>
    %242 = arith.addf %237, %241 : vector<64x128xf32>
    %c213 = arith.constant 213 : index
    %c0_110 = arith.constant 0 : index
    %243 = vector.load %arg10[%c213, %c0_110] : memref<320x128xf32, #tpu.memory_space<vmem>>, vector<64x128xf32>
    %244 = vector.extract_strided_slice %99 {offsets = [12, 0], sizes = [1, 128], strides = [1, 1]} : vector<15x128xf32> to vector<1x128xf32>
    %245 = vector.broadcast %244 : vector<1x128xf32> to vector<64x128xf32>
    %246 = arith.mulf %243, %245 : vector<64x128xf32>
    %247 = arith.addf %242, %246 : vector<64x128xf32>
    %c214 = arith.constant 214 : index
    %c0_111 = arith.constant 0 : index
    %248 = vector.load %arg10[%c214, %c0_111] : memref<320x128xf32, #tpu.memory_space<vmem>>, vector<64x128xf32>
    %249 = vector.extract_strided_slice %99 {offsets = [13, 0], sizes = [1, 128], strides = [1, 1]} : vector<15x128xf32> to vector<1x128xf32>
    %250 = vector.broadcast %249 : vector<1x128xf32> to vector<64x128xf32>
    %251 = arith.mulf %248, %250 : vector<64x128xf32>
    %252 = arith.addf %247, %251 : vector<64x128xf32>
    %c215 = arith.constant 215 : index
    %c0_112 = arith.constant 0 : index
    %253 = vector.load %arg10[%c215, %c0_112] : memref<320x128xf32, #tpu.memory_space<vmem>>, vector<64x128xf32>
    %254 = vector.extract_strided_slice %99 {offsets = [14, 0], sizes = [1, 128], strides = [1, 1]} : vector<15x128xf32> to vector<1x128xf32>
    %255 = vector.broadcast %254 : vector<1x128xf32> to vector<64x128xf32>
    %256 = arith.mulf %253, %255 : vector<64x128xf32>
    %257 = arith.addf %252, %256 : vector<64x128xf32>
    %cst_113 = arith.constant dense<0.000000e+00> : vector<64xf32>
    %258 = vector.multi_reduction <add>, %257, %cst_113 [1] : vector<64x128xf32> to vector<64xf32>
    %c1_i32 = arith.constant 1 : i32
    %259 = arith.addi %100, %c1_i32 : i32
    %260 = arith.index_cast %259 : i32 to index
    %c0_114 = arith.constant 0 : index
    %261 = memref.load %arg3[%260, %c0_114] : memref<4x1xf32, #tpu.memory_space<smem>>
    %262 = vector.broadcast %261 : f32 to vector<64xf32>
    %263 = arith.addf %262, %258 : vector<64xf32>
    %c0_115 = arith.constant 0 : index
    %c1_116 = arith.constant 1 : index
    %c0_117 = arith.constant 0 : index
    %264 = vector.load %arg9[%c0_115, %c1_116, %c0_117] : memref<1x2x64xf32, #tpu.memory_space<vmem>>, vector<1x1x64xf32>
    %265 = vector.shape_cast %264 : vector<1x1x64xf32> to vector<64xf32>
    %266 = vector.shape_cast %263 : vector<64xf32> to vector<1x1x64xf32>
    tpu.vector_store %arg9[%c0_115, %c1_116, %c0_117], %266 {strides = array<i32>} : memref<1x2x64xf32, #tpu.memory_space<vmem>>, vector<1x1x64xf32>,
    return
  }
  func.func @transform_0(%arg0: i32) -> (i32, i32, i32) {
    %c0_i32 = arith.constant 0 : i32
    %c0_i32_0 = arith.constant 0 : i32
    %c0_i32_1 = arith.constant 0 : i32
    return %arg0, %c0_i32, %c0_i32_0 : i32, i32, i32
  }
  func.func @transform_1(%arg0: i32) -> (i32, i32, i32) {
    %c0_i32 = arith.constant 0 : i32
    %c0_i32_0 = arith.constant 0 : i32
    %c0_i32_1 = arith.constant 0 : i32
    return %arg0, %c0_i32, %c0_i32_0 : i32, i32, i32
  }
  func.func @transform_2(%arg0: i32) -> (i32, i32) {
    %c0_i32 = arith.constant 0 : i32
    %c0_i32_0 = arith.constant 0 : i32
    %c0_i32_1 = arith.constant 0 : i32
    return %c0_i32, %c0_i32_0 : i32, i32
  }
  func.func @transform_3(%arg0: i32) -> (i32, i32) {
    %c0_i32 = arith.constant 0 : i32
    %c0_i32_0 = arith.constant 0 : i32
    %c0_i32_1 = arith.constant 0 : i32
    return %c0_i32, %c0_i32_0 : i32, i32
  }
  func.func @transform_4(%arg0: i32) -> (i32, i32) {
    %c0_i32 = arith.constant 0 : i32
    %c0_i32_0 = arith.constant 0 : i32
    %c0_i32_1 = arith.constant 0 : i32
    return %c0_i32, %c0_i32_0 : i32, i32
  }
  func.func @transform_5(%arg0: i32) -> (i32, i32, i32) {
    %c0_i32 = arith.constant 0 : i32
    %c0_i32_0 = arith.constant 0 : i32
    %c0_i32_1 = arith.constant 0 : i32
    %c0_i32_2 = arith.constant 0 : i32
    return %c0_i32, %c0_i32_0, %c0_i32_1 : i32, i32, i32
  }
  func.func @transform_6(%arg0: i32) -> (i32, i32, i32) {
    %c0_i32 = arith.constant 0 : i32
    %c0_i32_0 = arith.constant 0 : i32
    %c0_i32_1 = arith.constant 0 : i32
    %c0_i32_2 = arith.constant 0 : i32
    return %c0_i32, %c0_i32_0, %c0_i32_1 : i32, i32, i32
  }
  func.func @transform_7(%arg0: i32) -> (i32, i32) {
    %c0_i32 = arith.constant 0 : i32
    %c0_i32_0 = arith.constant 0 : i32
    %c0_i32_1 = arith.constant 0 : i32
    return %c0_i32, %c0_i32_0 : i32, i32
  }
  func.func @transform_8(%arg0: i32) -> (i32, i32, i32) {
    %c0_i32 = arith.constant 0 : i32
    %c0_i32_0 = arith.constant 0 : i32
    %c0_i32_1 = arith.constant 0 : i32
    return %arg0, %c0_i32, %c0_i32_0 : i32, i32, i32
  }
}

</mosaic_0001>

<llo_original>
// kernel: dragonnfruit_forward.1
$region0: #{dragonnfruit_forward.1}
  #allocation0 [shape = 'u32[]', space=smem, size = 0x4, offset = 0x4, fixed_abs, tag = 'smem constant byte address 0x4 - core index']
  #allocation1 [shape = 'u32[72,128]{1,0:T(1,128)}', space=vmem, size = 0x9000, scoped, tag = 'internal scratch']
  #allocation2 [shape = 'f32[320,128]{1,0:T(8,128)}', space=vmem, size = 0x28000, scoped, tag = 'scratch operand']
  #allocation3 [shape = 'bf16[320,128]{1,0:T(8,128)(2,1)}', space=vmem, size = 0x14000, scoped, tag = 'scratch operand']
  %s0 = inlined_call_operand.vmem [shape: bf16[4,128,128], index: 0, kind: input, shape index: {}]
  %s1 = inlined_call_operand.vmem [shape: f32[4,2,128], index: 1, kind: input, shape index: {}]
  %s2 = inlined_call_operand.vmem [shape: f32[4,1], index: 2, kind: input, shape index: {}]
  %s3 = inlined_call_operand.vmem [shape: bf16[128,128], index: 3, kind: input, shape index: {}]
  %s4 = inlined_call_operand.vmem [shape: f32[1,128], index: 4, kind: input, shape index: {}]
  %s5 = inlined_call_operand.vmem [shape: bf16[3,128,128], index: 5, kind: input, shape index: {}]
  %s6 = inlined_call_operand.vmem [shape: bf16[3,128,128], index: 6, kind: input, shape index: {}]
  %s7 = inlined_call_operand.vmem [shape: f32[15,128], index: 7, kind: input, shape index: {}]
  %s8 = inlined_call_operand.hbm [shape: f32[2,2,64], index: 8, kind: output, shape index: {}]
  %s9 = sld [smem:[#allocation0]]
  $region69: #{dragonnfruit_forward.1} parent=0
    _
  %s11 = ssub.s32 1, %s9
  %s12 = scalar_select 0, %s11, %s9
  $region1: #{dragonnfruit_forward.1} parent=0
    #allocation4 [shape = 'u8[2048]{0}', space=smem, size = 0x800, scoped, tag = 'input window, operand 2, single buffered']
    #allocation5 [shape = 's32[2]{0}', space=sflag, size = 0x8, scoped, tag = 'scoped memory for dragonnfruit_forward.1']
    #allocation6 [shape = 's32[2]{0}', space=sflag, size = 0x8, scoped, tag = 'scoped memory for dragonnfruit_forward.1']
    #allocation7 [shape = 'u8[2048]{0}', space=vmem, size = 0x800, scoped, tag = 'output window, operand 0']
    %13 = vsyncpa [#allocation6], 0
    %14 = vsyncpa [#allocation5], 0
    %s15 = scalar_lea.sflag [#allocation5], 1
    %16 = vsyncpa %s15, 0
    loop: start=0, step=1, limit=4
    $region2: #{dragonnfruit_forward.1} parent=1 // loop_pre_header
      _
    $region3: #{dragonnfruit_forward.1} parent=1 // loop_header
      %s18 = sphi 0, %s22
      %p19 = scmp.ge.s32.totalorder %s18, 4
      %s28 = sphi 0, %s30
      %s31 = sphi 0, %s28
      %s32 = sphi 0, %s31
      %s48 = sphi 0, %s32
      %s54 = sphi 0, %s56
      %s57 = sphi 0, %s54
      %s58 = sphi 0, %s57
      %s74 = sphi 0, %s58
      %s78 = sphi 0, %s78
      %s80 = sphi 0, %s78
      %s81 = sphi 0, %s80
      %s95 = sphi 0, %s81
      %s99 = sphi 0, %s99
      %s101 = sphi 0, %s99
      %s102 = sphi 0, %s101
      %s116 = sphi 0, %s102
      %s120 = sphi 0, %s120
      %s122 = sphi 0, %s120
      %s123 = sphi 0, %s122
      %s137 = sphi 0, %s123
      %s141 = sphi 0, %s141
      %s143 = sphi 0, %s141
      %s144 = sphi 0, %s143
      %s158 = sphi 0, %s144
      %s162 = sphi 0, %s162
      %s164 = sphi 0, %s162
      %s165 = sphi 0, %s164
      %s179 = sphi 0, %s165
      %s183 = sphi 0, %s183
      %s185 = sphi 0, %s183
      %s186 = sphi 0, %s185
      %s200 = sphi 0, %s186
      %s206 = sphi 0, %s208
      %s209 = sphi 0, %s206
      %s210 = sphi 0, %s209
      %s226 = sphi 0, %s210
    $region4: #{dragonnfruit_forward.1} parent=1 // loop_header_branch
      %21 = sbr.rel (%p19) target = $region8
    $region5: #{dragonnfruit_forward.1} parent=1 // loop_body
      %s23 = ssub.s32 %s18, 1
      %s24 = ssub.s32 %s18, 2
      %s25 = sadd.s32 %s18, 1
      %s26 = ssub.s32 %s18, %s25
      %p27 = scmp.eq.s32.totalorder %s26, 0
      %s29 = sadd.s32 %s28, 1
      %s30 = scalar_select %p27, %s28, %s29
      %p33 = pneg %p27
      %p34 = scmp.eq.s32.totalorder %s18, 1
      %p35 = por %p33, %p34
      %p36 = scmp.ne.s32.totalorder %s28, %s31
      %p37 = scmp.eq.s32.totalorder %s18, 0
      %p38 = por %p36, %p37
      %p39 = scmp.ne.s32.totalorder %s28, %s31
      %p40 = scmp.eq.s32.totalorder %s23, 1
      %p41 = por %p39, %p40
      %p42 = scmp.ne.s32.totalorder %s31, %s32
      %p43 = scmp.eq.s32.totalorder %s23, 0
      %p44 = por %p42, %p43
      %p45 = scmp.ne.s32.totalorder %s31, %s32
      %p46 = scmp.eq.s32.totalorder %s24, 1
      %p47 = por %p45, %p46
      %p49 = scmp.ne.s32.totalorder %s32, %s48
      %p50 = scmp.eq.s32.totalorder %s24, 0
      %p51 = por %p49, %p50
      %s52 = ssub.s32 %s18, %s25
      %p53 = scmp.eq.s32.totalorder %s52, 0
      %s55 = sadd.s32 %s54, 1
      %s56 = scalar_select %p53, %s54, %s55
      %p59 = pneg %p53
      %p60 = scmp.eq.s32.totalorder %s18, 1
      %p61 = por %p59, %p60
      %p62 = scmp.ne.s32.totalorder %s54, %s57
      %p63 = scmp.eq.s32.totalorder %s18, 0
      %p64 = por %p62, %p63
      %p65 = scmp.ne.s32.totalorder %s54, %s57
      %p66 = scmp.eq.s32.totalorder %s23, 1
      %p67 = por %p65, %p66
      %p68 = scmp.ne.s32.totalorder %s57, %s58
      %p69 = scmp.eq.s32.totalorder %s23, 0
      %p70 = por %p68, %p69
      %p71 = scmp.ne.s32.totalorder %s57, %s58
      %p72 = scmp.eq.s32.totalorder %s24, 1
      %p73 = por %p71, %p72
      %p75 = scmp.ne.s32.totalorder %s58, %s74
      %p76 = scmp.eq.s32.totalorder %s24, 0
      %p77 = por %p75, %p76
      %s79 = sadd.s32 %s78, 1
      %p82 = scmp.eq.s32.totalorder %s18, 1
      %p83 = scmp.ne.s32.totalorder %s78, %s80
      %p84 = scmp.eq.s32.totalorder %s18, 0
      %p85 = por %p83, %p84
      %p86 = scmp.ne.s32.totalorder %s78, %s80
      %p87 = scmp.eq.s32.totalorder %s23, 1
      %p88 = por %p86, %p87
      %p89 = scmp.ne.s32.totalorder %s80, %s81
      %p90 = scmp.eq.s32.totalorder %s23, 0
      %p91 = por %p89, %p90
      %p92 = scmp.ne.s32.totalorder %s80, %s81
      %p93 = scmp.eq.s32.totalorder %s24, 1
      %p94 = por %p92, %p93
      %p96 = scmp.ne.s32.totalorder %s81, %s95
      %p97 = scmp.eq.s32.totalorder %s24, 0
      %p98 = por %p96, %p97
      %s100 = sadd.s32 %s99, 1
      %p103 = scmp.eq.s32.totalorder %s18, 1
      %p104 = scmp.ne.s32.totalorder %s99, %s101
      %p105 = scmp.eq.s32.totalorder %s18, 0
      %p106 = por %p104, %p105
      %p107 = scmp.ne.s32.totalorder %s99, %s101
      %p108 = scmp.eq.s32.totalorder %s23, 1
      %p109 = por %p107, %p108
      %p110 = scmp.ne.s32.totalorder %s101, %s102
      %p111 = scmp.eq.s32.totalorder %s23, 0
      %p112 = por %p110, %p111
      %p113 = scmp.ne.s32.totalorder %s101, %s102
      %p114 = scmp.eq.s32.totalorder %s24, 1
      %p115 = por %p113, %p114
      %p117 = scmp.ne.s32.totalorder %s102, %s116
      %p118 = scmp.eq.s32.totalorder %s24, 0
      %p119 = por %p117, %p118
      %s121 = sadd.s32 %s120, 1
      %p124 = scmp.eq.s32.totalorder %s18, 1
      %p125 = scmp.ne.s32.totalorder %s120, %s122
      %p126 = scmp.eq.s32.totalorder %s18, 0
      %p127 = por %p125, %p126
      %p128 = scmp.ne.s32.totalorder %s120, %s122
      %p129 = scmp.eq.s32.totalorder %s23, 1
      %p130 = por %p128, %p129
      %p131 = scmp.ne.s32.totalorder %s122, %s123
      %p132 = scmp.eq.s32.totalorder %s23, 0
      %p133 = por %p131, %p132
      %p134 = scmp.ne.s32.totalorder %s122, %s123
      %p135 = scmp.eq.s32.totalorder %s24, 1
      %p136 = por %p134, %p135
      %p138 = scmp.ne.s32.totalorder %s123, %s137
      %p139 = scmp.eq.s32.totalorder %s24, 0
      %p140 = por %p138, %p139
      %s142 = sadd.s32 %s141, 1
      %p145 = scmp.eq.s32.totalorder %s18, 1
      %p146 = scmp.ne.s32.totalorder %s141, %s143
      %p147 = scmp.eq.s32.totalorder %s18, 0
      %p148 = por %p146, %p147
      %p149 = scmp.ne.s32.totalorder %s141, %s143
      %p150 = scmp.eq.s32.totalorder %s23, 1
      %p151 = por %p149, %p150
      %p152 = scmp.ne.s32.totalorder %s143, %s144
      %p153 = scmp.eq.s32.totalorder %s23, 0
      %p154 = por %p152, %p153
      %p155 = scmp.ne.s32.totalorder %s143, %s144
      %p156 = scmp.eq.s32.totalorder %s24, 1
      %p157 = por %p155, %p156
      %p159 = scmp.ne.s32.totalorder %s144, %s158
      %p160 = scmp.eq.s32.totalorder %s24, 0
      %p161 = por %p159, %p160
      %s163 = sadd.s32 %s162, 1
      %p166 = scmp.eq.s32.totalorder %s18, 1
      %p167 = scmp.ne.s32.totalorder %s162, %s164
      %p168 = scmp.eq.s32.totalorder %s18, 0
      %p169 = por %p167, %p168
      %p170 = scmp.ne.s32.totalorder %s162, %s164
      %p171 = scmp.eq.s32.totalorder %s23, 1
      %p172 = por %p170, %p171
      %p173 = scmp.ne.s32.totalorder %s164, %s165
      %p174 = scmp.eq.s32.totalorder %s23, 0
      %p175 = por %p173, %p174
      %p176 = scmp.ne.s32.totalorder %s164, %s165
      %p177 = scmp.eq.s32.totalorder %s24, 1
      %p178 = por %p176, %p177
      %p180 = scmp.ne.s32.totalorder %s165, %s179
      %p181 = scmp.eq.s32.totalorder %s24, 0
      %p182 = por %p180, %p181
      %s184 = sadd.s32 %s183, 1
      %p187 = scmp.eq.s32.totalorder %s18, 1
      %p188 = scmp.ne.s32.totalorder %s183, %s185
      %p189 = scmp.eq.s32.totalorder %s18, 0
      %p190 = por %p188, %p189
      %p191 = scmp.ne.s32.totalorder %s183, %s185
      %p192 = scmp.eq.s32.totalorder %s23, 1
      %p193 = por %p191, %p192
      %p194 = scmp.ne.s32.totalorder %s185, %s186
      %p195 = scmp.eq.s32.totalorder %s23, 0
      %p196 = por %p194, %p195
      %p197 = scmp.ne.s32.totalorder %s185, %s186
      %p198 = scmp.eq.s32.totalorder %s24, 1
      %p199 = por %p197, %p198
      %p201 = scmp.ne.s32.totalorder %s186, %s200
      %p202 = scmp.eq.s32.totalorder %s24, 0
      %p203 = por %p201, %p202
      %s204 = ssub.s32 %s18, %s25
      %p205 = scmp.eq.s32.totalorder %s204, 0
      %s207 = sadd.s32 %s206, 1
      %s208 = scalar_select %p205, %s206, %s207
      %p211 = pneg %p205
      %p212 = scmp.eq.s32.totalorder %s18, 1
      %p213 = por %p211, %p212
      %p214 = scmp.ne.s32.totalorder %s206, %s209
      %p215 = scmp.eq.s32.totalorder %s18, 0
      %p216 = por %p214, %p215
      %p217 = scmp.ne.s32.totalorder %s206, %s209
      %p218 = scmp.eq.s32.totalorder %s23, 1
      %p219 = por %p217, %p218
      %p220 = scmp.ne.s32.totalorder %s209, %s210
      %p221 = scmp.eq.s32.totalorder %s23, 0
      %p222 = por %p220, %p221
      %p223 = scmp.ne.s32.totalorder %s209, %s210
      %p224 = scmp.eq.s32.totalorder %s24, 1
      %p225 = por %p223, %p224
      %p227 = scmp.ne.s32.totalorder %s210, %s226
      %p228 = scmp.eq.s32.totalorder %s24, 0
      %p229 = por %p227, %p228
      %p230 = scmp.le.s32.totalorder 1, %s18
      %p231 = scmp.lt.s32.totalorder %s18, 3
      %p232 = pnand %p230, %p231
      %p233 = pneg %p232
      // Predicated region
      $region9: #{dragonnfruit_forward.1} parent=5 // pred_check
        _
      $region10: #{dragonnfruit_forward.1} parent=5 // pred_check_branch
        %235 = sbr.rel (%p232) target = $region12
      $region11: #{dragonnfruit_forward.1} parent=5 // pred_region
        %s236 = ssub.s32 %s18, 1
        // Predicated region
        $region13: #{dragonnfruit_forward.1} parent=11 // pred_check
          %p237 = pneg %p91
        $region14: #{dragonnfruit_forward.1} parent=11 // pred_check_branch
          %239 = sbr.rel (%p237) target = $region16
        $region15: #{dragonnfruit_forward.1} parent=11 // pred_region
          %241 = vsyncadd [#allocation6], 0
          %s243 = sshll.u32 %s2, 4
          %s244 = int_to_ptr.vmem [resolvable:$true] %s243
          %246 = dma.vmem_to_smem %s244, 64, [#allocation4], [#allocation6]
        $region16: #{dragonnfruit_forward.1} parent=11 // pred_fallthru
          _
        // Predicated region
        $region17: #{dragonnfruit_forward.1} parent=11 // pred_check
          %p247 = pneg %p112
        $region18: #{dragonnfruit_forward.1} parent=11 // pred_check_branch
          %249 = sbr.rel (%p247) target = $region20
        $region19: #{dragonnfruit_forward.1} parent=11 // pred_region
          _
        $region20: #{dragonnfruit_forward.1} parent=11 // pred_fallthru
          _
        // Predicated region
        $region21: #{dragonnfruit_forward.1} parent=11 // pred_check
          %p250 = pneg %p133
        $region22: #{dragonnfruit_forward.1} parent=11 // pred_check_branch
          %252 = sbr.rel (%p250) target = $region24
        $region23: #{dragonnfruit_forward.1} parent=11 // pred_region
          _
        $region24: #{dragonnfruit_forward.1} parent=11 // pred_fallthru
          _
        // Predicated region
        $region25: #{dragonnfruit_forward.1} parent=11 // pred_check
          %p253 = pneg %p154
        $region26: #{dragonnfruit_forward.1} parent=11 // pred_check_branch
          %255 = sbr.rel (%p253) target = $region28
        $region27: #{dragonnfruit_forward.1} parent=11 // pred_region
          _
        $region28: #{dragonnfruit_forward.1} parent=11 // pred_fallthru
          _
        // Predicated region
        $region29: #{dragonnfruit_forward.1} parent=11 // pred_check
          %p256 = pneg %p175
        $region30: #{dragonnfruit_forward.1} parent=11 // pred_check_branch
          %258 = sbr.rel (%p256) target = $region32
        $region31: #{dragonnfruit_forward.1} parent=11 // pred_region
          _
        $region32: #{dragonnfruit_forward.1} parent=11 // pred_fallthru
          _
        // Predicated region
        $region33: #{dragonnfruit_forward.1} parent=11 // pred_check
          %p259 = pneg %p196
        $region34: #{dragonnfruit_forward.1} parent=11 // pred_check_branch
          %261 = sbr.rel (%p259) target = $region36
        $region35: #{dragonnfruit_forward.1} parent=11 // pred_region
          _
        $region36: #{dragonnfruit_forward.1} parent=11 // pred_fallthru
          _
      $region12: #{dragonnfruit_forward.1} parent=5 // pred_fallthru
        _
      %p262 = scmp.lt.s32.totalorder %s18, 2
      // Predicated region
      $region37: #{dragonnfruit_forward.1} parent=5 // pred_check
        %p263 = pneg %p262
      $region38: #{dragonnfruit_forward.1} parent=5 // pred_check_branch
        %265 = sbr.rel (%p263) target = $region40
      $region39: #{dragonnfruit_forward.1} parent=5 // pred_region
        // Predicated region
        $region41: #{dragonnfruit_forward.1} parent=39 // pred_check
          %p266 = pneg %p38
        $region42: #{dragonnfruit_forward.1} parent=39 // pred_check_branch
          %268 = sbr.rel (%p266) target = $region44
        $region43: #{dragonnfruit_forward.1} parent=39 // pred_region
          %s269 = smul.u32 2, %s18
          %p270 = scmp.lt.s32.totalorder %s269, 3
          %s271 = scalar_select %p270, %s269, 3
          %s272 = smul.addr %s271, 16
          %s273 = smul.addr %s272, 4
          %s274 = scalar_lea.vmem %s0, %s273
          %s275 = smul.u32 2, %s18
        $region44: #{dragonnfruit_forward.1} parent=39 // pred_fallthru
          _
        // Predicated region
        $region45: #{dragonnfruit_forward.1} parent=39 // pred_check
          %p276 = pneg %p64
        $region46: #{dragonnfruit_forward.1} parent=39 // pred_check_branch
          %278 = sbr.rel (%p276) target = $region48
        $region47: #{dragonnfruit_forward.1} parent=39 // pred_region
          %s279 = smul.u32 2, %s18
          %p280 = scmp.lt.s32.totalorder %s279, 3
          %s281 = scalar_select %p280, %s279, 3
          %s282 = smul.addr %s281, 2
          %s283 = scalar_lea.vmem %s1, %s282
          %s284 = smul.u32 2, %s18
        $region48: #{dragonnfruit_forward.1} parent=39 // pred_fallthru
          _
      $region40: #{dragonnfruit_forward.1} parent=5 // pred_fallthru
        _
      %p285 = scmp.le.s32.totalorder 1, %s18
      %p286 = scmp.lt.s32.totalorder %s18, 3
      %p287 = pnand %p285, %p286
      %p288 = pneg %p287
      // Predicated region
      $region49: #{dragonnfruit_forward.1} parent=5 // pred_check
        _
      $region50: #{dragonnfruit_forward.1} parent=5 // pred_check_branch
        %290 = sbr.rel (%p287) target = $region52
      $region51: #{dragonnfruit_forward.1} parent=5 // pred_region
        %s291 = ssub.s32 %s18, 1
        // Predicated region
        $region53: #{dragonnfruit_forward.1} parent=51 // pred_check
          %p292 = pneg %p91
        $region54: #{dragonnfruit_forward.1} parent=51 // pred_check_branch
          %294 = sbr.rel (%p292) target = $region56
        $region55: #{dragonnfruit_forward.1} parent=51 // pred_region
          %296 = dma.done [#allocation6], 64
        $region56: #{dragonnfruit_forward.1} parent=51 // pred_fallthru
          _
        %297 = sfence
        %s298 = smul.u32 2, %s23
        %p299 = scmp.lt.s32.totalorder %s298, 3
        %s300 = scalar_select %p299, %s298, 3
        %s301 = smul.addr %s300, 16
        %s302 = smul.addr %s301, 4
        %s303 = scalar_lea.vmem %s0, %s302
        %p304 = pneg %p44
        %p305 = pneg %p41
        %s306 = smul.u32 2, %s23
        %p307 = scmp.lt.s32.totalorder %s306, 3
        %s308 = scalar_select %p307, %s306, 3
        %s309 = smul.addr %s308, 2
        %s310 = scalar_lea.vmem %s1, %s309
        %p311 = pneg %p70
        %p312 = pneg %p67
        %p313 = pneg %p91
        %p314 = pneg %p88
        %p315 = pneg %p112
        %p316 = pneg %p109
        %p317 = pneg %p133
        %p318 = pneg %p130
        %p319 = pneg %p154
        %p320 = pneg %p151
        %p321 = pneg %p175
        %p322 = pneg %p172
        %p323 = pneg %p196
        %p324 = pneg %p193
        %p325 = pneg %p222
        %p326 = pneg %p219
        %s327 = sand.u32 %s209, 1
        %s328 = scalar_lea.sflag [#allocation5], %s327
        %s329 = sand.u32 %s209, 1
        %s330 = smul.addr %s329, 2
        %s331 = scalar_lea.vmem [#allocation7], %s330
        %s332 = smul.u32 2, %s23
        %p333 = scmp.lt.s32.totalorder %s332, 3
        %s334 = scalar_select %p333, %s332, 3
        %s335 = smul.addr %s334, 16
        %s336 = smul.addr %s335, 4
        %s337 = scalar_lea.vmem %s0, %s336
        %s338 = smul.u32 2, %s23
        %s339 = smul.u32 2, %s23
        %p340 = scmp.lt.s32.totalorder %s339, 3
        %s341 = scalar_select %p340, %s339, 3
        %s342 = smul.addr %s341, 2
        %s343 = scalar_lea.vmem %s1, %s342
        %s344 = smul.u32 2, %s23
        %346 = vst [vmem:[#allocation3] sm:$0xf] 0
        %347 = vst [vmem:[#allocation3 + $0x4] sm:$0xf] 0
        %348 = vst [vmem:[#allocation3 + $0x48] sm:$0xf] 0
        %349 = vst [vmem:[#allocation3 + $0x4c] sm:$0xf] 0
        %350 = vst [vmem:[#allocation3 + $0x50] sm:$0xf] 0
        %351 = vst [vmem:[#allocation3 + $0x54] sm:$0xf] 0
        %352 = vst [vmem:[#allocation3 + $0x98] sm:$0xf] 0
        %353 = vst [vmem:[#allocation3 + $0x9c] sm:$0xf] 0
        %v354 = vld [vmem:[%s343] sm:$0x3]
        %v355 = vld [vmem:[%s343 + $0x2] sm:$0x3]
        %v356 = vld [vmem:[%s337] sm:$0xf]
        %v357 = vld [vmem:[%s337 + $0x4] sm:$0xf]
        %v358 = vld [vmem:[%s337 + $0x8] sm:$0xf]
        %v359 = vld [vmem:[%s337 + $0xc] sm:$0xf]
        %v360 = vld [vmem:[%s337 + $0x10] sm:$0xf]
        %v361 = vld [vmem:[%s337 + $0x14] sm:$0xf]
        %v362 = vld [vmem:[%s337 + $0x18] sm:$0xf]
        %v363 = vld [vmem:[%s337 + $0x1c] sm:$0xf]
        %v364 = vld [vmem:[%s337 + $0x20] sm:$0xf]
        %v365 = vld [vmem:[%s337 + $0x24] sm:$0xf]
        %v366 = vld [vmem:[%s337 + $0x28] sm:$0xf]
        %v367 = vld [vmem:[%s337 + $0x2c] sm:$0xf]
        %v368 = vld [vmem:[%s337 + $0x30] sm:$0xf]
        %v369 = vld [vmem:[%s337 + $0x34] sm:$0xf]
        %v370 = vld [vmem:[%s337 + $0x38] sm:$0xf]
        %v371 = vld [vmem:[%s337 + $0x3c] sm:$0xf]
        %v372 = vld [vmem:[%s337 + $0x40] sm:$0xf]
        %v373 = vld [vmem:[%s337 + $0x44] sm:$0xf]
        %v374 = vld [vmem:[%s337 + $0x48] sm:$0xf]
        %v375 = vld [vmem:[%s337 + $0x4c] sm:$0xf]
        %v376 = vld [vmem:[%s337 + $0x50] sm:$0xf]
        %v377 = vld [vmem:[%s337 + $0x54] sm:$0xf]
        %v378 = vld [vmem:[%s337 + $0x58] sm:$0xf]
        %v379 = vld [vmem:[%s337 + $0x5c] sm:$0xf]
        %v380 = vld [vmem:[%s337 + $0x60] sm:$0xf]
        %v381 = vld [vmem:[%s337 + $0x64] sm:$0xf]
        %v382 = vld [vmem:[%s337 + $0x68] sm:$0xf]
        %v383 = vld [vmem:[%s337 + $0x6c] sm:$0xf]
        %v384 = vld [vmem:[%s337 + $0x70] sm:$0xf]
        %v385 = vld [vmem:[%s337 + $0x74] sm:$0xf]
        %v386 = vld [vmem:[%s337 + $0x78] sm:$0xf]
        %v387 = vld [vmem:[%s337 + $0x7c] sm:$0xf]
        %v388 = vld [vmem:[%s3] sm:$0xf]
        %v389 = vld [vmem:[%s3 + $0x4] sm:$0xf]
        %v390 = vld [vmem:[%s3 + $0x8] sm:$0xf]
        %v391 = vld [vmem:[%s3 + $0xc] sm:$0xf]
        %v392 = vld [vmem:[%s3 + $0x10] sm:$0xf]
        %v393 = vld [vmem:[%s3 + $0x14] sm:$0xf]
        %v394 = vld [vmem:[%s3 + $0x18] sm:$0xf]
        %v395 = vld [vmem:[%s3 + $0x1c] sm:$0xf]
        %v396 = vld [vmem:[%s3 + $0x20] sm:$0xf]
        %v397 = vld [vmem:[%s3 + $0x24] sm:$0xf]
        %v398 = vld [vmem:[%s3 + $0x28] sm:$0xf]
        %v399 = vld [vmem:[%s3 + $0x2c] sm:$0xf]
        %v400 = vld [vmem:[%s3 + $0x30] sm:$0xf]
        %v401 = vld [vmem:[%s3 + $0x34] sm:$0xf]
        %v402 = vld [vmem:[%s3 + $0x38] sm:$0xf]
        %v403 = vld [vmem:[%s3 + $0x3c] sm:$0xf]
        %v404 = vld [vmem:[%s4] sm:$0x1]
        %v406 = vperm.slane %v404, 0
        %v440 = vunpack.c.l.b16 %v356
        %v441 = vunpack.c.l.b16 %v357
        %v442 = vunpack.c.l.b16 %v358
        %v443 = vunpack.c.l.b16 %v359
        %v444 = vunpack.c.l.b16 %v360
        %v445 = vunpack.c.l.b16 %v361
        %v446 = vunpack.c.l.b16 %v362
        %v447 = vunpack.c.l.b16 %v363
        %v448 = vunpack.c.l.b16 %v364
        %v449 = vunpack.c.l.b16 %v365
        %v450 = vunpack.c.l.b16 %v366
        %v451 = vunpack.c.l.b16 %v367
        %v452 = vunpack.c.l.b16 %v368
        %v453 = vunpack.c.l.b16 %v369
        %v454 = vunpack.c.l.b16 %v370
        %v455 = vunpack.c.l.b16 %v371
        %v456 = vunpack.c.l.b16 %v372
        %v457 = vunpack.c.l.b16 %v373
        %v458 = vunpack.c.l.b16 %v374
        %v459 = vunpack.c.l.b16 %v375
        %v460 = vunpack.c.l.b16 %v376
        %v461 = vunpack.c.l.b16 %v377
        %v462 = vunpack.c.l.b16 %v378
        %v463 = vunpack.c.l.b16 %v379
        %v464 = vunpack.c.l.b16 %v380
        %v465 = vunpack.c.l.b16 %v381
        %v466 = vunpack.c.l.b16 %v382
        %v467 = vunpack.c.l.b16 %v383
        %v468 = vunpack.c.l.b16 %v384
        %v469 = vunpack.c.l.b16 %v385
        %v470 = vunpack.c.l.b16 %v386
        %v471 = vunpack.c.l.b16 %v387
        %v472 = vpack.c.b16 %v441, %v440
        %v473 = vpack.c.b16 %v443, %v442
        %v474 = vpack.c.b16 %v445, %v444
        %v475 = vpack.c.b16 %v447, %v446
        %v476 = vpack.c.b16 %v449, %v448
        %v477 = vpack.c.b16 %v451, %v450
        %v478 = vpack.c.b16 %v453, %v452
        %v479 = vpack.c.b16 %v455, %v454
        %v480 = vpack.c.b16 %v457, %v456
        %v481 = vpack.c.b16 %v459, %v458
        %v482 = vpack.c.b16 %v461, %v460
        %v483 = vpack.c.b16 %v463, %v462
        %v484 = vpack.c.b16 %v465, %v464
        %v485 = vpack.c.b16 %v467, %v466
        %v486 = vpack.c.b16 %v469, %v468
        %v487 = vpack.c.b16 %v471, %v470
        %v520 = vunpack.c.l.b16 %v388
        %v521 = vunpack.c.l.b16 %v389
        %v522 = vunpack.c.l.b16 %v390
        %v523 = vunpack.c.l.b16 %v391
        %v524 = vunpack.c.l.b16 %v392
        %v525 = vunpack.c.l.b16 %v393
        %v526 = vunpack.c.l.b16 %v394
        %v527 = vunpack.c.l.b16 %v395
        %v528 = vunpack.c.l.b16 %v396
        %v529 = vunpack.c.l.b16 %v397
        %v530 = vunpack.c.l.b16 %v398
        %v531 = vunpack.c.l.b16 %v399
        %v532 = vunpack.c.l.b16 %v400
        %v533 = vunpack.c.l.b16 %v401
        %v534 = vunpack.c.l.b16 %v402
        %v535 = vunpack.c.l.b16 %v403
        %v536 = vpack.c.b16 %v521, %v520
        %v537 = vpack.c.b16 %v523, %v522
        %v538 = vpack.c.b16 %v525, %v524
        %v539 = vpack.c.b16 %v527, %v526
        %v540 = vpack.c.b16 %v529, %v528
        %v541 = vpack.c.b16 %v531, %v530
        %v542 = vpack.c.b16 %v533, %v532
        %v543 = vpack.c.b16 %v535, %v534
        %552 = vmatpush.bf16.msra.mxu0 %v543
        %553 = vmatpush.bf16.msra.mxu0 %v542
        %554 = vmatpush.bf16.msra.mxu0 %v541
        %555 = vmatpush.bf16.msra.mxu0 %v540
        %556 = vmatpush.bf16.msra.mxu0 %v539
        %557 = vmatpush.bf16.msra.mxu0 %v538
        %558 = vmatpush.bf16.msra.mxu0 %v537
        %559 = vmatpush.bf16.msra.mxu0 %v536
        %560 = vmatmul.bf16.gmra.mxu0 %v472
        %v561 = vpop.f32.mrf.mxu0
        %v562 = vadd.f32 %v406, %v561
        %v563 = vpop.f32.mrf.mxu0
        %v564 = vadd.f32 %v406, %v563
        %565 = vmatmul.bf16.gmra.mxu0 %v473
        %v566 = vpop.f32.mrf.mxu0
        %v567 = vadd.f32 %v406, %v566
        %v568 = vpop.f32.mrf.mxu0
        %v569 = vadd.f32 %v406, %v568
        %570 = vmatmul.bf16.gmra.mxu0 %v474
        %v571 = vpop.f32.mrf.mxu0
        %v572 = vadd.f32 %v406, %v571
        %v573 = vpop.f32.mrf.mxu0
        %v574 = vadd.f32 %v406, %v573
        %575 = vmatmul.bf16.gmra.mxu0 %v475
        %v576 = vpop.f32.mrf.mxu0
        %v577 = vadd.f32 %v406, %v576
        %v578 = vpop.f32.mrf.mxu0
        %v579 = vadd.f32 %v406, %v578
        %580 = vmatmul.bf16.gmra.mxu0 %v476
        %v581 = vpop.f32.mrf.mxu0
        %v582 = vadd.f32 %v406, %v581
        %v583 = vpop.f32.mrf.mxu0
        %v584 = vadd.f32 %v406, %v583
        %585 = vmatmul.bf16.gmra.mxu0 %v477
        %v586 = vpop.f32.mrf.mxu0
        %v587 = vadd.f32 %v406, %v586
        %v588 = vpop.f32.mrf.mxu0
        %v589 = vadd.f32 %v406, %v588
        %590 = vmatmul.bf16.gmra.mxu0 %v478
        %v591 = vpop.f32.mrf.mxu0
        %v592 = vadd.f32 %v406, %v591
        %v593 = vpop.f32.mrf.mxu0
        %v594 = vadd.f32 %v406, %v593
        %595 = vmatmul.bf16.gmra.mxu0 %v479
        %v596 = vpop.f32.mrf.mxu0
        %v597 = vadd.f32 %v406, %v596
        %v598 = vpop.f32.mrf.mxu0
        %v599 = vadd.f32 %v406, %v598
        %600 = vmatmul.bf16.gmra.mxu0 %v480
        %v601 = vpop.f32.mrf.mxu0
        %v602 = vadd.f32 %v406, %v601
        %v603 = vpop.f32.mrf.mxu0
        %v604 = vadd.f32 %v406, %v603
        %605 = vmatmul.bf16.gmra.mxu0 %v481
        %v606 = vpop.f32.mrf.mxu0
        %v607 = vadd.f32 %v406, %v606
        %v608 = vpop.f32.mrf.mxu0
        %v609 = vadd.f32 %v406, %v608
        %610 = vmatmul.bf16.gmra.mxu0 %v482
        %v611 = vpop.f32.mrf.mxu0
        %v612 = vadd.f32 %v406, %v611
        %v613 = vpop.f32.mrf.mxu0
        %v614 = vadd.f32 %v406, %v613
        %615 = vmatmul.bf16.gmra.mxu0 %v483
        %v616 = vpop.f32.mrf.mxu0
        %v617 = vadd.f32 %v406, %v616
        %v618 = vpop.f32.mrf.mxu0
        %v619 = vadd.f32 %v406, %v618
        %620 = vmatmul.bf16.gmra.mxu0 %v484
        %v621 = vpop.f32.mrf.mxu0
        %v622 = vadd.f32 %v406, %v621
        %v623 = vpop.f32.mrf.mxu0
        %v624 = vadd.f32 %v406, %v623
        %625 = vmatmul.bf16.gmra.mxu0 %v485
        %v626 = vpop.f32.mrf.mxu0
        %v627 = vadd.f32 %v406, %v626
        %v628 = vpop.f32.mrf.mxu0
        %v629 = vadd.f32 %v406, %v628
        %630 = vmatmul.bf16.gmra.mxu0 %v486
        %v631 = vpop.f32.mrf.mxu0
        %v632 = vadd.f32 %v406, %v631
        %v633 = vpop.f32.mrf.mxu0
        %v634 = vadd.f32 %v406, %v633
        %635 = vmatmul.bf16.gmra.mxu0 %v487
        %v636 = vpop.f32.mrf.mxu0
        %v637 = vadd.f32 %v406, %v636
        %v638 = vpop.f32.mrf.mxu0
        %v639 = vadd.f32 %v406, %v638
        %640 = vdwg.mxu0
        %v641 = vmax.f32 %v562, 0.0
        %v642 = vmax.f32 %v564, 0.0
        %v643 = vmax.f32 %v567, 0.0
        %v644 = vmax.f32 %v569, 0.0
        %v645 = vmax.f32 %v572, 0.0
        %v646 = vmax.f32 %v574, 0.0
        %v647 = vmax.f32 %v577, 0.0
        %v648 = vmax.f32 %v579, 0.0
        %v649 = vmax.f32 %v582, 0.0
        %v650 = vmax.f32 %v584, 0.0
        %v651 = vmax.f32 %v587, 0.0
        %v652 = vmax.f32 %v589, 0.0
        %v653 = vmax.f32 %v592, 0.0
        %v654 = vmax.f32 %v594, 0.0
        %v655 = vmax.f32 %v597, 0.0
        %v656 = vmax.f32 %v599, 0.0
        %v657 = vmax.f32 %v602, 0.0
        %v658 = vmax.f32 %v604, 0.0
        %v659 = vmax.f32 %v607, 0.0
        %v660 = vmax.f32 %v609, 0.0
        %v661 = vmax.f32 %v612, 0.0
        %v662 = vmax.f32 %v614, 0.0
        %v663 = vmax.f32 %v617, 0.0
        %v664 = vmax.f32 %v619, 0.0
        %v665 = vmax.f32 %v622, 0.0
        %v666 = vmax.f32 %v624, 0.0
        %v667 = vmax.f32 %v627, 0.0
        %v668 = vmax.f32 %v629, 0.0
        %v669 = vmax.f32 %v632, 0.0
        %v670 = vmax.f32 %v634, 0.0
        %v671 = vmax.f32 %v637, 0.0
        %v672 = vmax.f32 %v639, 0.0
        %673 = vst [vmem:[#allocation2 + $0x10] sm:$0xff] %v641
        %674 = vst [vmem:[#allocation2 + $0x18] sm:$0xff] %v642
        %675 = vst [vmem:[#allocation2 + $0x20] sm:$0xff] %v643
        %676 = vst [vmem:[#allocation2 + $0x28] sm:$0xff] %v644
        %677 = vst [vmem:[#allocation2 + $0x30] sm:$0xff] %v645
        %678 = vst [vmem:[#allocation2 + $0x38] sm:$0xff] %v646
        %679 = vst [vmem:[#allocation2 + $0x40] sm:$0xff] %v647
        %680 = vst [vmem:[#allocation2 + $0x48] sm:$0xff] %v648
        %681 = vst [vmem:[#allocation2 + $0x50] sm:$0xff] %v649
        %682 = vst [vmem:[#allocation2 + $0x58] sm:$0xff] %v650
        %683 = vst [vmem:[#allocation2 + $0x60] sm:$0xff] %v651
        %684 = vst [vmem:[#allocation2 + $0x68] sm:$0xff] %v652
        %685 = vst [vmem:[#allocation2 + $0x70] sm:$0xff] %v653
        %686 = vst [vmem:[#allocation2 + $0x78] sm:$0xff] %v654
        %687 = vst [vmem:[#allocation2 + $0x80] sm:$0xff] %v655
        %688 = vst [vmem:[#allocation2 + $0x88] sm:$0xff] %v656
        %v689 = vpack.c.bf16 %v641, %v641
        %v690 = vpack.c.bf16 %v642, %v642
        %v691 = vpack.c.bf16 %v643, %v643
        %v692 = vpack.c.bf16 %v644, %v644
        %v693 = vpack.c.bf16 %v645, %v645
        %v694 = vpack.c.bf16 %v646, %v646
        %v695 = vpack.c.bf16 %v647, %v647
        %v696 = vpack.c.bf16 %v648, %v648
        %v697 = vpack.c.bf16 %v649, %v649
        %v698 = vpack.c.bf16 %v650, %v650
        %v699 = vpack.c.bf16 %v651, %v651
        %v700 = vpack.c.bf16 %v652, %v652
        %v701 = vpack.c.bf16 %v653, %v653
        %v702 = vpack.c.bf16 %v654, %v654
        %v703 = vpack.c.bf16 %v655, %v655
        %v704 = vpack.c.bf16 %v656, %v656
        %705 = vst [vmem:[#allocation3 + $0x8] sm:$0xf] %v689
        %706 = vst [vmem:[#allocation3 + $0xc] sm:$0xf] %v690
        %707 = vst [vmem:[#allocation3 + $0x10] sm:$0xf] %v691
        %708 = vst [vmem:[#allocation3 + $0x14] sm:$0xf] %v692
        %709 = vst [vmem:[#allocation3 + $0x18] sm:$0xf] %v693
        %710 = vst [vmem:[#allocation3 + $0x1c] sm:$0xf] %v694
        %711 = vst [vmem:[#allocation3 + $0x20] sm:$0xf] %v695
        %712 = vst [vmem:[#allocation3 + $0x24] sm:$0xf] %v696
        %713 = vst [vmem:[#allocation3 + $0x28] sm:$0xf] %v697
        %714 = vst [vmem:[#allocation3 + $0x2c] sm:$0xf] %v698
        %715 = vst [vmem:[#allocation3 + $0x30] sm:$0xf] %v699
        %716 = vst [vmem:[#allocation3 + $0x34] sm:$0xf] %v700
        %717 = vst [vmem:[#allocation3 + $0x38] sm:$0xf] %v701
        %718 = vst [vmem:[#allocation3 + $0x3c] sm:$0xf] %v702
        %719 = vst [vmem:[#allocation3 + $0x40] sm:$0xf] %v703
        %720 = vst [vmem:[#allocation3 + $0x44] sm:$0xf] %v704
        %721 = vst [vmem:[#allocation2 + $0xb0] sm:$0xff] %v657
        %722 = vst [vmem:[#allocation2 + $0xb8] sm:$0xff] %v658
        %723 = vst [vmem:[#allocation2 + $0xc0] sm:$0xff] %v659
        %724 = vst [vmem:[#allocation2 + $0xc8] sm:$0xff] %v660
        %725 = vst [vmem:[#allocation2 + $0xd0] sm:$0xff] %v661
        %726 = vst [vmem:[#allocation2 + $0xd8] sm:$0xff] %v662
        %727 = vst [vmem:[#allocation2 + $0xe0] sm:$0xff] %v663
        %728 = vst [vmem:[#allocation2 + $0xe8] sm:$0xff] %v664
        %729 = vst [vmem:[#allocation2 + $0xf0] sm:$0xff] %v665
        %730 = vst [vmem:[#allocation2 + $0xf8] sm:$0xff] %v666
        %731 = vst [vmem:[#allocation2 + $0x100] sm:$0xff] %v667
        %732 = vst [vmem:[#allocation2 + $0x108] sm:$0xff] %v668
        %733 = vst [vmem:[#allocation2 + $0x110] sm:$0xff] %v669
        %734 = vst [vmem:[#allocation2 + $0x118] sm:$0xff] %v670
        %735 = vst [vmem:[#allocation2 + $0x120] sm:$0xff] %v671
        %736 = vst [vmem:[#allocation2 + $0x128] sm:$0xff] %v672
        %v737 = vpack.c.bf16 %v657, %v657
        %v738 = vpack.c.bf16 %v658, %v658
        %v739 = vpack.c.bf16 %v659, %v659
        %v740 = vpack.c.bf16 %v660, %v660
        %v741 = vpack.c.bf16 %v661, %v661
        %v742 = vpack.c.bf16 %v662, %v662
        %v743 = vpack.c.bf16 %v663, %v663
        %v744 = vpack.c.bf16 %v664, %v664
        %v745 = vpack.c.bf16 %v665, %v665
        %v746 = vpack.c.bf16 %v666, %v666
        %v747 = vpack.c.bf16 %v667, %v667
        %v748 = vpack.c.bf16 %v668, %v668
        %v749 = vpack.c.bf16 %v669, %v669
        %v750 = vpack.c.bf16 %v670, %v670
        %v751 = vpack.c.bf16 %v671, %v671
        %v752 = vpack.c.bf16 %v672, %v672
        %753 = vst [vmem:[#allocation3 + $0x58] sm:$0xf] %v737
        %754 = vst [vmem:[#allocation3 + $0x5c] sm:$0xf] %v738
        %755 = vst [vmem:[#allocation3 + $0x60] sm:$0xf] %v739
        %756 = vst [vmem:[#allocation3 + $0x64] sm:$0xf] %v740
        %757 = vst [vmem:[#allocation3 + $0x68] sm:$0xf] %v741
        %758 = vst [vmem:[#allocation3 + $0x6c] sm:$0xf] %v742
        %759 = vst [vmem:[#allocation3 + $0x70] sm:$0xf] %v743
        %760 = vst [vmem:[#allocation3 + $0x74] sm:$0xf] %v744
        %761 = vst [vmem:[#allocation3 + $0x78] sm:$0xf] %v745
        %762 = vst [vmem:[#allocation3 + $0x7c] sm:$0xf] %v746
        %763 = vst [vmem:[#allocation3 + $0x80] sm:$0xf] %v747
        %764 = vst [vmem:[#allocation3 + $0x84] sm:$0xf] %v748
        %765 = vst [vmem:[#allocation3 + $0x88] sm:$0xf] %v749
        %766 = vst [vmem:[#allocation3 + $0x8c] sm:$0xf] %v750
        %767 = vst [vmem:[#allocation3 + $0x90] sm:$0xf] %v751
        %768 = vst [vmem:[#allocation3 + $0x94] sm:$0xf] %v752
        %v769 = vld [vmem:[#allocation3 + $0x4] sm:$0x8]
        %v770 = vld [vmem:[#allocation3 + $0x8] sm:$0xf]
        %v771 = vld [vmem:[#allocation3 + $0xc] sm:$0xf]
        %v772 = vld [vmem:[#allocation3 + $0x10] sm:$0xf]
        %v773 = vld [vmem:[#allocation3 + $0x14] sm:$0xf]
        %v774 = vld [vmem:[#allocation3 + $0x18] sm:$0xf]
        %v775 = vld [vmem:[#allocation3 + $0x1c] sm:$0xf]
        %v776 = vld [vmem:[#allocation3 + $0x20] sm:$0xf]
        %v777 = vld [vmem:[#allocation3 + $0x24] sm:$0xf]
        %v778 = vld [vmem:[#allocation3 + $0x28] sm:$0xf]
        %v779 = vld [vmem:[#allocation3 + $0x2c] sm:$0xf]
        %v780 = vld [vmem:[#allocation3 + $0x30] sm:$0xf]
        %v781 = vld [vmem:[#allocation3 + $0x34] sm:$0xf]
        %v782 = vld [vmem:[#allocation3 + $0x38] sm:$0xf]
        %v783 = vld [vmem:[#allocation3 + $0x3c] sm:$0xf]
        %v784 = vld [vmem:[#allocation3 + $0x40] sm:$0xf]
        %v785 = vld [vmem:[#allocation3 + $0x44] sm:$0xf]
        %v786 = vld [vmem:[#allocation3 + $0x48] sm:$0xf]
        %v787 = vld [vmem:[#allocation3 + $0x4c] sm:$0xf]
        %v788 = vld [vmem:[#allocation3 + $0x50] sm:$0xf]
        %v789 = vld [vmem:[#allocation3 + $0x54] sm:$0xf]
        %v790 = vld [vmem:[#allocation3 + $0x58] sm:$0xf]
        %v791 = vld [vmem:[#allocation3 + $0x5c] sm:$0xf]
        %v792 = vld [vmem:[#allocation3 + $0x60] sm:$0xf]
        %v793 = vld [vmem:[#allocation3 + $0x64] sm:$0xf]
        %v794 = vld [vmem:[#allocation3 + $0x68] sm:$0xf]
        %v795 = vld [vmem:[#allocation3 + $0x6c] sm:$0xf]
        %v796 = vld [vmem:[#allocation3 + $0x70] sm:$0xf]
        %v797 = vld [vmem:[#allocation3 + $0x74] sm:$0xf]
        %v798 = vld [vmem:[#allocation3 + $0x78] sm:$0xf]
        %v799 = vld [vmem:[#allocation3 + $0x7c] sm:$0xf]
        %v800 = vld [vmem:[#allocation3 + $0x80] sm:$0xf]
        %v801 = vld [vmem:[#allocation3 + $0x84] sm:$0xf]
        %v802 = vld [vmem:[#allocation3 + $0x88] sm:$0xf]
        %v803 = vld [vmem:[#allocation3 + $0x8c] sm:$0xf]
        %v804 = vld [vmem:[#allocation3 + $0x90] sm:$0xf]
        %v805 = vld [vmem:[#allocation3 + $0x94] sm:$0x7]
        %v806 = vld [vmem:[%s5] sm:$0xf]
        %v807 = vld [vmem:[%s5 + $0x4] sm:$0xf]
        %v808 = vld [vmem:[%s5 + $0x8] sm:$0xf]
        %v809 = vld [vmem:[%s5 + $0xc] sm:$0xf]
        %v810 = vld [vmem:[%s5 + $0x10] sm:$0xf]
        %v811 = vld [vmem:[%s5 + $0x14] sm:$0xf]
        %v812 = vld [vmem:[%s5 + $0x18] sm:$0xf]
        %v813 = vld [vmem:[%s5 + $0x1c] sm:$0xf]
        %v814 = vld [vmem:[%s5 + $0x20] sm:$0xf]
        %v815 = vld [vmem:[%s5 + $0x24] sm:$0xf]
        %v816 = vld [vmem:[%s5 + $0x28] sm:$0xf]
        %v817 = vld [vmem:[%s5 + $0x2c] sm:$0xf]
        %v818 = vld [vmem:[%s5 + $0x30] sm:$0xf]
        %v819 = vld [vmem:[%s5 + $0x34] sm:$0xf]
        %v820 = vld [vmem:[%s5 + $0x38] sm:$0xf]
        %v821 = vld [vmem:[%s5 + $0x3c] sm:$0xf]
        %v822 = vld [vmem:[#allocation3 + $0x94] sm:$0xf]
        %s823 = scalar_lea.vmem %s5, 64
        %v824 = vld [vmem:[%s823] sm:$0xf]
        %v825 = vld [vmem:[%s823 + $0x4] sm:$0xf]
        %v826 = vld [vmem:[%s823 + $0x8] sm:$0xf]
        %v827 = vld [vmem:[%s823 + $0xc] sm:$0xf]
        %v828 = vld [vmem:[%s823 + $0x10] sm:$0xf]
        %v829 = vld [vmem:[%s823 + $0x14] sm:$0xf]
        %v830 = vld [vmem:[%s823 + $0x18] sm:$0xf]
        %v831 = vld [vmem:[%s823 + $0x1c] sm:$0xf]
        %v832 = vld [vmem:[%s823 + $0x20] sm:$0xf]
        %v833 = vld [vmem:[%s823 + $0x24] sm:$0xf]
        %v834 = vld [vmem:[%s823 + $0x28] sm:$0xf]
        %v835 = vld [vmem:[%s823 + $0x2c] sm:$0xf]
        %v836 = vld [vmem:[%s823 + $0x30] sm:$0xf]
        %v837 = vld [vmem:[%s823 + $0x34] sm:$0xf]
        %v838 = vld [vmem:[%s823 + $0x38] sm:$0xf]
        %v839 = vld [vmem:[%s823 + $0x3c] sm:$0xf]
        %v876 = vunpack.c.l.b16 %v770
        %v877 = vunpack.c.l.b16 %v771
        %v878 = vunpack.c.l.b16 %v772
        %v879 = vunpack.c.l.b16 %v773
        %v880 = vunpack.c.l.b16 %v774
        %v881 = vunpack.c.l.b16 %v775
        %v882 = vunpack.c.l.b16 %v776
        %v883 = vunpack.c.l.b16 %v777
        %v884 = vunpack.c.l.b16 %v778
        %v885 = vunpack.c.l.b16 %v779
        %v886 = vunpack.c.l.b16 %v780
        %v887 = vunpack.c.l.b16 %v781
        %v888 = vunpack.c.l.b16 %v782
        %v889 = vunpack.c.l.b16 %v783
        %v890 = vunpack.c.l.b16 %v784
        %v891 = vunpack.c.l.b16 %v785
        %v892 = vunpack.c.l.b16 %v786
        %v893 = vunpack.c.l.b16 %v787
        %v894 = vunpack.c.l.b16 %v788
        %v895 = vunpack.c.l.b16 %v789
        %v896 = vunpack.c.l.b16 %v790
        %v897 = vunpack.c.l.b16 %v791
        %v898 = vunpack.c.l.b16 %v792
        %v899 = vunpack.c.l.b16 %v793
        %v900 = vunpack.c.l.b16 %v794
        %v901 = vunpack.c.l.b16 %v795
        %v902 = vunpack.c.l.b16 %v796
        %v903 = vunpack.c.l.b16 %v797
        %v904 = vunpack.c.l.b16 %v798
        %v905 = vunpack.c.l.b16 %v799
        %v906 = vunpack.c.l.b16 %v800
        %v907 = vunpack.c.l.b16 %v801
        %v908 = vunpack.c.l.b16 %v802
        %v909 = vunpack.c.l.b16 %v803
        %v910 = vunpack.c.l.b16 %v804
        %v911 = vunpack.c.l.b16 %v822
        %v912 = vpack.c.b16 %v877, %v876
        %v913 = vpack.c.b16 %v879, %v878
        %v914 = vpack.c.b16 %v881, %v880
        %v915 = vpack.c.b16 %v883, %v882
        %v916 = vpack.c.b16 %v885, %v884
        %v917 = vpack.c.b16 %v887, %v886
        %v918 = vpack.c.b16 %v889, %v888
        %v919 = vpack.c.b16 %v891, %v890
        %v920 = vpack.c.b16 %v893, %v892
        %v921 = vpack.c.b16 %v895, %v894
        %v922 = vpack.c.b16 %v897, %v896
        %v923 = vpack.c.b16 %v899, %v898
        %v924 = vpack.c.b16 %v901, %v900
        %v925 = vpack.c.b16 %v903, %v902
        %v926 = vpack.c.b16 %v905, %v904
        %v927 = vpack.c.b16 %v907, %v906
        %v928 = vpack.c.b16 %v909, %v908
        %v929 = vpack.c.b16 %v911, %v910
        %v964 = vunpack.c.l.b16 %v824
        %v965 = vunpack.c.l.b16 %v825
        %v966 = vunpack.c.l.b16 %v826
        %v967 = vunpack.c.l.b16 %v827
        %v968 = vunpack.c.l.b16 %v828
        %v969 = vunpack.c.l.b16 %v829
        %v970 = vunpack.c.l.b16 %v830
        %v971 = vunpack.c.l.b16 %v831
        %v972 = vunpack.c.l.b16 %v832
        %v973 = vunpack.c.l.b16 %v833
        %v974 = vunpack.c.l.b16 %v834
        %v975 = vunpack.c.l.b16 %v835
        %v976 = vunpack.c.l.b16 %v836
        %v977 = vunpack.c.l.b16 %v837
        %v978 = vunpack.c.l.b16 %v838
        %v979 = vunpack.c.l.b16 %v839
        %v980 = vpack.c.b16 %v965, %v964
        %v981 = vpack.c.b16 %v967, %v966
        %v982 = vpack.c.b16 %v969, %v968
        %v983 = vpack.c.b16 %v971, %v970
        %v984 = vpack.c.b16 %v973, %v972
        %v985 = vpack.c.b16 %v975, %v974
        %v986 = vpack.c.b16 %v977, %v976
        %v987 = vpack.c.b16 %v979, %v978
        %996 = vmatpush.bf16.msra.mxu0 %v987
        %997 = vmatpush.bf16.msra.mxu0 %v986
        %998 = vmatpush.bf16.msra.mxu0 %v985
        %999 = vmatpush.bf16.msra.mxu0 %v984
        %1000 = vmatpush.bf16.msra.mxu0 %v983
        %1001 = vmatpush.bf16.msra.mxu0 %v982
        %1002 = vmatpush.bf16.msra.mxu0 %v981
        %1003 = vmatpush.bf16.msra.mxu0 %v980
        %1004 = vmatmul.bf16.gmra.mxu0 %v912
        %v1005 = vpop.f32.mrf.mxu0
        %v1006 = vadd.f32 0.0, %v1005
        %v1007 = vpop.f32.mrf.mxu0
        %v1008 = vadd.f32 0.0, %v1007
        %1009 = vmatmul.bf16.gmra.mxu0 %v913
        %v1010 = vpop.f32.mrf.mxu0
        %v1011 = vadd.f32 0.0, %v1010
        %v1012 = vpop.f32.mrf.mxu0
        %v1013 = vadd.f32 0.0, %v1012
        %1014 = vmatmul.bf16.gmra.mxu0 %v914
        %v1015 = vpop.f32.mrf.mxu0
        %v1016 = vadd.f32 0.0, %v1015
        %v1017 = vpop.f32.mrf.mxu0
        %v1018 = vadd.f32 0.0, %v1017
        %1019 = vmatmul.bf16.gmra.mxu0 %v915
        %v1020 = vpop.f32.mrf.mxu0
        %v1021 = vadd.f32 0.0, %v1020
        %v1022 = vpop.f32.mrf.mxu0
        %v1023 = vadd.f32 0.0, %v1022
        %1024 = vmatmul.bf16.gmra.mxu0 %v916
        %v1025 = vpop.f32.mrf.mxu0
        %v1026 = vadd.f32 0.0, %v1025
        %v1027 = vpop.f32.mrf.mxu0
        %v1028 = vadd.f32 0.0, %v1027
        %1029 = vmatmul.bf16.gmra.mxu0 %v917
        %v1030 = vpop.f32.mrf.mxu0
        %v1031 = vadd.f32 0.0, %v1030
        %v1032 = vpop.f32.mrf.mxu0
        %v1033 = vadd.f32 0.0, %v1032
        %1034 = vmatmul.bf16.gmra.mxu0 %v918
        %v1035 = vpop.f32.mrf.mxu0
        %v1036 = vadd.f32 0.0, %v1035
        %v1037 = vpop.f32.mrf.mxu0
        %v1038 = vadd.f32 0.0, %v1037
        %1039 = vmatmul.bf16.gmra.mxu0 %v919
        %v1040 = vpop.f32.mrf.mxu0
        %v1041 = vadd.f32 0.0, %v1040
        %v1042 = vpop.f32.mrf.mxu0
        %v1043 = vadd.f32 0.0, %v1042
        %1044 = vmatmul.bf16.gmra.mxu0 %v920
        %v1045 = vpop.f32.mrf.mxu0
        %v1046 = vpop.f32.mrf.mxu0
        %1047 = vmatmul.bf16.gmra.mxu0 %v921
        %v1048 = vpop.f32.mrf.mxu0
        %v1049 = vpop.f32.mrf.mxu0
        %1050 = vmatmul.bf16.gmra.mxu0 %v922
        %v1051 = vpop.f32.mrf.mxu0
        %v1052 = vadd.f32 0.0, %v1051
        %v1053 = vpop.f32.mrf.mxu0
        %v1054 = vadd.f32 0.0, %v1053
        %1055 = vmatmul.bf16.gmra.mxu0 %v923
        %v1056 = vpop.f32.mrf.mxu0
        %v1057 = vadd.f32 0.0, %v1056
        %v1058 = vpop.f32.mrf.mxu0
        %v1059 = vadd.f32 0.0, %v1058
        %1060 = vmatmul.bf16.gmra.mxu0 %v924
        %v1061 = vpop.f32.mrf.mxu0
        %v1062 = vadd.f32 0.0, %v1061
        %v1063 = vpop.f32.mrf.mxu0
        %v1064 = vadd.f32 0.0, %v1063
        %1065 = vmatmul.bf16.gmra.mxu0 %v925
        %v1066 = vpop.f32.mrf.mxu0
        %v1067 = vadd.f32 0.0, %v1066
        %v1068 = vpop.f32.mrf.mxu0
        %v1069 = vadd.f32 0.0, %v1068
        %1070 = vmatmul.bf16.gmra.mxu0 %v926
        %v1071 = vpop.f32.mrf.mxu0
        %v1072 = vadd.f32 0.0, %v1071
        %v1073 = vpop.f32.mrf.mxu0
        %v1074 = vadd.f32 0.0, %v1073
        %1075 = vmatmul.bf16.gmra.mxu0 %v927
        %v1076 = vpop.f32.mrf.mxu0
        %v1077 = vadd.f32 0.0, %v1076
        %v1078 = vpop.f32.mrf.mxu0
        %v1079 = vadd.f32 0.0, %v1078
        %1080 = vmatmul.bf16.gmra.mxu0 %v928
        %v1081 = vpop.f32.mrf.mxu0
        %v1082 = vadd.f32 0.0, %v1081
        %v1083 = vpop.f32.mrf.mxu0
        %v1084 = vadd.f32 0.0, %v1083
        %1085 = vmatmul.bf16.gmra.mxu0 %v929
        %v1086 = vpop.f32.mrf.mxu0
        %v1087 = vadd.f32 0.0, %v1086
        %v1088 = vpop.f32.mrf.mxu0
        %v1089 = vadd.f32 0.0, %v1088
        %1090 = vdwg.mxu0
        %v1093 = vunpack.c.l.b16 %v769
        %v1094 = vunpack.c.l.b16 %v805
        %v1095 = vpack.c.b16 %v876, %v1093
        %v1096 = vpack.c.b16 %v878, %v877
        %v1097 = vpack.c.b16 %v880, %v879
        %v1098 = vpack.c.b16 %v882, %v881
        %v1099 = vpack.c.b16 %v884, %v883
        %v1100 = vpack.c.b16 %v886, %v885
        %v1101 = vpack.c.b16 %v888, %v887
        %v1102 = vpack.c.b16 %v890, %v889
        %v1103 = vpack.c.b16 %v892, %v891
        %v1104 = vpack.c.b16 %v894, %v893
        %v1105 = vpack.c.b16 %v896, %v895
        %v1106 = vpack.c.b16 %v898, %v897
        %v1107 = vpack.c.b16 %v900, %v899
        %v1108 = vpack.c.b16 %v902, %v901
        %v1109 = vpack.c.b16 %v904, %v903
        %v1110 = vpack.c.b16 %v906, %v905
        %v1111 = vpack.c.b16 %v908, %v907
        %v1112 = vpack.c.b16 %v910, %v909
        %v1113 = vpack.c.b16 %v1094, %v1094
        %vm1114 = vcmask 1044480
        %v1115 = vrot.slane %v1095, 3
        %v1116 = vrot.slane %v1096, 3
        %v1117 = vsel %vm1114, %v1115, %v1116
        %v1118 = vrot.slane %v1097, 3
        %v1119 = vsel %vm1114, %v1116, %v1118
        %v1120 = vrot.slane %v1098, 3
        %v1121 = vsel %vm1114, %v1118, %v1120
        %v1122 = vrot.slane %v1099, 3
        %v1123 = vsel %vm1114, %v1120, %v1122
        %v1124 = vrot.slane %v1100, 3
        %v1125 = vsel %vm1114, %v1122, %v1124
        %v1126 = vrot.slane %v1101, 3
        %v1127 = vsel %vm1114, %v1124, %v1126
        %v1128 = vrot.slane %v1102, 3
        %v1129 = vsel %vm1114, %v1126, %v1128
        %v1130 = vrot.slane %v1103, 3
        %v1131 = vsel %vm1114, %v1128, %v1130
        %v1132 = vrot.slane %v1104, 3
        %v1133 = vsel %vm1114, %v1130, %v1132
        %v1134 = vrot.slane %v1105, 3
        %v1135 = vsel %vm1114, %v1132, %v1134
        %v1136 = vrot.slane %v1106, 3
        %v1137 = vsel %vm1114, %v1134, %v1136
        %v1138 = vrot.slane %v1107, 3
        %v1139 = vsel %vm1114, %v1136, %v1138
        %v1140 = vrot.slane %v1108, 3
        %v1141 = vsel %vm1114, %v1138, %v1140
        %v1142 = vrot.slane %v1109, 3
        %v1143 = vsel %vm1114, %v1140, %v1142
        %v1144 = vrot.slane %v1110, 3
        %v1145 = vsel %vm1114, %v1142, %v1144
        %v1146 = vrot.slane %v1111, 3
        %v1147 = vsel %vm1114, %v1144, %v1146
        %v1148 = vrot.slane %v1112, 3
        %v1149 = vsel %vm1114, %v1146, %v1148
        %v1150 = vrot.slane %v1113, 3
        %v1151 = vsel %vm1114, %v1148, %v1150
        %v1186 = vunpack.c.l.b16 %v806
        %v1187 = vunpack.c.l.b16 %v807
        %v1188 = vunpack.c.l.b16 %v808
        %v1189 = vunpack.c.l.b16 %v809
        %v1190 = vunpack.c.l.b16 %v810
        %v1191 = vunpack.c.l.b16 %v811
        %v1192 = vunpack.c.l.b16 %v812
        %v1193 = vunpack.c.l.b16 %v813
        %v1194 = vunpack.c.l.b16 %v814
        %v1195 = vunpack.c.l.b16 %v815
        %v1196 = vunpack.c.l.b16 %v816
        %v1197 = vunpack.c.l.b16 %v817
        %v1198 = vunpack.c.l.b16 %v818
        %v1199 = vunpack.c.l.b16 %v819
        %v1200 = vunpack.c.l.b16 %v820
        %v1201 = vunpack.c.l.b16 %v821
        %v1202 = vpack.c.b16 %v1187, %v1186
        %v1203 = vpack.c.b16 %v1189, %v1188
        %v1204 = vpack.c.b16 %v1191, %v1190
        %v1205 = vpack.c.b16 %v1193, %v1192
        %v1206 = vpack.c.b16 %v1195, %v1194
        %v1207 = vpack.c.b16 %v1197, %v1196
        %v1208 = vpack.c.b16 %v1199, %v1198
        %v1209 = vpack.c.b16 %v1201, %v1200
        %1218 = vmatpush.bf16.msra.mxu0 %v1209
        %1219 = vmatpush.bf16.msra.mxu0 %v1208
        %1220 = vmatpush.bf16.msra.mxu0 %v1207
        %1221 = vmatpush.bf16.msra.mxu0 %v1206
        %1222 = vmatpush.bf16.msra.mxu0 %v1205
        %1223 = vmatpush.bf16.msra.mxu0 %v1204
        %1224 = vmatpush.bf16.msra.mxu0 %v1203
        %1225 = vmatpush.bf16.msra.mxu0 %v1202
        %1226 = vmatmul.bf16.gmra.mxu0 %v1117
        %v1227 = vpop.f32.mrf.mxu0
        %v1228 = vadd.f32 %v1006, %v1227
        %v1229 = vpop.f32.mrf.mxu0
        %v1230 = vadd.f32 %v1008, %v1229
        %1231 = vmatmul.bf16.gmra.mxu0 %v1119
        %v1232 = vpop.f32.mrf.mxu0
        %v1233 = vadd.f32 %v1011, %v1232
        %v1234 = vpop.f32.mrf.mxu0
        %v1235 = vadd.f32 %v1013, %v1234
        %1236 = vmatmul.bf16.gmra.mxu0 %v1121
        %v1237 = vpop.f32.mrf.mxu0
        %v1238 = vadd.f32 %v1016, %v1237
        %v1239 = vpop.f32.mrf.mxu0
        %v1240 = vadd.f32 %v1018, %v1239
        %1241 = vmatmul.bf16.gmra.mxu0 %v1123
        %v1242 = vpop.f32.mrf.mxu0
        %v1243 = vadd.f32 %v1021, %v1242
        %v1244 = vpop.f32.mrf.mxu0
        %v1245 = vadd.f32 %v1023, %v1244
        %1246 = vmatmul.bf16.gmra.mxu0 %v1125
        %v1247 = vpop.f32.mrf.mxu0
        %v1248 = vadd.f32 %v1026, %v1247
        %v1249 = vpop.f32.mrf.mxu0
        %v1250 = vadd.f32 %v1028, %v1249
        %1251 = vmatmul.bf16.gmra.mxu0 %v1127
        %v1252 = vpop.f32.mrf.mxu0
        %v1253 = vadd.f32 %v1031, %v1252
        %v1254 = vpop.f32.mrf.mxu0
        %v1255 = vadd.f32 %v1033, %v1254
        %1256 = vmatmul.bf16.gmra.mxu0 %v1129
        %v1257 = vpop.f32.mrf.mxu0
        %v1258 = vadd.f32 %v1036, %v1257
        %v1259 = vpop.f32.mrf.mxu0
        %v1260 = vadd.f32 %v1038, %v1259
        %1261 = vmatmul.bf16.gmra.mxu0 %v1131
        %v1262 = vpop.f32.mrf.mxu0
        %v1263 = vadd.f32 %v1041, %v1262
        %v1264 = vpop.f32.mrf.mxu0
        %v1265 = vadd.f32 %v1043, %v1264
        %1266 = vmatmul.bf16.gmra.mxu0 %v1133
        %v1267 = vpop.f32.mrf.mxu0
        %v1268 = vpop.f32.mrf.mxu0
        %1269 = vmatmul.bf16.gmra.mxu0 %v1135
        %v1270 = vpop.f32.mrf.mxu0
        %v1271 = vpop.f32.mrf.mxu0
        %1272 = vmatmul.bf16.gmra.mxu0 %v1137
        %v1273 = vpop.f32.mrf.mxu0
        %v1274 = vadd.f32 %v1052, %v1273
        %v1275 = vpop.f32.mrf.mxu0
        %v1276 = vadd.f32 %v1054, %v1275
        %1277 = vmatmul.bf16.gmra.mxu0 %v1139
        %v1278 = vpop.f32.mrf.mxu0
        %v1279 = vadd.f32 %v1057, %v1278
        %v1280 = vpop.f32.mrf.mxu0
        %v1281 = vadd.f32 %v1059, %v1280
        %1282 = vmatmul.bf16.gmra.mxu0 %v1141
        %v1283 = vpop.f32.mrf.mxu0
        %v1284 = vadd.f32 %v1062, %v1283
        %v1285 = vpop.f32.mrf.mxu0
        %v1286 = vadd.f32 %v1064, %v1285
        %1287 = vmatmul.bf16.gmra.mxu0 %v1143
        %v1288 = vpop.f32.mrf.mxu0
        %v1289 = vadd.f32 %v1067, %v1288
        %v1290 = vpop.f32.mrf.mxu0
        %v1291 = vadd.f32 %v1069, %v1290
        %1292 = vmatmul.bf16.gmra.mxu0 %v1145
        %v1293 = vpop.f32.mrf.mxu0
        %v1294 = vadd.f32 %v1072, %v1293
        %v1295 = vpop.f32.mrf.mxu0
        %v1296 = vadd.f32 %v1074, %v1295
        %1297 = vmatmul.bf16.gmra.mxu0 %v1147
        %v1298 = vpop.f32.mrf.mxu0
        %v1299 = vadd.f32 %v1077, %v1298
        %v1300 = vpop.f32.mrf.mxu0
        %v1301 = vadd.f32 %v1079, %v1300
        %1302 = vmatmul.bf16.gmra.mxu0 %v1149
        %v1303 = vpop.f32.mrf.mxu0
        %v1304 = vadd.f32 %v1082, %v1303
        %v1305 = vpop.f32.mrf.mxu0
        %v1306 = vadd.f32 %v1084, %v1305
        %1307 = vmatmul.bf16.gmra.mxu0 %v1151
        %v1308 = vpop.f32.mrf.mxu0
        %v1309 = vadd.f32 %v1087, %v1308
        %v1310 = vpop.f32.mrf.mxu0
        %v1311 = vadd.f32 %v1089, %v1310
        %1312 = vdwg.mxu0
        %v1313 = vld [vmem:[#allocation3 + $0x8] sm:$0xe]
        %v1314 = vld [vmem:[#allocation3 + $0xc] sm:$0xf]
        %v1315 = vld [vmem:[#allocation3 + $0x10] sm:$0xf]
        %v1316 = vld [vmem:[#allocation3 + $0x14] sm:$0xf]
        %v1317 = vld [vmem:[#allocation3 + $0x18] sm:$0xf]
        %v1318 = vld [vmem:[#allocation3 + $0x1c] sm:$0xf]
        %v1319 = vld [vmem:[#allocation3 + $0x20] sm:$0xf]
        %v1320 = vld [vmem:[#allocation3 + $0x24] sm:$0xf]
        %v1321 = vld [vmem:[#allocation3 + $0x28] sm:$0xf]
        %v1322 = vld [vmem:[#allocation3 + $0x2c] sm:$0xf]
        %v1323 = vld [vmem:[#allocation3 + $0x30] sm:$0xf]
        %v1324 = vld [vmem:[#allocation3 + $0x34] sm:$0xf]
        %v1325 = vld [vmem:[#allocation3 + $0x38] sm:$0xf]
        %v1326 = vld [vmem:[#allocation3 + $0x3c] sm:$0xf]
        %v1327 = vld [vmem:[#allocation3 + $0x40] sm:$0xf]
        %v1328 = vld [vmem:[#allocation3 + $0x44] sm:$0xf]
        %v1329 = vld [vmem:[#allocation3 + $0x48] sm:$0xf]
        %v1330 = vld [vmem:[#allocation3 + $0x4c] sm:$0xf]
        %v1331 = vld [vmem:[#allocation3 + $0x50] sm:$0xf]
        %v1332 = vld [vmem:[#allocation3 + $0x54] sm:$0xf]
        %v1333 = vld [vmem:[#allocation3 + $0x58] sm:$0xf]
        %v1334 = vld [vmem:[#allocation3 + $0x5c] sm:$0xf]
        %v1335 = vld [vmem:[#allocation3 + $0x60] sm:$0xf]
        %v1336 = vld [vmem:[#allocation3 + $0x64] sm:$0xf]
        %v1337 = vld [vmem:[#allocation3 + $0x68] sm:$0xf]
        %v1338 = vld [vmem:[#allocation3 + $0x6c] sm:$0xf]
        %v1339 = vld [vmem:[#allocation3 + $0x70] sm:$0xf]
        %v1340 = vld [vmem:[#allocation3 + $0x74] sm:$0xf]
        %v1341 = vld [vmem:[#allocation3 + $0x78] sm:$0xf]
        %v1342 = vld [vmem:[#allocation3 + $0x7c] sm:$0xf]
        %v1343 = vld [vmem:[#allocation3 + $0x80] sm:$0xf]
        %v1344 = vld [vmem:[#allocation3 + $0x84] sm:$0xf]
        %v1345 = vld [vmem:[#allocation3 + $0x88] sm:$0xf]
        %v1346 = vld [vmem:[#allocation3 + $0x8c] sm:$0xf]
        %v1347 = vld [vmem:[#allocation3 + $0x90] sm:$0xf]
        %v1348 = vld [vmem:[#allocation3 + $0x94] sm:$0xf]
        %v1349 = vld [vmem:[#allocation3 + $0x98] sm:$0x1]
        %s1350 = scalar_lea.vmem %s5, 128
        %v1351 = vld [vmem:[%s1350] sm:$0xf]
        %v1352 = vld [vmem:[%s1350 + $0x4] sm:$0xf]
        %v1353 = vld [vmem:[%s1350 + $0x8] sm:$0xf]
        %v1354 = vld [vmem:[%s1350 + $0xc] sm:$0xf]
        %v1355 = vld [vmem:[%s1350 + $0x10] sm:$0xf]
        %v1356 = vld [vmem:[%s1350 + $0x14] sm:$0xf]
        %v1357 = vld [vmem:[%s1350 + $0x18] sm:$0xf]
        %v1358 = vld [vmem:[%s1350 + $0x1c] sm:$0xf]
        %v1359 = vld [vmem:[%s1350 + $0x20] sm:$0xf]
        %v1360 = vld [vmem:[%s1350 + $0x24] sm:$0xf]
        %v1361 = vld [vmem:[%s1350 + $0x28] sm:$0xf]
        %v1362 = vld [vmem:[%s1350 + $0x2c] sm:$0xf]
        %v1363 = vld [vmem:[%s1350 + $0x30] sm:$0xf]
        %v1364 = vld [vmem:[%s1350 + $0x34] sm:$0xf]
        %v1365 = vld [vmem:[%s1350 + $0x38] sm:$0xf]
        %v1366 = vld [vmem:[%s1350 + $0x3c] sm:$0xf]
        %v1404 = vunpack.c.l.b16 %v1313
        %v1405 = vunpack.c.l.b16 %v1314
        %v1406 = vunpack.c.l.b16 %v1315
        %v1407 = vunpack.c.l.b16 %v1316
        %v1408 = vunpack.c.l.b16 %v1317
        %v1409 = vunpack.c.l.b16 %v1318
        %v1410 = vunpack.c.l.b16 %v1319
        %v1411 = vunpack.c.l.b16 %v1320
        %v1412 = vunpack.c.l.b16 %v1321
        %v1413 = vunpack.c.l.b16 %v1322
        %v1414 = vunpack.c.l.b16 %v1323
        %v1415 = vunpack.c.l.b16 %v1324
        %v1416 = vunpack.c.l.b16 %v1325
        %v1417 = vunpack.c.l.b16 %v1326
        %v1418 = vunpack.c.l.b16 %v1327
        %v1419 = vunpack.c.l.b16 %v1328
        %v1420 = vunpack.c.l.b16 %v1329
        %v1421 = vunpack.c.l.b16 %v1330
        %v1422 = vunpack.c.l.b16 %v1331
        %v1423 = vunpack.c.l.b16 %v1332
        %v1424 = vunpack.c.l.b16 %v1333
        %v1425 = vunpack.c.l.b16 %v1334
        %v1426 = vunpack.c.l.b16 %v1335
        %v1427 = vunpack.c.l.b16 %v1336
        %v1428 = vunpack.c.l.b16 %v1337
        %v1429 = vunpack.c.l.b16 %v1338
        %v1430 = vunpack.c.l.b16 %v1339
        %v1431 = vunpack.c.l.b16 %v1340
        %v1432 = vunpack.c.l.b16 %v1341
        %v1433 = vunpack.c.l.b16 %v1342
        %v1434 = vunpack.c.l.b16 %v1343
        %v1435 = vunpack.c.l.b16 %v1344
        %v1436 = vunpack.c.l.b16 %v1345
        %v1437 = vunpack.c.l.b16 %v1346
        %v1438 = vunpack.c.l.b16 %v1347
        %v1439 = vunpack.c.l.b16 %v1348
        %v1440 = vunpack.c.l.b16 %v1349
        %v1441 = vpack.c.b16 %v1405, %v1404
        %v1442 = vpack.c.b16 %v1407, %v1406
        %v1443 = vpack.c.b16 %v1409, %v1408
        %v1444 = vpack.c.b16 %v1411, %v1410
        %v1445 = vpack.c.b16 %v1413, %v1412
        %v1446 = vpack.c.b16 %v1415, %v1414
        %v1447 = vpack.c.b16 %v1417, %v1416
        %v1448 = vpack.c.b16 %v1419, %v1418
        %v1449 = vpack.c.b16 %v1421, %v1420
        %v1450 = vpack.c.b16 %v1423, %v1422
        %v1451 = vpack.c.b16 %v1425, %v1424
        %v1452 = vpack.c.b16 %v1427, %v1426
        %v1453 = vpack.c.b16 %v1429, %v1428
        %v1454 = vpack.c.b16 %v1431, %v1430
        %v1455 = vpack.c.b16 %v1433, %v1432
        %v1456 = vpack.c.b16 %v1435, %v1434
        %v1457 = vpack.c.b16 %v1437, %v1436
        %v1458 = vpack.c.b16 %v1439, %v1438
        %v1459 = vpack.c.b16 %v1440, %v1440
        %vm1460 = vcmask 1046528
        %v1461 = vrot.slane %v1441, 1
        %v1462 = vrot.slane %v1442, 1
        %v1463 = vsel %vm1460, %v1461, %v1462
        %v1464 = vrot.slane %v1443, 1
        %v1465 = vsel %vm1460, %v1462, %v1464
        %v1466 = vrot.slane %v1444, 1
        %v1467 = vsel %vm1460, %v1464, %v1466
        %v1468 = vrot.slane %v1445, 1
        %v1469 = vsel %vm1460, %v1466, %v1468
        %v1470 = vrot.slane %v1446, 1
        %v1471 = vsel %vm1460, %v1468, %v1470
        %v1472 = vrot.slane %v1447, 1
        %v1473 = vsel %vm1460, %v1470, %v1472
        %v1474 = vrot.slane %v1448, 1
        %v1475 = vsel %vm1460, %v1472, %v1474
        %v1476 = vrot.slane %v1449, 1
        %v1477 = vsel %vm1460, %v1474, %v1476
        %v1478 = vrot.slane %v1450, 1
        %v1479 = vsel %vm1460, %v1476, %v1478
        %v1480 = vrot.slane %v1451, 1
        %v1481 = vsel %vm1460, %v1478, %v1480
        %v1482 = vrot.slane %v1452, 1
        %v1483 = vsel %vm1460, %v1480, %v1482
        %v1484 = vrot.slane %v1453, 1
        %v1485 = vsel %vm1460, %v1482, %v1484
        %v1486 = vrot.slane %v1454, 1
        %v1487 = vsel %vm1460, %v1484, %v1486
        %v1488 = vrot.slane %v1455, 1
        %v1489 = vsel %vm1460, %v1486, %v1488
        %v1490 = vrot.slane %v1456, 1
        %v1491 = vsel %vm1460, %v1488, %v1490
        %v1492 = vrot.slane %v1457, 1
        %v1493 = vsel %vm1460, %v1490, %v1492
        %v1494 = vrot.slane %v1458, 1
        %v1495 = vsel %vm1460, %v1492, %v1494
        %v1496 = vrot.slane %v1459, 1
        %v1497 = vsel %vm1460, %v1494, %v1496
        %v1532 = vunpack.c.l.b16 %v1351
        %v1533 = vunpack.c.l.b16 %v1352
        %v1534 = vunpack.c.l.b16 %v1353
        %v1535 = vunpack.c.l.b16 %v1354
        %v1536 = vunpack.c.l.b16 %v1355
        %v1537 = vunpack.c.l.b16 %v1356
        %v1538 = vunpack.c.l.b16 %v1357
        %v1539 = vunpack.c.l.b16 %v1358
        %v1540 = vunpack.c.l.b16 %v1359
        %v1541 = vunpack.c.l.b16 %v1360
        %v1542 = vunpack.c.l.b16 %v1361
        %v1543 = vunpack.c.l.b16 %v1362
        %v1544 = vunpack.c.l.b16 %v1363
        %v1545 = vunpack.c.l.b16 %v1364
        %v1546 = vunpack.c.l.b16 %v1365
        %v1547 = vunpack.c.l.b16 %v1366
        %v1548 = vpack.c.b16 %v1533, %v1532
        %v1549 = vpack.c.b16 %v1535, %v1534
        %v1550 = vpack.c.b16 %v1537, %v1536
        %v1551 = vpack.c.b16 %v1539, %v1538
        %v1552 = vpack.c.b16 %v1541, %v1540
        %v1553 = vpack.c.b16 %v1543, %v1542
        %v1554 = vpack.c.b16 %v1545, %v1544
        %v1555 = vpack.c.b16 %v1547, %v1546
        %1564 = vmatpush.bf16.msra.mxu0 %v1555
        %1565 = vmatpush.bf16.msra.mxu0 %v1554
        %1566 = vmatpush.bf16.msra.mxu0 %v1553
        %1567 = vmatpush.bf16.msra.mxu0 %v1552
        %1568 = vmatpush.bf16.msra.mxu0 %v1551
        %1569 = vmatpush.bf16.msra.mxu0 %v1550
        %1570 = vmatpush.bf16.msra.mxu0 %v1549
        %1571 = vmatpush.bf16.msra.mxu0 %v1548
        %1572 = vmatmul.bf16.gmra.mxu0 %v1463
        %v1573 = vpop.f32.mrf.mxu0
        %v1574 = vadd.f32 0.0, %v1573
        %v1575 = vpop.f32.mrf.mxu0
        %v1576 = vadd.f32 0.0, %v1575
        %1577 = vmatmul.bf16.gmra.mxu0 %v1465
        %v1578 = vpop.f32.mrf.mxu0
        %v1579 = vadd.f32 0.0, %v1578
        %v1580 = vpop.f32.mrf.mxu0
        %v1581 = vadd.f32 0.0, %v1580
        %1582 = vmatmul.bf16.gmra.mxu0 %v1467
        %v1583 = vpop.f32.mrf.mxu0
        %v1584 = vadd.f32 0.0, %v1583
        %v1585 = vpop.f32.mrf.mxu0
        %v1586 = vadd.f32 0.0, %v1585
        %1587 = vmatmul.bf16.gmra.mxu0 %v1469
        %v1588 = vpop.f32.mrf.mxu0
        %v1589 = vadd.f32 0.0, %v1588
        %v1590 = vpop.f32.mrf.mxu0
        %v1591 = vadd.f32 0.0, %v1590
        %1592 = vmatmul.bf16.gmra.mxu0 %v1471
        %v1593 = vpop.f32.mrf.mxu0
        %v1594 = vadd.f32 0.0, %v1593
        %v1595 = vpop.f32.mrf.mxu0
        %v1596 = vadd.f32 0.0, %v1595
        %1597 = vmatmul.bf16.gmra.mxu0 %v1473
        %v1598 = vpop.f32.mrf.mxu0
        %v1599 = vadd.f32 0.0, %v1598
        %v1600 = vpop.f32.mrf.mxu0
        %v1601 = vadd.f32 0.0, %v1600
        %1602 = vmatmul.bf16.gmra.mxu0 %v1475
        %v1603 = vpop.f32.mrf.mxu0
        %v1604 = vadd.f32 0.0, %v1603
        %v1605 = vpop.f32.mrf.mxu0
        %v1606 = vadd.f32 0.0, %v1605
        %1607 = vmatmul.bf16.gmra.mxu0 %v1477
        %v1608 = vpop.f32.mrf.mxu0
        %v1609 = vadd.f32 0.0, %v1608
        %v1610 = vpop.f32.mrf.mxu0
        %v1611 = vadd.f32 0.0, %v1610
        %1612 = vmatmul.bf16.gmra.mxu0 %v1479
        %v1613 = vpop.f32.mrf.mxu0
        %v1614 = vpop.f32.mrf.mxu0
        %1615 = vmatmul.bf16.gmra.mxu0 %v1481
        %v1616 = vpop.f32.mrf.mxu0
        %v1617 = vpop.f32.mrf.mxu0
        %1618 = vmatmul.bf16.gmra.mxu0 %v1483
        %v1619 = vpop.f32.mrf.mxu0
        %v1620 = vadd.f32 0.0, %v1619
        %v1621 = vpop.f32.mrf.mxu0
        %v1622 = vadd.f32 0.0, %v1621
        %1623 = vmatmul.bf16.gmra.mxu0 %v1485
        %v1624 = vpop.f32.mrf.mxu0
        %v1625 = vadd.f32 0.0, %v1624
        %v1626 = vpop.f32.mrf.mxu0
        %v1627 = vadd.f32 0.0, %v1626
        %1628 = vmatmul.bf16.gmra.mxu0 %v1487
        %v1629 = vpop.f32.mrf.mxu0
        %v1630 = vadd.f32 0.0, %v1629
        %v1631 = vpop.f32.mrf.mxu0
        %v1632 = vadd.f32 0.0, %v1631
        %1633 = vmatmul.bf16.gmra.mxu0 %v1489
        %v1634 = vpop.f32.mrf.mxu0
        %v1635 = vadd.f32 0.0, %v1634
        %v1636 = vpop.f32.mrf.mxu0
        %v1637 = vadd.f32 0.0, %v1636
        %1638 = vmatmul.bf16.gmra.mxu0 %v1491
        %v1639 = vpop.f32.mrf.mxu0
        %v1640 = vadd.f32 0.0, %v1639
        %v1641 = vpop.f32.mrf.mxu0
        %v1642 = vadd.f32 0.0, %v1641
        %1643 = vmatmul.bf16.gmra.mxu0 %v1493
        %v1644 = vpop.f32.mrf.mxu0
        %v1645 = vadd.f32 0.0, %v1644
        %v1646 = vpop.f32.mrf.mxu0
        %v1647 = vadd.f32 0.0, %v1646
        %1648 = vmatmul.bf16.gmra.mxu0 %v1495
        %v1649 = vpop.f32.mrf.mxu0
        %v1650 = vadd.f32 0.0, %v1649
        %v1651 = vpop.f32.mrf.mxu0
        %v1652 = vadd.f32 0.0, %v1651
        %1653 = vmatmul.bf16.gmra.mxu0 %v1497
        %v1654 = vpop.f32.mrf.mxu0
        %v1655 = vadd.f32 0.0, %v1654
        %v1656 = vpop.f32.mrf.mxu0
        %v1657 = vadd.f32 0.0, %v1656
        %1658 = vdwg.mxu0
        %v1659 = vadd.f32 %v1228, %v1574
        %v1660 = vadd.f32 %v1230, %v1576
        %v1661 = vadd.f32 %v1233, %v1579
        %v1662 = vadd.f32 %v1235, %v1581
        %v1663 = vadd.f32 %v1238, %v1584
        %v1664 = vadd.f32 %v1240, %v1586
        %v1665 = vadd.f32 %v1243, %v1589
        %v1666 = vadd.f32 %v1245, %v1591
        %v1667 = vadd.f32 %v1248, %v1594
        %v1668 = vadd.f32 %v1250, %v1596
        %v1669 = vadd.f32 %v1253, %v1599
        %v1670 = vadd.f32 %v1255, %v1601
        %v1671 = vadd.f32 %v1258, %v1604
        %v1672 = vadd.f32 %v1260, %v1606
        %v1673 = vadd.f32 %v1263, %v1609
        %v1674 = vadd.f32 %v1265, %v1611
        %v1675 = vadd.f32 %v1274, %v1620
        %v1676 = vadd.f32 %v1276, %v1622
        %v1677 = vadd.f32 %v1279, %v1625
        %v1678 = vadd.f32 %v1281, %v1627
        %v1679 = vadd.f32 %v1284, %v1630
        %v1680 = vadd.f32 %v1286, %v1632
        %v1681 = vadd.f32 %v1289, %v1635
        %v1682 = vadd.f32 %v1291, %v1637
        %v1683 = vadd.f32 %v1294, %v1640
        %v1684 = vadd.f32 %v1296, %v1642
        %v1685 = vadd.f32 %v1299, %v1645
        %v1686 = vadd.f32 %v1301, %v1647
        %v1687 = vadd.f32 %v1304, %v1650
        %v1688 = vadd.f32 %v1306, %v1652
        %v1689 = vadd.f32 %v1309, %v1655
        %v1690 = vadd.f32 %v1311, %v1657
        %v1691 = vperm.slane %v354, 0
        %v1692 = vadd.f32 %v1659, %v1691
        %v1693 = vadd.f32 %v1660, %v1691
        %v1694 = vadd.f32 %v1661, %v1691
        %v1695 = vadd.f32 %v1662, %v1691
        %v1696 = vadd.f32 %v1663, %v1691
        %v1697 = vadd.f32 %v1664, %v1691
        %v1698 = vadd.f32 %v1665, %v1691
        %v1699 = vadd.f32 %v1666, %v1691
        %v1700 = vadd.f32 %v1667, %v1691
        %v1701 = vadd.f32 %v1668, %v1691
        %v1702 = vadd.f32 %v1669, %v1691
        %v1703 = vadd.f32 %v1670, %v1691
        %v1704 = vadd.f32 %v1671, %v1691
        %v1705 = vadd.f32 %v1672, %v1691
        %v1706 = vadd.f32 %v1673, %v1691
        %v1707 = vadd.f32 %v1674, %v1691
        %v1708 = vmax.f32 %v1692, 0.0
        %v1709 = vmax.f32 %v1693, 0.0
        %v1710 = vmax.f32 %v1694, 0.0
        %v1711 = vmax.f32 %v1695, 0.0
        %v1712 = vmax.f32 %v1696, 0.0
        %v1713 = vmax.f32 %v1697, 0.0
        %v1714 = vmax.f32 %v1698, 0.0
        %v1715 = vmax.f32 %v1699, 0.0
        %v1716 = vmax.f32 %v1700, 0.0
        %v1717 = vmax.f32 %v1701, 0.0
        %v1718 = vmax.f32 %v1702, 0.0
        %v1719 = vmax.f32 %v1703, 0.0
        %v1720 = vmax.f32 %v1704, 0.0
        %v1721 = vmax.f32 %v1705, 0.0
        %v1722 = vmax.f32 %v1706, 0.0
        %v1723 = vmax.f32 %v1707, 0.0
        %v1724 = vld [vmem:[#allocation2 + $0x10] sm:$0xff]
        %v1725 = vld [vmem:[#allocation2 + $0x18] sm:$0xff]
        %v1726 = vld [vmem:[#allocation2 + $0x20] sm:$0xff]
        %v1727 = vld [vmem:[#allocation2 + $0x28] sm:$0xff]
        %v1728 = vld [vmem:[#allocation2 + $0x30] sm:$0xff]
        %v1729 = vld [vmem:[#allocation2 + $0x38] sm:$0xff]
        %v1730 = vld [vmem:[#allocation2 + $0x40] sm:$0xff]
        %v1731 = vld [vmem:[#allocation2 + $0x48] sm:$0xff]
        %v1732 = vld [vmem:[#allocation2 + $0x50] sm:$0xff]
        %v1733 = vld [vmem:[#allocation2 + $0x58] sm:$0xff]
        %v1734 = vld [vmem:[#allocation2 + $0x60] sm:$0xff]
        %v1735 = vld [vmem:[#allocation2 + $0x68] sm:$0xff]
        %v1736 = vld [vmem:[#allocation2 + $0x70] sm:$0xff]
        %v1737 = vld [vmem:[#allocation2 + $0x78] sm:$0xff]
        %v1738 = vld [vmem:[#allocation2 + $0x80] sm:$0xff]
        %v1739 = vld [vmem:[#allocation2 + $0x88] sm:$0xff]
        %v1740 = vadd.f32 %v1724, %v1708
        %v1741 = vadd.f32 %v1725, %v1709
        %v1742 = vadd.f32 %v1726, %v1710
        %v1743 = vadd.f32 %v1727, %v1711
        %v1744 = vadd.f32 %v1728, %v1712
        %v1745 = vadd.f32 %v1729, %v1713
        %v1746 = vadd.f32 %v1730, %v1714
        %v1747 = vadd.f32 %v1731, %v1715
        %v1748 = vadd.f32 %v1732, %v1716
        %v1749 = vadd.f32 %v1733, %v1717
        %v1750 = vadd.f32 %v1734, %v1718
        %v1751 = vadd.f32 %v1735, %v1719
        %v1752 = vadd.f32 %v1736, %v1720
        %v1753 = vadd.f32 %v1737, %v1721
        %v1754 = vadd.f32 %v1738, %v1722
        %v1755 = vadd.f32 %v1739, %v1723
        %1756 = vst [vmem:[#allocation2 + $0x10] sm:$0xff] %v1740
        %1757 = vst [vmem:[#allocation2 + $0x18] sm:$0xff] %v1741
        %1758 = vst [vmem:[#allocation2 + $0x20] sm:$0xff] %v1742
        %1759 = vst [vmem:[#allocation2 + $0x28] sm:$0xff] %v1743
        %1760 = vst [vmem:[#allocation2 + $0x30] sm:$0xff] %v1744
        %1761 = vst [vmem:[#allocation2 + $0x38] sm:$0xff] %v1745
        %1762 = vst [vmem:[#allocation2 + $0x40] sm:$0xff] %v1746
        %1763 = vst [vmem:[#allocation2 + $0x48] sm:$0xff] %v1747
        %1764 = vst [vmem:[#allocation2 + $0x50] sm:$0xff] %v1748
        %1765 = vst [vmem:[#allocation2 + $0x58] sm:$0xff] %v1749
        %1766 = vst [vmem:[#allocation2 + $0x60] sm:$0xff] %v1750
        %1767 = vst [vmem:[#allocation2 + $0x68] sm:$0xff] %v1751
        %1768 = vst [vmem:[#allocation2 + $0x70] sm:$0xff] %v1752
        %1769 = vst [vmem:[#allocation2 + $0x78] sm:$0xff] %v1753
        %1770 = vst [vmem:[#allocation2 + $0x80] sm:$0xff] %v1754
        %1771 = vst [vmem:[#allocation2 + $0x88] sm:$0xff] %v1755
        %v1772 = vpack.c.bf16 %v1740, %v1740
        %v1773 = vpack.c.bf16 %v1741, %v1741
        %v1774 = vpack.c.bf16 %v1742, %v1742
        %v1775 = vpack.c.bf16 %v1743, %v1743
        %v1776 = vpack.c.bf16 %v1744, %v1744
        %v1777 = vpack.c.bf16 %v1745, %v1745
        %v1778 = vpack.c.bf16 %v1746, %v1746
        %v1779 = vpack.c.bf16 %v1747, %v1747
        %v1780 = vpack.c.bf16 %v1748, %v1748
        %v1781 = vpack.c.bf16 %v1749, %v1749
        %v1782 = vpack.c.bf16 %v1750, %v1750
        %v1783 = vpack.c.bf16 %v1751, %v1751
        %v1784 = vpack.c.bf16 %v1752, %v1752
        %v1785 = vpack.c.bf16 %v1753, %v1753
        %v1786 = vpack.c.bf16 %v1754, %v1754
        %v1787 = vpack.c.bf16 %v1755, %v1755
        %1788 = vst [vmem:[#allocation3 + $0x8] sm:$0xf] %v1772
        %1789 = vst [vmem:[#allocation3 + $0xc] sm:$0xf] %v1773
        %1790 = vst [vmem:[#allocation3 + $0x10] sm:$0xf] %v1774
        %1791 = vst [vmem:[#allocation3 + $0x14] sm:$0xf] %v1775
        %1792 = vst [vmem:[#allocation3 + $0x18] sm:$0xf] %v1776
        %1793 = vst [vmem:[#allocation3 + $0x1c] sm:$0xf] %v1777
        %1794 = vst [vmem:[#allocation3 + $0x20] sm:$0xf] %v1778
        %1795 = vst [vmem:[#allocation3 + $0x24] sm:$0xf] %v1779
        %1796 = vst [vmem:[#allocation3 + $0x28] sm:$0xf] %v1780
        %1797 = vst [vmem:[#allocation3 + $0x2c] sm:$0xf] %v1781
        %1798 = vst [vmem:[#allocation3 + $0x30] sm:$0xf] %v1782
        %1799 = vst [vmem:[#allocation3 + $0x34] sm:$0xf] %v1783
        %1800 = vst [vmem:[#allocation3 + $0x38] sm:$0xf] %v1784
        %1801 = vst [vmem:[#allocation3 + $0x3c] sm:$0xf] %v1785
        %1802 = vst [vmem:[#allocation3 + $0x40] sm:$0xf] %v1786
        %1803 = vst [vmem:[#allocation3 + $0x44] sm:$0xf] %v1787
        %v1804 = vperm.slane %v355, 0
        %v1805 = vadd.f32 %v1675, %v1804
        %v1806 = vadd.f32 %v1676, %v1804
        %v1807 = vadd.f32 %v1677, %v1804
        %v1808 = vadd.f32 %v1678, %v1804
        %v1809 = vadd.f32 %v1679, %v1804
        %v1810 = vadd.f32 %v1680, %v1804
        %v1811 = vadd.f32 %v1681, %v1804
        %v1812 = vadd.f32 %v1682, %v1804
        %v1813 = vadd.f32 %v1683, %v1804
        %v1814 = vadd.f32 %v1684, %v1804
        %v1815 = vadd.f32 %v1685, %v1804
        %v1816 = vadd.f32 %v1686, %v1804
        %v1817 = vadd.f32 %v1687, %v1804
        %v1818 = vadd.f32 %v1688, %v1804
        %v1819 = vadd.f32 %v1689, %v1804
        %v1820 = vadd.f32 %v1690, %v1804
        %v1821 = vmax.f32 %v1805, 0.0
        %v1822 = vmax.f32 %v1806, 0.0
        %v1823 = vmax.f32 %v1807, 0.0
        %v1824 = vmax.f32 %v1808, 0.0
        %v1825 = vmax.f32 %v1809, 0.0
        %v1826 = vmax.f32 %v1810, 0.0
        %v1827 = vmax.f32 %v1811, 0.0
        %v1828 = vmax.f32 %v1812, 0.0
        %v1829 = vmax.f32 %v1813, 0.0
        %v1830 = vmax.f32 %v1814, 0.0
        %v1831 = vmax.f32 %v1815, 0.0
        %v1832 = vmax.f32 %v1816, 0.0
        %v1833 = vmax.f32 %v1817, 0.0
        %v1834 = vmax.f32 %v1818, 0.0
        %v1835 = vmax.f32 %v1819, 0.0
        %v1836 = vmax.f32 %v1820, 0.0
        %v1837 = vld [vmem:[#allocation2 + $0xb0] sm:$0xff]
        %v1838 = vld [vmem:[#allocation2 + $0xb8] sm:$0xff]
        %v1839 = vld [vmem:[#allocation2 + $0xc0] sm:$0xff]
        %v1840 = vld [vmem:[#allocation2 + $0xc8] sm:$0xff]
        %v1841 = vld [vmem:[#allocation2 + $0xd0] sm:$0xff]
        %v1842 = vld [vmem:[#allocation2 + $0xd8] sm:$0xff]
        %v1843 = vld [vmem:[#allocation2 + $0xe0] sm:$0xff]
        %v1844 = vld [vmem:[#allocation2 + $0xe8] sm:$0xff]
        %v1845 = vld [vmem:[#allocation2 + $0xf0] sm:$0xff]
        %v1846 = vld [vmem:[#allocation2 + $0xf8] sm:$0xff]
        %v1847 = vld [vmem:[#allocation2 + $0x100] sm:$0xff]
        %v1848 = vld [vmem:[#allocation2 + $0x108] sm:$0xff]
        %v1849 = vld [vmem:[#allocation2 + $0x110] sm:$0xff]
        %v1850 = vld [vmem:[#allocation2 + $0x118] sm:$0xff]
        %v1851 = vld [vmem:[#allocation2 + $0x120] sm:$0xff]
        %v1852 = vld [vmem:[#allocation2 + $0x128] sm:$0xff]
        %v1853 = vadd.f32 %v1837, %v1821
        %v1854 = vadd.f32 %v1838, %v1822
        %v1855 = vadd.f32 %v1839, %v1823
        %v1856 = vadd.f32 %v1840, %v1824
        %v1857 = vadd.f32 %v1841, %v1825
        %v1858 = vadd.f32 %v1842, %v1826
        %v1859 = vadd.f32 %v1843, %v1827
        %v1860 = vadd.f32 %v1844, %v1828
        %v1861 = vadd.f32 %v1845, %v1829
        %v1862 = vadd.f32 %v1846, %v1830
        %v1863 = vadd.f32 %v1847, %v1831
        %v1864 = vadd.f32 %v1848, %v1832
        %v1865 = vadd.f32 %v1849, %v1833
        %v1866 = vadd.f32 %v1850, %v1834
        %v1867 = vadd.f32 %v1851, %v1835
        %v1868 = vadd.f32 %v1852, %v1836
        %1869 = vst [vmem:[#allocation2 + $0xb0] sm:$0xff] %v1853
        %1870 = vst [vmem:[#allocation2 + $0xb8] sm:$0xff] %v1854
        %1871 = vst [vmem:[#allocation2 + $0xc0] sm:$0xff] %v1855
        %1872 = vst [vmem:[#allocation2 + $0xc8] sm:$0xff] %v1856
        %1873 = vst [vmem:[#allocation2 + $0xd0] sm:$0xff] %v1857
        %1874 = vst [vmem:[#allocation2 + $0xd8] sm:$0xff] %v1858
        %1875 = vst [vmem:[#allocation2 + $0xe0] sm:$0xff] %v1859
        %1876 = vst [vmem:[#allocation2 + $0xe8] sm:$0xff] %v1860
        %1877 = vst [vmem:[#allocation2 + $0xf0] sm:$0xff] %v1861
        %1878 = vst [vmem:[#allocation2 + $0xf8] sm:$0xff] %v1862
        %1879 = vst [vmem:[#allocation2 + $0x100] sm:$0xff] %v1863
        %1880 = vst [vmem:[#allocation2 + $0x108] sm:$0xff] %v1864
        %1881 = vst [vmem:[#allocation2 + $0x110] sm:$0xff] %v1865
        %1882 = vst [vmem:[#allocation2 + $0x118] sm:$0xff] %v1866
        %1883 = vst [vmem:[#allocation2 + $0x120] sm:$0xff] %v1867
        %1884 = vst [vmem:[#allocation2 + $0x128] sm:$0xff] %v1868
        %v1885 = vpack.c.bf16 %v1853, %v1853
        %v1886 = vpack.c.bf16 %v1854, %v1854
        %v1887 = vpack.c.bf16 %v1855, %v1855
        %v1888 = vpack.c.bf16 %v1856, %v1856
        %v1889 = vpack.c.bf16 %v1857, %v1857
        %v1890 = vpack.c.bf16 %v1858, %v1858
        %v1891 = vpack.c.bf16 %v1859, %v1859
        %v1892 = vpack.c.bf16 %v1860, %v1860
        %v1893 = vpack.c.bf16 %v1861, %v1861
        %v1894 = vpack.c.bf16 %v1862, %v1862
        %v1895 = vpack.c.bf16 %v1863, %v1863
        %v1896 = vpack.c.bf16 %v1864, %v1864
        %v1897 = vpack.c.bf16 %v1865, %v1865
        %v1898 = vpack.c.bf16 %v1866, %v1866
        %v1899 = vpack.c.bf16 %v1867, %v1867
        %v1900 = vpack.c.bf16 %v1868, %v1868
        %1901 = vst [vmem:[#allocation3 + $0x58] sm:$0xf] %v1885
        %1902 = vst [vmem:[#allocation3 + $0x5c] sm:$0xf] %v1886
        %1903 = vst [vmem:[#allocation3 + $0x60] sm:$0xf] %v1887
        %1904 = vst [vmem:[#allocation3 + $0x64] sm:$0xf] %v1888
        %1905 = vst [vmem:[#allocation3 + $0x68] sm:$0xf] %v1889
        %1906 = vst [vmem:[#allocation3 + $0x6c] sm:$0xf] %v1890
        %1907 = vst [vmem:[#allocation3 + $0x70] sm:$0xf] %v1891
        %1908 = vst [vmem:[#allocation3 + $0x74] sm:$0xf] %v1892
        %1909 = vst [vmem:[#allocation3 + $0x78] sm:$0xf] %v1893
        %1910 = vst [vmem:[#allocation3 + $0x7c] sm:$0xf] %v1894
        %1911 = vst [vmem:[#allocation3 + $0x80] sm:$0xf] %v1895
        %1912 = vst [vmem:[#allocation3 + $0x84] sm:$0xf] %v1896
        %1913 = vst [vmem:[#allocation3 + $0x88] sm:$0xf] %v1897
        %1914 = vst [vmem:[#allocation3 + $0x8c] sm:$0xf] %v1898
        %1915 = vst [vmem:[#allocation3 + $0x90] sm:$0xf] %v1899
        %1916 = vst [vmem:[#allocation3 + $0x94] sm:$0xf] %v1900
        %v1917 = vld [vmem:[#allocation3 + $0x4] sm:$0xc]
        %v1918 = vld [vmem:[#allocation3 + $0x8] sm:$0xf]
        %v1919 = vld [vmem:[#allocation3 + $0xc] sm:$0xf]
        %v1920 = vld [vmem:[#allocation3 + $0x10] sm:$0xf]
        %v1921 = vld [vmem:[#allocation3 + $0x14] sm:$0xf]
        %v1922 = vld [vmem:[#allocation3 + $0x18] sm:$0xf]
        %v1923 = vld [vmem:[#allocation3 + $0x1c] sm:$0xf]
        %v1924 = vld [vmem:[#allocation3 + $0x20] sm:$0xf]
        %v1925 = vld [vmem:[#allocation3 + $0x24] sm:$0xf]
        %v1926 = vld [vmem:[#allocation3 + $0x28] sm:$0xf]
        %v1927 = vld [vmem:[#allocation3 + $0x2c] sm:$0xf]
        %v1928 = vld [vmem:[#allocation3 + $0x30] sm:$0xf]
        %v1929 = vld [vmem:[#allocation3 + $0x34] sm:$0xf]
        %v1930 = vld [vmem:[#allocation3 + $0x38] sm:$0xf]
        %v1931 = vld [vmem:[#allocation3 + $0x3c] sm:$0xf]
        %v1932 = vld [vmem:[#allocation3 + $0x40] sm:$0xf]
        %v1933 = vld [vmem:[#allocation3 + $0x44] sm:$0xf]
        %v1934 = vld [vmem:[#allocation3 + $0x48] sm:$0xf]
        %v1935 = vld [vmem:[#allocation3 + $0x4c] sm:$0xf]
        %v1936 = vld [vmem:[#allocation3 + $0x50] sm:$0xf]
        %v1937 = vld [vmem:[#allocation3 + $0x54] sm:$0xf]
        %v1938 = vld [vmem:[#allocation3 + $0x58] sm:$0xf]
        %v1939 = vld [vmem:[#allocation3 + $0x5c] sm:$0xf]
        %v1940 = vld [vmem:[#allocation3 + $0x60] sm:$0xf]
        %v1941 = vld [vmem:[#allocation3 + $0x64] sm:$0xf]
        %v1942 = vld [vmem:[#allocation3 + $0x68] sm:$0xf]
        %v1943 = vld [vmem:[#allocation3 + $0x6c] sm:$0xf]
        %v1944 = vld [vmem:[#allocation3 + $0x70] sm:$0xf]
        %v1945 = vld [vmem:[#allocation3 + $0x74] sm:$0xf]
        %v1946 = vld [vmem:[#allocation3 + $0x78] sm:$0xf]
        %v1947 = vld [vmem:[#allocation3 + $0x7c] sm:$0xf]
        %v1948 = vld [vmem:[#allocation3 + $0x80] sm:$0xf]
        %v1949 = vld [vmem:[#allocation3 + $0x84] sm:$0xf]
        %v1950 = vld [vmem:[#allocation3 + $0x88] sm:$0xf]
        %v1951 = vld [vmem:[#allocation3 + $0x8c] sm:$0xf]
        %v1952 = vld [vmem:[#allocation3 + $0x90] sm:$0xf]
        %v1953 = vld [vmem:[#allocation3 + $0x94] sm:$0x3]
        %v1954 = vld [vmem:[%s6] sm:$0xf]
        %v1955 = vld [vmem:[%s6 + $0x4] sm:$0xf]
        %v1956 = vld [vmem:[%s6 + $0x8] sm:$0xf]
        %v1957 = vld [vmem:[%s6 + $0xc] sm:$0xf]
        %v1958 = vld [vmem:[%s6 + $0x10] sm:$0xf]
        %v1959 = vld [vmem:[%s6 + $0x14] sm:$0xf]
        %v1960 = vld [vmem:[%s6 + $0x18] sm:$0xf]
        %v1961 = vld [vmem:[%s6 + $0x1c] sm:$0xf]
        %v1962 = vld [vmem:[%s6 + $0x20] sm:$0xf]
        %v1963 = vld [vmem:[%s6 + $0x24] sm:$0xf]
        %v1964 = vld [vmem:[%s6 + $0x28] sm:$0xf]
        %v1965 = vld [vmem:[%s6 + $0x2c] sm:$0xf]
        %v1966 = vld [vmem:[%s6 + $0x30] sm:$0xf]
        %v1967 = vld [vmem:[%s6 + $0x34] sm:$0xf]
        %v1968 = vld [vmem:[%s6 + $0x38] sm:$0xf]
        %v1969 = vld [vmem:[%s6 + $0x3c] sm:$0xf]
        %v1970 = vld [vmem:[#allocation3 + $0x94] sm:$0xf]
        %s1971 = scalar_lea.vmem %s6, 64
        %v1972 = vld [vmem:[%s1971] sm:$0xf]
        %v1973 = vld [vmem:[%s1971 + $0x4] sm:$0xf]
        %v1974 = vld [vmem:[%s1971 + $0x8] sm:$0xf]
        %v1975 = vld [vmem:[%s1971 + $0xc] sm:$0xf]
        %v1976 = vld [vmem:[%s1971 + $0x10] sm:$0xf]
        %v1977 = vld [vmem:[%s1971 + $0x14] sm:$0xf]
        %v1978 = vld [vmem:[%s1971 + $0x18] sm:$0xf]
        %v1979 = vld [vmem:[%s1971 + $0x1c] sm:$0xf]
        %v1980 = vld [vmem:[%s1971 + $0x20] sm:$0xf]
        %v1981 = vld [vmem:[%s1971 + $0x24] sm:$0xf]
        %v1982 = vld [vmem:[%s1971 + $0x28] sm:$0xf]
        %v1983 = vld [vmem:[%s1971 + $0x2c] sm:$0xf]
        %v1984 = vld [vmem:[%s1971 + $0x30] sm:$0xf]
        %v1985 = vld [vmem:[%s1971 + $0x34] sm:$0xf]
        %v1986 = vld [vmem:[%s1971 + $0x38] sm:$0xf]
        %v1987 = vld [vmem:[%s1971 + $0x3c] sm:$0xf]
        %v2024 = vunpack.c.l.b16 %v1918
        %v2025 = vunpack.c.l.b16 %v1919
        %v2026 = vunpack.c.l.b16 %v1920
        %v2027 = vunpack.c.l.b16 %v1921
        %v2028 = vunpack.c.l.b16 %v1922
        %v2029 = vunpack.c.l.b16 %v1923
        %v2030 = vunpack.c.l.b16 %v1924
        %v2031 = vunpack.c.l.b16 %v1925
        %v2032 = vunpack.c.l.b16 %v1926
        %v2033 = vunpack.c.l.b16 %v1927
        %v2034 = vunpack.c.l.b16 %v1928
        %v2035 = vunpack.c.l.b16 %v1929
        %v2036 = vunpack.c.l.b16 %v1930
        %v2037 = vunpack.c.l.b16 %v1931
        %v2038 = vunpack.c.l.b16 %v1932
        %v2039 = vunpack.c.l.b16 %v1933
        %v2040 = vunpack.c.l.b16 %v1934
        %v2041 = vunpack.c.l.b16 %v1935
        %v2042 = vunpack.c.l.b16 %v1936
        %v2043 = vunpack.c.l.b16 %v1937
        %v2044 = vunpack.c.l.b16 %v1938
        %v2045 = vunpack.c.l.b16 %v1939
        %v2046 = vunpack.c.l.b16 %v1940
        %v2047 = vunpack.c.l.b16 %v1941
        %v2048 = vunpack.c.l.b16 %v1942
        %v2049 = vunpack.c.l.b16 %v1943
        %v2050 = vunpack.c.l.b16 %v1944
        %v2051 = vunpack.c.l.b16 %v1945
        %v2052 = vunpack.c.l.b16 %v1946
        %v2053 = vunpack.c.l.b16 %v1947
        %v2054 = vunpack.c.l.b16 %v1948
        %v2055 = vunpack.c.l.b16 %v1949
        %v2056 = vunpack.c.l.b16 %v1950
        %v2057 = vunpack.c.l.b16 %v1951
        %v2058 = vunpack.c.l.b16 %v1952
        %v2059 = vunpack.c.l.b16 %v1970
        %v2060 = vpack.c.b16 %v2025, %v2024
        %v2061 = vpack.c.b16 %v2027, %v2026
        %v2062 = vpack.c.b16 %v2029, %v2028
        %v2063 = vpack.c.b16 %v2031, %v2030
        %v2064 = vpack.c.b16 %v2033, %v2032
        %v2065 = vpack.c.b16 %v2035, %v2034
        %v2066 = vpack.c.b16 %v2037, %v2036
        %v2067 = vpack.c.b16 %v2039, %v2038
        %v2068 = vpack.c.b16 %v2041, %v2040
        %v2069 = vpack.c.b16 %v2043, %v2042
        %v2070 = vpack.c.b16 %v2045, %v2044
        %v2071 = vpack.c.b16 %v2047, %v2046
        %v2072 = vpack.c.b16 %v2049, %v2048
        %v2073 = vpack.c.b16 %v2051, %v2050
        %v2074 = vpack.c.b16 %v2053, %v2052
        %v2075 = vpack.c.b16 %v2055, %v2054
        %v2076 = vpack.c.b16 %v2057, %v2056
        %v2077 = vpack.c.b16 %v2059, %v2058
        %v2112 = vunpack.c.l.b16 %v1972
        %v2113 = vunpack.c.l.b16 %v1973
        %v2114 = vunpack.c.l.b16 %v1974
        %v2115 = vunpack.c.l.b16 %v1975
        %v2116 = vunpack.c.l.b16 %v1976
        %v2117 = vunpack.c.l.b16 %v1977
        %v2118 = vunpack.c.l.b16 %v1978
        %v2119 = vunpack.c.l.b16 %v1979
        %v2120 = vunpack.c.l.b16 %v1980
        %v2121 = vunpack.c.l.b16 %v1981
        %v2122 = vunpack.c.l.b16 %v1982
        %v2123 = vunpack.c.l.b16 %v1983
        %v2124 = vunpack.c.l.b16 %v1984
        %v2125 = vunpack.c.l.b16 %v1985
        %v2126 = vunpack.c.l.b16 %v1986
        %v2127 = vunpack.c.l.b16 %v1987
        %v2128 = vpack.c.b16 %v2113, %v2112
        %v2129 = vpack.c.b16 %v2115, %v2114
        %v2130 = vpack.c.b16 %v2117, %v2116
        %v2131 = vpack.c.b16 %v2119, %v2118
        %v2132 = vpack.c.b16 %v2121, %v2120
        %v2133 = vpack.c.b16 %v2123, %v2122
        %v2134 = vpack.c.b16 %v2125, %v2124
        %v2135 = vpack.c.b16 %v2127, %v2126
        %2144 = vmatpush.bf16.msra.mxu0 %v2135
        %2145 = vmatpush.bf16.msra.mxu0 %v2134
        %2146 = vmatpush.bf16.msra.mxu0 %v2133
        %2147 = vmatpush.bf16.msra.mxu0 %v2132
        %2148 = vmatpush.bf16.msra.mxu0 %v2131
        %2149 = vmatpush.bf16.msra.mxu0 %v2130
        %2150 = vmatpush.bf16.msra.mxu0 %v2129
        %2151 = vmatpush.bf16.msra.mxu0 %v2128
        %2152 = vmatmul.bf16.gmra.mxu0 %v2060
        %v2153 = vpop.f32.mrf.mxu0
        %v2154 = vadd.f32 0.0, %v2153
        %v2155 = vpop.f32.mrf.mxu0
        %v2156 = vadd.f32 0.0, %v2155
        %2157 = vmatmul.bf16.gmra.mxu0 %v2061
        %v2158 = vpop.f32.mrf.mxu0
        %v2159 = vadd.f32 0.0, %v2158
        %v2160 = vpop.f32.mrf.mxu0
        %v2161 = vadd.f32 0.0, %v2160
        %2162 = vmatmul.bf16.gmra.mxu0 %v2062
        %v2163 = vpop.f32.mrf.mxu0
        %v2164 = vadd.f32 0.0, %v2163
        %v2165 = vpop.f32.mrf.mxu0
        %v2166 = vadd.f32 0.0, %v2165
        %2167 = vmatmul.bf16.gmra.mxu0 %v2063
        %v2168 = vpop.f32.mrf.mxu0
        %v2169 = vadd.f32 0.0, %v2168
        %v2170 = vpop.f32.mrf.mxu0
        %v2171 = vadd.f32 0.0, %v2170
        %2172 = vmatmul.bf16.gmra.mxu0 %v2064
        %v2173 = vpop.f32.mrf.mxu0
        %v2174 = vadd.f32 0.0, %v2173
        %v2175 = vpop.f32.mrf.mxu0
        %v2176 = vadd.f32 0.0, %v2175
        %2177 = vmatmul.bf16.gmra.mxu0 %v2065
        %v2178 = vpop.f32.mrf.mxu0
        %v2179 = vadd.f32 0.0, %v2178
        %v2180 = vpop.f32.mrf.mxu0
        %v2181 = vadd.f32 0.0, %v2180
        %2182 = vmatmul.bf16.gmra.mxu0 %v2066
        %v2183 = vpop.f32.mrf.mxu0
        %v2184 = vadd.f32 0.0, %v2183
        %v2185 = vpop.f32.mrf.mxu0
        %v2186 = vadd.f32 0.0, %v2185
        %2187 = vmatmul.bf16.gmra.mxu0 %v2067
        %v2188 = vpop.f32.mrf.mxu0
        %v2189 = vadd.f32 0.0, %v2188
        %v2190 = vpop.f32.mrf.mxu0
        %v2191 = vadd.f32 0.0, %v2190
        %2192 = vmatmul.bf16.gmra.mxu0 %v2068
        %v2193 = vpop.f32.mrf.mxu0
        %v2194 = vpop.f32.mrf.mxu0
        %2195 = vmatmul.bf16.gmra.mxu0 %v2069
        %v2196 = vpop.f32.mrf.mxu0
        %v2197 = vpop.f32.mrf.mxu0
        %2198 = vmatmul.bf16.gmra.mxu0 %v2070
        %v2199 = vpop.f32.mrf.mxu0
        %v2200 = vadd.f32 0.0, %v2199
        %v2201 = vpop.f32.mrf.mxu0
        %v2202 = vadd.f32 0.0, %v2201
        %2203 = vmatmul.bf16.gmra.mxu0 %v2071
        %v2204 = vpop.f32.mrf.mxu0
        %v2205 = vadd.f32 0.0, %v2204
        %v2206 = vpop.f32.mrf.mxu0
        %v2207 = vadd.f32 0.0, %v2206
        %2208 = vmatmul.bf16.gmra.mxu0 %v2072
        %v2209 = vpop.f32.mrf.mxu0
        %v2210 = vadd.f32 0.0, %v2209
        %v2211 = vpop.f32.mrf.mxu0
        %v2212 = vadd.f32 0.0, %v2211
        %2213 = vmatmul.bf16.gmra.mxu0 %v2073
        %v2214 = vpop.f32.mrf.mxu0
        %v2215 = vadd.f32 0.0, %v2214
        %v2216 = vpop.f32.mrf.mxu0
        %v2217 = vadd.f32 0.0, %v2216
        %2218 = vmatmul.bf16.gmra.mxu0 %v2074
        %v2219 = vpop.f32.mrf.mxu0
        %v2220 = vadd.f32 0.0, %v2219
        %v2221 = vpop.f32.mrf.mxu0
        %v2222 = vadd.f32 0.0, %v2221
        %2223 = vmatmul.bf16.gmra.mxu0 %v2075
        %v2224 = vpop.f32.mrf.mxu0
        %v2225 = vadd.f32 0.0, %v2224
        %v2226 = vpop.f32.mrf.mxu0
        %v2227 = vadd.f32 0.0, %v2226
        %2228 = vmatmul.bf16.gmra.mxu0 %v2076
        %v2229 = vpop.f32.mrf.mxu0
        %v2230 = vadd.f32 0.0, %v2229
        %v2231 = vpop.f32.mrf.mxu0
        %v2232 = vadd.f32 0.0, %v2231
        %2233 = vmatmul.bf16.gmra.mxu0 %v2077
        %v2234 = vpop.f32.mrf.mxu0
        %v2235 = vadd.f32 0.0, %v2234
        %v2236 = vpop.f32.mrf.mxu0
        %v2237 = vadd.f32 0.0, %v2236
        %2238 = vdwg.mxu0
        %v2241 = vunpack.c.l.b16 %v1917
        %v2242 = vunpack.c.l.b16 %v1953
        %v2243 = vpack.c.b16 %v2024, %v2241
        %v2244 = vpack.c.b16 %v2026, %v2025
        %v2245 = vpack.c.b16 %v2028, %v2027
        %v2246 = vpack.c.b16 %v2030, %v2029
        %v2247 = vpack.c.b16 %v2032, %v2031
        %v2248 = vpack.c.b16 %v2034, %v2033
        %v2249 = vpack.c.b16 %v2036, %v2035
        %v2250 = vpack.c.b16 %v2038, %v2037
        %v2251 = vpack.c.b16 %v2040, %v2039
        %v2252 = vpack.c.b16 %v2042, %v2041
        %v2253 = vpack.c.b16 %v2044, %v2043
        %v2254 = vpack.c.b16 %v2046, %v2045
        %v2255 = vpack.c.b16 %v2048, %v2047
        %v2256 = vpack.c.b16 %v2050, %v2049
        %v2257 = vpack.c.b16 %v2052, %v2051
        %v2258 = vpack.c.b16 %v2054, %v2053
        %v2259 = vpack.c.b16 %v2056, %v2055
        %v2260 = vpack.c.b16 %v2058, %v2057
        %v2261 = vpack.c.b16 %v2242, %v2242
        %vm2262 = vcmask 1045504
        %v2263 = vrot.slane %v2243, 2
        %v2264 = vrot.slane %v2244, 2
        %v2265 = vsel %vm2262, %v2263, %v2264
        %v2266 = vrot.slane %v2245, 2
        %v2267 = vsel %vm2262, %v2264, %v2266
        %v2268 = vrot.slane %v2246, 2
        %v2269 = vsel %vm2262, %v2266, %v2268
        %v2270 = vrot.slane %v2247, 2
        %v2271 = vsel %vm2262, %v2268, %v2270
        %v2272 = vrot.slane %v2248, 2
        %v2273 = vsel %vm2262, %v2270, %v2272
        %v2274 = vrot.slane %v2249, 2
        %v2275 = vsel %vm2262, %v2272, %v2274
        %v2276 = vrot.slane %v2250, 2
        %v2277 = vsel %vm2262, %v2274, %v2276
        %v2278 = vrot.slane %v2251, 2
        %v2279 = vsel %vm2262, %v2276, %v2278
        %v2280 = vrot.slane %v2252, 2
        %v2281 = vsel %vm2262, %v2278, %v2280
        %v2282 = vrot.slane %v2253, 2
        %v2283 = vsel %vm2262, %v2280, %v2282
        %v2284 = vrot.slane %v2254, 2
        %v2285 = vsel %vm2262, %v2282, %v2284
        %v2286 = vrot.slane %v2255, 2
        %v2287 = vsel %vm2262, %v2284, %v2286
        %v2288 = vrot.slane %v2256, 2
        %v2289 = vsel %vm2262, %v2286, %v2288
        %v2290 = vrot.slane %v2257, 2
        %v2291 = vsel %vm2262, %v2288, %v2290
        %v2292 = vrot.slane %v2258, 2
        %v2293 = vsel %vm2262, %v2290, %v2292
        %v2294 = vrot.slane %v2259, 2
        %v2295 = vsel %vm2262, %v2292, %v2294
        %v2296 = vrot.slane %v2260, 2
        %v2297 = vsel %vm2262, %v2294, %v2296
        %v2298 = vrot.slane %v2261, 2
        %v2299 = vsel %vm2262, %v2296, %v2298
        %v2334 = vunpack.c.l.b16 %v1954
        %v2335 = vunpack.c.l.b16 %v1955
        %v2336 = vunpack.c.l.b16 %v1956
        %v2337 = vunpack.c.l.b16 %v1957
        %v2338 = vunpack.c.l.b16 %v1958
        %v2339 = vunpack.c.l.b16 %v1959
        %v2340 = vunpack.c.l.b16 %v1960
        %v2341 = vunpack.c.l.b16 %v1961
        %v2342 = vunpack.c.l.b16 %v1962
        %v2343 = vunpack.c.l.b16 %v1963
        %v2344 = vunpack.c.l.b16 %v1964
        %v2345 = vunpack.c.l.b16 %v1965
        %v2346 = vunpack.c.l.b16 %v1966
        %v2347 = vunpack.c.l.b16 %v1967
        %v2348 = vunpack.c.l.b16 %v1968
        %v2349 = vunpack.c.l.b16 %v1969
        %v2350 = vpack.c.b16 %v2335, %v2334
        %v2351 = vpack.c.b16 %v2337, %v2336
        %v2352 = vpack.c.b16 %v2339, %v2338
        %v2353 = vpack.c.b16 %v2341, %v2340
        %v2354 = vpack.c.b16 %v2343, %v2342
        %v2355 = vpack.c.b16 %v2345, %v2344
        %v2356 = vpack.c.b16 %v2347, %v2346
        %v2357 = vpack.c.b16 %v2349, %v2348
        %2366 = vmatpush.bf16.msra.mxu0 %v2357
        %2367 = vmatpush.bf16.msra.mxu0 %v2356
        %2368 = vmatpush.bf16.msra.mxu0 %v2355
        %2369 = vmatpush.bf16.msra.mxu0 %v2354
        %2370 = vmatpush.bf16.msra.mxu0 %v2353
        %2371 = vmatpush.bf16.msra.mxu0 %v2352
        %2372 = vmatpush.bf16.msra.mxu0 %v2351
        %2373 = vmatpush.bf16.msra.mxu0 %v2350
        %2374 = vmatmul.bf16.gmra.mxu0 %v2265
        %v2375 = vpop.f32.mrf.mxu0
        %v2376 = vadd.f32 %v2154, %v2375
        %v2377 = vpop.f32.mrf.mxu0
        %v2378 = vadd.f32 %v2156, %v2377
        %2379 = vmatmul.bf16.gmra.mxu0 %v2267
        %v2380 = vpop.f32.mrf.mxu0
        %v2381 = vadd.f32 %v2159, %v2380
        %v2382 = vpop.f32.mrf.mxu0
        %v2383 = vadd.f32 %v2161, %v2382
        %2384 = vmatmul.bf16.gmra.mxu0 %v2269
        %v2385 = vpop.f32.mrf.mxu0
        %v2386 = vadd.f32 %v2164, %v2385
        %v2387 = vpop.f32.mrf.mxu0
        %v2388 = vadd.f32 %v2166, %v2387
        %2389 = vmatmul.bf16.gmra.mxu0 %v2271
        %v2390 = vpop.f32.mrf.mxu0
        %v2391 = vadd.f32 %v2169, %v2390
        %v2392 = vpop.f32.mrf.mxu0
        %v2393 = vadd.f32 %v2171, %v2392
        %2394 = vmatmul.bf16.gmra.mxu0 %v2273
        %v2395 = vpop.f32.mrf.mxu0
        %v2396 = vadd.f32 %v2174, %v2395
        %v2397 = vpop.f32.mrf.mxu0
        %v2398 = vadd.f32 %v2176, %v2397
        %2399 = vmatmul.bf16.gmra.mxu0 %v2275
        %v2400 = vpop.f32.mrf.mxu0
        %v2401 = vadd.f32 %v2179, %v2400
        %v2402 = vpop.f32.mrf.mxu0
        %v2403 = vadd.f32 %v2181, %v2402
        %2404 = vmatmul.bf16.gmra.mxu0 %v2277
        %v2405 = vpop.f32.mrf.mxu0
        %v2406 = vadd.f32 %v2184, %v2405
        %v2407 = vpop.f32.mrf.mxu0
        %v2408 = vadd.f32 %v2186, %v2407
        %2409 = vmatmul.bf16.gmra.mxu0 %v2279
        %v2410 = vpop.f32.mrf.mxu0
        %v2411 = vadd.f32 %v2189, %v2410
        %v2412 = vpop.f32.mrf.mxu0
        %v2413 = vadd.f32 %v2191, %v2412
        %2414 = vmatmul.bf16.gmra.mxu0 %v2281
        %v2415 = vpop.f32.mrf.mxu0
        %v2416 = vpop.f32.mrf.mxu0
        %2417 = vmatmul.bf16.gmra.mxu0 %v2283
        %v2418 = vpop.f32.mrf.mxu0
        %v2419 = vpop.f32.mrf.mxu0
        %2420 = vmatmul.bf16.gmra.mxu0 %v2285
        %v2421 = vpop.f32.mrf.mxu0
        %v2422 = vadd.f32 %v2200, %v2421
        %v2423 = vpop.f32.mrf.mxu0
        %v2424 = vadd.f32 %v2202, %v2423
        %2425 = vmatmul.bf16.gmra.mxu0 %v2287
        %v2426 = vpop.f32.mrf.mxu0
        %v2427 = vadd.f32 %v2205, %v2426
        %v2428 = vpop.f32.mrf.mxu0
        %v2429 = vadd.f32 %v2207, %v2428
        %2430 = vmatmul.bf16.gmra.mxu0 %v2289
        %v2431 = vpop.f32.mrf.mxu0
        %v2432 = vadd.f32 %v2210, %v2431
        %v2433 = vpop.f32.mrf.mxu0
        %v2434 = vadd.f32 %v2212, %v2433
        %2435 = vmatmul.bf16.gmra.mxu0 %v2291
        %v2436 = vpop.f32.mrf.mxu0
        %v2437 = vadd.f32 %v2215, %v2436
        %v2438 = vpop.f32.mrf.mxu0
        %v2439 = vadd.f32 %v2217, %v2438
        %2440 = vmatmul.bf16.gmra.mxu0 %v2293
        %v2441 = vpop.f32.mrf.mxu0
        %v2442 = vadd.f32 %v2220, %v2441
        %v2443 = vpop.f32.mrf.mxu0
        %v2444 = vadd.f32 %v2222, %v2443
        %2445 = vmatmul.bf16.gmra.mxu0 %v2295
        %v2446 = vpop.f32.mrf.mxu0
        %v2447 = vadd.f32 %v2225, %v2446
        %v2448 = vpop.f32.mrf.mxu0
        %v2449 = vadd.f32 %v2227, %v2448
        %2450 = vmatmul.bf16.gmra.mxu0 %v2297
        %v2451 = vpop.f32.mrf.mxu0
        %v2452 = vadd.f32 %v2230, %v2451
        %v2453 = vpop.f32.mrf.mxu0
        %v2454 = vadd.f32 %v2232, %v2453
        %2455 = vmatmul.bf16.gmra.mxu0 %v2299
        %v2456 = vpop.f32.mrf.mxu0
        %v2457 = vadd.f32 %v2235, %v2456
        %v2458 = vpop.f32.mrf.mxu0
        %v2459 = vadd.f32 %v2237, %v2458
        %2460 = vdwg.mxu0
        %v2461 = vld [vmem:[#allocation3 + $0x8] sm:$0xc]
        %v2462 = vld [vmem:[#allocation3 + $0xc] sm:$0xf]
        %v2463 = vld [vmem:[#allocation3 + $0x10] sm:$0xf]
        %v2464 = vld [vmem:[#allocation3 + $0x14] sm:$0xf]
        %v2465 = vld [vmem:[#allocation3 + $0x18] sm:$0xf]
        %v2466 = vld [vmem:[#allocation3 + $0x1c] sm:$0xf]
        %v2467 = vld [vmem:[#allocation3 + $0x20] sm:$0xf]
        %v2468 = vld [vmem:[#allocation3 + $0x24] sm:$0xf]
        %v2469 = vld [vmem:[#allocation3 + $0x28] sm:$0xf]
        %v2470 = vld [vmem:[#allocation3 + $0x2c] sm:$0xf]
        %v2471 = vld [vmem:[#allocation3 + $0x30] sm:$0xf]
        %v2472 = vld [vmem:[#allocation3 + $0x34] sm:$0xf]
        %v2473 = vld [vmem:[#allocation3 + $0x38] sm:$0xf]
        %v2474 = vld [vmem:[#allocation3 + $0x3c] sm:$0xf]
        %v2475 = vld [vmem:[#allocation3 + $0x40] sm:$0xf]
        %v2476 = vld [vmem:[#allocation3 + $0x44] sm:$0xf]
        %v2477 = vld [vmem:[#allocation3 + $0x48] sm:$0xf]
        %v2478 = vld [vmem:[#allocation3 + $0x4c] sm:$0xf]
        %v2479 = vld [vmem:[#allocation3 + $0x50] sm:$0xf]
        %v2480 = vld [vmem:[#allocation3 + $0x54] sm:$0xf]
        %v2481 = vld [vmem:[#allocation3 + $0x58] sm:$0xf]
        %v2482 = vld [vmem:[#allocation3 + $0x5c] sm:$0xf]
        %v2483 = vld [vmem:[#allocation3 + $0x60] sm:$0xf]
        %v2484 = vld [vmem:[#allocation3 + $0x64] sm:$0xf]
        %v2485 = vld [vmem:[#allocation3 + $0x68] sm:$0xf]
        %v2486 = vld [vmem:[#allocation3 + $0x6c] sm:$0xf]
        %v2487 = vld [vmem:[#allocation3 + $0x70] sm:$0xf]
        %v2488 = vld [vmem:[#allocation3 + $0x74] sm:$0xf]
        %v2489 = vld [vmem:[#allocation3 + $0x78] sm:$0xf]
        %v2490 = vld [vmem:[#allocation3 + $0x7c] sm:$0xf]
        %v2491 = vld [vmem:[#allocation3 + $0x80] sm:$0xf]
        %v2492 = vld [vmem:[#allocation3 + $0x84] sm:$0xf]
        %v2493 = vld [vmem:[#allocation3 + $0x88] sm:$0xf]
        %v2494 = vld [vmem:[#allocation3 + $0x8c] sm:$0xf]
        %v2495 = vld [vmem:[#allocation3 + $0x90] sm:$0xf]
        %v2496 = vld [vmem:[#allocation3 + $0x94] sm:$0xf]
        %v2497 = vld [vmem:[#allocation3 + $0x98] sm:$0x3]
        %s2498 = scalar_lea.vmem %s6, 128
        %v2499 = vld [vmem:[%s2498] sm:$0xf]
        %v2500 = vld [vmem:[%s2498 + $0x4] sm:$0xf]
        %v2501 = vld [vmem:[%s2498 + $0x8] sm:$0xf]
        %v2502 = vld [vmem:[%s2498 + $0xc] sm:$0xf]
        %v2503 = vld [vmem:[%s2498 + $0x10] sm:$0xf]
        %v2504 = vld [vmem:[%s2498 + $0x14] sm:$0xf]
        %v2505 = vld [vmem:[%s2498 + $0x18] sm:$0xf]
        %v2506 = vld [vmem:[%s2498 + $0x1c] sm:$0xf]
        %v2507 = vld [vmem:[%s2498 + $0x20] sm:$0xf]
        %v2508 = vld [vmem:[%s2498 + $0x24] sm:$0xf]
        %v2509 = vld [vmem:[%s2498 + $0x28] sm:$0xf]
        %v2510 = vld [vmem:[%s2498 + $0x2c] sm:$0xf]
        %v2511 = vld [vmem:[%s2498 + $0x30] sm:$0xf]
        %v2512 = vld [vmem:[%s2498 + $0x34] sm:$0xf]
        %v2513 = vld [vmem:[%s2498 + $0x38] sm:$0xf]
        %v2514 = vld [vmem:[%s2498 + $0x3c] sm:$0xf]
        %v2552 = vunpack.c.l.b16 %v2461
        %v2553 = vunpack.c.l.b16 %v2462
        %v2554 = vunpack.c.l.b16 %v2463
        %v2555 = vunpack.c.l.b16 %v2464
        %v2556 = vunpack.c.l.b16 %v2465
        %v2557 = vunpack.c.l.b16 %v2466
        %v2558 = vunpack.c.l.b16 %v2467
        %v2559 = vunpack.c.l.b16 %v2468
        %v2560 = vunpack.c.l.b16 %v2469
        %v2561 = vunpack.c.l.b16 %v2470
        %v2562 = vunpack.c.l.b16 %v2471
        %v2563 = vunpack.c.l.b16 %v2472
        %v2564 = vunpack.c.l.b16 %v2473
        %v2565 = vunpack.c.l.b16 %v2474
        %v2566 = vunpack.c.l.b16 %v2475
        %v2567 = vunpack.c.l.b16 %v2476
        %v2568 = vunpack.c.l.b16 %v2477
        %v2569 = vunpack.c.l.b16 %v2478
        %v2570 = vunpack.c.l.b16 %v2479
        %v2571 = vunpack.c.l.b16 %v2480
        %v2572 = vunpack.c.l.b16 %v2481
        %v2573 = vunpack.c.l.b16 %v2482
        %v2574 = vunpack.c.l.b16 %v2483
        %v2575 = vunpack.c.l.b16 %v2484
        %v2576 = vunpack.c.l.b16 %v2485
        %v2577 = vunpack.c.l.b16 %v2486
        %v2578 = vunpack.c.l.b16 %v2487
        %v2579 = vunpack.c.l.b16 %v2488
        %v2580 = vunpack.c.l.b16 %v2489
        %v2581 = vunpack.c.l.b16 %v2490
        %v2582 = vunpack.c.l.b16 %v2491
        %v2583 = vunpack.c.l.b16 %v2492
        %v2584 = vunpack.c.l.b16 %v2493
        %v2585 = vunpack.c.l.b16 %v2494
        %v2586 = vunpack.c.l.b16 %v2495
        %v2587 = vunpack.c.l.b16 %v2496
        %v2588 = vunpack.c.l.b16 %v2497
        %v2589 = vpack.c.b16 %v2553, %v2552
        %v2590 = vpack.c.b16 %v2555, %v2554
        %v2591 = vpack.c.b16 %v2557, %v2556
        %v2592 = vpack.c.b16 %v2559, %v2558
        %v2593 = vpack.c.b16 %v2561, %v2560
        %v2594 = vpack.c.b16 %v2563, %v2562
        %v2595 = vpack.c.b16 %v2565, %v2564
        %v2596 = vpack.c.b16 %v2567, %v2566
        %v2597 = vpack.c.b16 %v2569, %v2568
        %v2598 = vpack.c.b16 %v2571, %v2570
        %v2599 = vpack.c.b16 %v2573, %v2572
        %v2600 = vpack.c.b16 %v2575, %v2574
        %v2601 = vpack.c.b16 %v2577, %v2576
        %v2602 = vpack.c.b16 %v2579, %v2578
        %v2603 = vpack.c.b16 %v2581, %v2580
        %v2604 = vpack.c.b16 %v2583, %v2582
        %v2605 = vpack.c.b16 %v2585, %v2584
        %v2606 = vpack.c.b16 %v2587, %v2586
        %v2607 = vpack.c.b16 %v2588, %v2588
        %v2608 = vrot.slane %v2589, 2
        %v2609 = vrot.slane %v2590, 2
        %v2610 = vsel %vm2262, %v2608, %v2609
        %v2611 = vrot.slane %v2591, 2
        %v2612 = vsel %vm2262, %v2609, %v2611
        %v2613 = vrot.slane %v2592, 2
        %v2614 = vsel %vm2262, %v2611, %v2613
        %v2615 = vrot.slane %v2593, 2
        %v2616 = vsel %vm2262, %v2613, %v2615
        %v2617 = vrot.slane %v2594, 2
        %v2618 = vsel %vm2262, %v2615, %v2617
        %v2619 = vrot.slane %v2595, 2
        %v2620 = vsel %vm2262, %v2617, %v2619
        %v2621 = vrot.slane %v2596, 2
        %v2622 = vsel %vm2262, %v2619, %v2621
        %v2623 = vrot.slane %v2597, 2
        %v2624 = vsel %vm2262, %v2621, %v2623
        %v2625 = vrot.slane %v2598, 2
        %v2626 = vsel %vm2262, %v2623, %v2625
        %v2627 = vrot.slane %v2599, 2
        %v2628 = vsel %vm2262, %v2625, %v2627
        %v2629 = vrot.slane %v2600, 2
        %v2630 = vsel %vm2262, %v2627, %v2629
        %v2631 = vrot.slane %v2601, 2
        %v2632 = vsel %vm2262, %v2629, %v2631
        %v2633 = vrot.slane %v2602, 2
        %v2634 = vsel %vm2262, %v2631, %v2633
        %v2635 = vrot.slane %v2603, 2
        %v2636 = vsel %vm2262, %v2633, %v2635
        %v2637 = vrot.slane %v2604, 2
        %v2638 = vsel %vm2262, %v2635, %v2637
        %v2639 = vrot.slane %v2605, 2
        %v2640 = vsel %vm2262, %v2637, %v2639
        %v2641 = vrot.slane %v2606, 2
        %v2642 = vsel %vm2262, %v2639, %v2641
        %v2643 = vrot.slane %v2607, 2
        %v2644 = vsel %vm2262, %v2641, %v2643
        %v2679 = vunpack.c.l.b16 %v2499
        %v2680 = vunpack.c.l.b16 %v2500
        %v2681 = vunpack.c.l.b16 %v2501
        %v2682 = vunpack.c.l.b16 %v2502
        %v2683 = vunpack.c.l.b16 %v2503
        %v2684 = vunpack.c.l.b16 %v2504
        %v2685 = vunpack.c.l.b16 %v2505
        %v2686 = vunpack.c.l.b16 %v2506
        %v2687 = vunpack.c.l.b16 %v2507
        %v2688 = vunpack.c.l.b16 %v2508
        %v2689 = vunpack.c.l.b16 %v2509
        %v2690 = vunpack.c.l.b16 %v2510
        %v2691 = vunpack.c.l.b16 %v2511
        %v2692 = vunpack.c.l.b16 %v2512
        %v2693 = vunpack.c.l.b16 %v2513
        %v2694 = vunpack.c.l.b16 %v2514
        %v2695 = vpack.c.b16 %v2680, %v2679
        %v2696 = vpack.c.b16 %v2682, %v2681
        %v2697 = vpack.c.b16 %v2684, %v2683
        %v2698 = vpack.c.b16 %v2686, %v2685
        %v2699 = vpack.c.b16 %v2688, %v2687
        %v2700 = vpack.c.b16 %v2690, %v2689
        %v2701 = vpack.c.b16 %v2692, %v2691
        %v2702 = vpack.c.b16 %v2694, %v2693
        %2711 = vmatpush.bf16.msra.mxu0 %v2702
        %2712 = vmatpush.bf16.msra.mxu0 %v2701
        %2713 = vmatpush.bf16.msra.mxu0 %v2700
        %2714 = vmatpush.bf16.msra.mxu0 %v2699
        %2715 = vmatpush.bf16.msra.mxu0 %v2698
        %2716 = vmatpush.bf16.msra.mxu0 %v2697
        %2717 = vmatpush.bf16.msra.mxu0 %v2696
        %2718 = vmatpush.bf16.msra.mxu0 %v2695
        %2719 = vmatmul.bf16.gmra.mxu0 %v2610
        %v2720 = vpop.f32.mrf.mxu0
        %v2721 = vadd.f32 0.0, %v2720
        %v2722 = vpop.f32.mrf.mxu0
        %v2723 = vadd.f32 0.0, %v2722
        %2724 = vmatmul.bf16.gmra.mxu0 %v2612
        %v2725 = vpop.f32.mrf.mxu0
        %v2726 = vadd.f32 0.0, %v2725
        %v2727 = vpop.f32.mrf.mxu0
        %v2728 = vadd.f32 0.0, %v2727
        %2729 = vmatmul.bf16.gmra.mxu0 %v2614
        %v2730 = vpop.f32.mrf.mxu0
        %v2731 = vadd.f32 0.0, %v2730
        %v2732 = vpop.f32.mrf.mxu0
        %v2733 = vadd.f32 0.0, %v2732
        %2734 = vmatmul.bf16.gmra.mxu0 %v2616
        %v2735 = vpop.f32.mrf.mxu0
        %v2736 = vadd.f32 0.0, %v2735
        %v2737 = vpop.f32.mrf.mxu0
        %v2738 = vadd.f32 0.0, %v2737
        %2739 = vmatmul.bf16.gmra.mxu0 %v2618
        %v2740 = vpop.f32.mrf.mxu0
        %v2741 = vadd.f32 0.0, %v2740
        %v2742 = vpop.f32.mrf.mxu0
        %v2743 = vadd.f32 0.0, %v2742
        %2744 = vmatmul.bf16.gmra.mxu0 %v2620
        %v2745 = vpop.f32.mrf.mxu0
        %v2746 = vadd.f32 0.0, %v2745
        %v2747 = vpop.f32.mrf.mxu0
        %v2748 = vadd.f32 0.0, %v2747
        %2749 = vmatmul.bf16.gmra.mxu0 %v2622
        %v2750 = vpop.f32.mrf.mxu0
        %v2751 = vadd.f32 0.0, %v2750
        %v2752 = vpop.f32.mrf.mxu0
        %v2753 = vadd.f32 0.0, %v2752
        %2754 = vmatmul.bf16.gmra.mxu0 %v2624
        %v2755 = vpop.f32.mrf.mxu0
        %v2756 = vadd.f32 0.0, %v2755
        %v2757 = vpop.f32.mrf.mxu0
        %v2758 = vadd.f32 0.0, %v2757
        %2759 = vmatmul.bf16.gmra.mxu0 %v2626
        %v2760 = vpop.f32.mrf.mxu0
        %v2761 = vpop.f32.mrf.mxu0
        %2762 = vmatmul.bf16.gmra.mxu0 %v2628
        %v2763 = vpop.f32.mrf.mxu0
        %v2764 = vpop.f32.mrf.mxu0
        %2765 = vmatmul.bf16.gmra.mxu0 %v2630
        %v2766 = vpop.f32.mrf.mxu0
        %v2767 = vadd.f32 0.0, %v2766
        %v2768 = vpop.f32.mrf.mxu0
        %v2769 = vadd.f32 0.0, %v2768
        %2770 = vmatmul.bf16.gmra.mxu0 %v2632
        %v2771 = vpop.f32.mrf.mxu0
        %v2772 = vadd.f32 0.0, %v2771
        %v2773 = vpop.f32.mrf.mxu0
        %v2774 = vadd.f32 0.0, %v2773
        %2775 = vmatmul.bf16.gmra.mxu0 %v2634
        %v2776 = vpop.f32.mrf.mxu0
        %v2777 = vadd.f32 0.0, %v2776
        %v2778 = vpop.f32.mrf.mxu0
        %v2779 = vadd.f32 0.0, %v2778
        %2780 = vmatmul.bf16.gmra.mxu0 %v2636
        %v2781 = vpop.f32.mrf.mxu0
        %v2782 = vadd.f32 0.0, %v2781
        %v2783 = vpop.f32.mrf.mxu0
        %v2784 = vadd.f32 0.0, %v2783
        %2785 = vmatmul.bf16.gmra.mxu0 %v2638
        %v2786 = vpop.f32.mrf.mxu0
        %v2787 = vadd.f32 0.0, %v2786
        %v2788 = vpop.f32.mrf.mxu0
        %v2789 = vadd.f32 0.0, %v2788
        %2790 = vmatmul.bf16.gmra.mxu0 %v2640
        %v2791 = vpop.f32.mrf.mxu0
        %v2792 = vadd.f32 0.0, %v2791
        %v2793 = vpop.f32.mrf.mxu0
        %v2794 = vadd.f32 0.0, %v2793
        %2795 = vmatmul.bf16.gmra.mxu0 %v2642
        %v2796 = vpop.f32.mrf.mxu0
        %v2797 = vadd.f32 0.0, %v2796
        %v2798 = vpop.f32.mrf.mxu0
        %v2799 = vadd.f32 0.0, %v2798
        %2800 = vmatmul.bf16.gmra.mxu0 %v2644
        %v2801 = vpop.f32.mrf.mxu0
        %v2802 = vadd.f32 0.0, %v2801
        %v2803 = vpop.f32.mrf.mxu0
        %v2804 = vadd.f32 0.0, %v2803
        %2805 = vdwg.mxu0
        %v2806 = vadd.f32 %v2376, %v2721
        %v2807 = vadd.f32 %v2378, %v2723
        %v2808 = vadd.f32 %v2381, %v2726
        %v2809 = vadd.f32 %v2383, %v2728
        %v2810 = vadd.f32 %v2386, %v2731
        %v2811 = vadd.f32 %v2388, %v2733
        %v2812 = vadd.f32 %v2391, %v2736
        %v2813 = vadd.f32 %v2393, %v2738
        %v2814 = vadd.f32 %v2396, %v2741
        %v2815 = vadd.f32 %v2398, %v2743
        %v2816 = vadd.f32 %v2401, %v2746
        %v2817 = vadd.f32 %v2403, %v2748
        %v2818 = vadd.f32 %v2406, %v2751
        %v2819 = vadd.f32 %v2408, %v2753
        %v2820 = vadd.f32 %v2411, %v2756
        %v2821 = vadd.f32 %v2413, %v2758
        %v2822 = vadd.f32 %v2422, %v2767
        %v2823 = vadd.f32 %v2424, %v2769
        %v2824 = vadd.f32 %v2427, %v2772
        %v2825 = vadd.f32 %v2429, %v2774
        %v2826 = vadd.f32 %v2432, %v2777
        %v2827 = vadd.f32 %v2434, %v2779
        %v2828 = vadd.f32 %v2437, %v2782
        %v2829 = vadd.f32 %v2439, %v2784
        %v2830 = vadd.f32 %v2442, %v2787
        %v2831 = vadd.f32 %v2444, %v2789
        %v2832 = vadd.f32 %v2447, %v2792
        %v2833 = vadd.f32 %v2449, %v2794
        %v2834 = vadd.f32 %v2452, %v2797
        %v2835 = vadd.f32 %v2454, %v2799
        %v2836 = vadd.f32 %v2457, %v2802
        %v2837 = vadd.f32 %v2459, %v2804
        %v2838 = vperm.slane %v354, 1
        %v2839 = vadd.f32 %v2806, %v2838
        %v2840 = vadd.f32 %v2807, %v2838
        %v2841 = vadd.f32 %v2808, %v2838
        %v2842 = vadd.f32 %v2809, %v2838
        %v2843 = vadd.f32 %v2810, %v2838
        %v2844 = vadd.f32 %v2811, %v2838
        %v2845 = vadd.f32 %v2812, %v2838
        %v2846 = vadd.f32 %v2813, %v2838
        %v2847 = vadd.f32 %v2814, %v2838
        %v2848 = vadd.f32 %v2815, %v2838
        %v2849 = vadd.f32 %v2816, %v2838
        %v2850 = vadd.f32 %v2817, %v2838
        %v2851 = vadd.f32 %v2818, %v2838
        %v2852 = vadd.f32 %v2819, %v2838
        %v2853 = vadd.f32 %v2820, %v2838
        %v2854 = vadd.f32 %v2821, %v2838
        %v2855 = vmax.f32 %v2839, 0.0
        %v2856 = vmax.f32 %v2840, 0.0
        %v2857 = vmax.f32 %v2841, 0.0
        %v2858 = vmax.f32 %v2842, 0.0
        %v2859 = vmax.f32 %v2843, 0.0
        %v2860 = vmax.f32 %v2844, 0.0
        %v2861 = vmax.f32 %v2845, 0.0
        %v2862 = vmax.f32 %v2846, 0.0
        %v2863 = vmax.f32 %v2847, 0.0
        %v2864 = vmax.f32 %v2848, 0.0
        %v2865 = vmax.f32 %v2849, 0.0
        %v2866 = vmax.f32 %v2850, 0.0
        %v2867 = vmax.f32 %v2851, 0.0
        %v2868 = vmax.f32 %v2852, 0.0
        %v2869 = vmax.f32 %v2853, 0.0
        %v2870 = vmax.f32 %v2854, 0.0
        %v2871 = vld [vmem:[#allocation2 + $0x10] sm:$0xff]
        %v2872 = vld [vmem:[#allocation2 + $0x18] sm:$0xff]
        %v2873 = vld [vmem:[#allocation2 + $0x20] sm:$0xff]
        %v2874 = vld [vmem:[#allocation2 + $0x28] sm:$0xff]
        %v2875 = vld [vmem:[#allocation2 + $0x30] sm:$0xff]
        %v2876 = vld [vmem:[#allocation2 + $0x38] sm:$0xff]
        %v2877 = vld [vmem:[#allocation2 + $0x40] sm:$0xff]
        %v2878 = vld [vmem:[#allocation2 + $0x48] sm:$0xff]
        %v2879 = vld [vmem:[#allocation2 + $0x50] sm:$0xff]
        %v2880 = vld [vmem:[#allocation2 + $0x58] sm:$0xff]
        %v2881 = vld [vmem:[#allocation2 + $0x60] sm:$0xff]
        %v2882 = vld [vmem:[#allocation2 + $0x68] sm:$0xff]
        %v2883 = vld [vmem:[#allocation2 + $0x70] sm:$0xff]
        %v2884 = vld [vmem:[#allocation2 + $0x78] sm:$0xff]
        %v2885 = vld [vmem:[#allocation2 + $0x80] sm:$0xff]
        %v2886 = vld [vmem:[#allocation2 + $0x88] sm:$0xff]
        %v2887 = vadd.f32 %v2871, %v2855
        %v2888 = vadd.f32 %v2872, %v2856
        %v2889 = vadd.f32 %v2873, %v2857
        %v2890 = vadd.f32 %v2874, %v2858
        %v2891 = vadd.f32 %v2875, %v2859
        %v2892 = vadd.f32 %v2876, %v2860
        %v2893 = vadd.f32 %v2877, %v2861
        %v2894 = vadd.f32 %v2878, %v2862
        %v2895 = vadd.f32 %v2879, %v2863
        %v2896 = vadd.f32 %v2880, %v2864
        %v2897 = vadd.f32 %v2881, %v2865
        %v2898 = vadd.f32 %v2882, %v2866
        %v2899 = vadd.f32 %v2883, %v2867
        %v2900 = vadd.f32 %v2884, %v2868
        %v2901 = vadd.f32 %v2885, %v2869
        %v2902 = vadd.f32 %v2886, %v2870
        %2903 = vst [vmem:[#allocation2 + $0x10] sm:$0xff] %v2887
        %2904 = vst [vmem:[#allocation2 + $0x18] sm:$0xff] %v2888
        %2905 = vst [vmem:[#allocation2 + $0x20] sm:$0xff] %v2889
        %2906 = vst [vmem:[#allocation2 + $0x28] sm:$0xff] %v2890
        %2907 = vst [vmem:[#allocation2 + $0x30] sm:$0xff] %v2891
        %2908 = vst [vmem:[#allocation2 + $0x38] sm:$0xff] %v2892
        %2909 = vst [vmem:[#allocation2 + $0x40] sm:$0xff] %v2893
        %2910 = vst [vmem:[#allocation2 + $0x48] sm:$0xff] %v2894
        %2911 = vst [vmem:[#allocation2 + $0x50] sm:$0xff] %v2895
        %2912 = vst [vmem:[#allocation2 + $0x58] sm:$0xff] %v2896
        %2913 = vst [vmem:[#allocation2 + $0x60] sm:$0xff] %v2897
        %2914 = vst [vmem:[#allocation2 + $0x68] sm:$0xff] %v2898
        %2915 = vst [vmem:[#allocation2 + $0x70] sm:$0xff] %v2899
        %2916 = vst [vmem:[#allocation2 + $0x78] sm:$0xff] %v2900
        %2917 = vst [vmem:[#allocation2 + $0x80] sm:$0xff] %v2901
        %2918 = vst [vmem:[#allocation2 + $0x88] sm:$0xff] %v2902
        %v2919 = vperm.slane %v355, 1
        %v2920 = vadd.f32 %v2822, %v2919
        %v2921 = vadd.f32 %v2823, %v2919
        %v2922 = vadd.f32 %v2824, %v2919
        %v2923 = vadd.f32 %v2825, %v2919
        %v2924 = vadd.f32 %v2826, %v2919
        %v2925 = vadd.f32 %v2827, %v2919
        %v2926 = vadd.f32 %v2828, %v2919
        %v2927 = vadd.f32 %v2829, %v2919
        %v2928 = vadd.f32 %v2830, %v2919
        %v2929 = vadd.f32 %v2831, %v2919
        %v2930 = vadd.f32 %v2832, %v2919
        %v2931 = vadd.f32 %v2833, %v2919
        %v2932 = vadd.f32 %v2834, %v2919
        %v2933 = vadd.f32 %v2835, %v2919
        %v2934 = vadd.f32 %v2836, %v2919
        %v2935 = vadd.f32 %v2837, %v2919
        %v2936 = vmax.f32 %v2920, 0.0
        %v2937 = vmax.f32 %v2921, 0.0
        %v2938 = vmax.f32 %v2922, 0.0
        %v2939 = vmax.f32 %v2923, 0.0
        %v2940 = vmax.f32 %v2924, 0.0
        %v2941 = vmax.f32 %v2925, 0.0
        %v2942 = vmax.f32 %v2926, 0.0
        %v2943 = vmax.f32 %v2927, 0.0
        %v2944 = vmax.f32 %v2928, 0.0
        %v2945 = vmax.f32 %v2929, 0.0
        %v2946 = vmax.f32 %v2930, 0.0
        %v2947 = vmax.f32 %v2931, 0.0
        %v2948 = vmax.f32 %v2932, 0.0
        %v2949 = vmax.f32 %v2933, 0.0
        %v2950 = vmax.f32 %v2934, 0.0
        %v2951 = vmax.f32 %v2935, 0.0
        %v2952 = vld [vmem:[#allocation2 + $0xb0] sm:$0xff]
        %v2953 = vld [vmem:[#allocation2 + $0xb8] sm:$0xff]
        %v2954 = vld [vmem:[#allocation2 + $0xc0] sm:$0xff]
        %v2955 = vld [vmem:[#allocation2 + $0xc8] sm:$0xff]
        %v2956 = vld [vmem:[#allocation2 + $0xd0] sm:$0xff]
        %v2957 = vld [vmem:[#allocation2 + $0xd8] sm:$0xff]
        %v2958 = vld [vmem:[#allocation2 + $0xe0] sm:$0xff]
        %v2959 = vld [vmem:[#allocation2 + $0xe8] sm:$0xff]
        %v2960 = vld [vmem:[#allocation2 + $0xf0] sm:$0xff]
        %v2961 = vld [vmem:[#allocation2 + $0xf8] sm:$0xff]
        %v2962 = vld [vmem:[#allocation2 + $0x100] sm:$0xff]
        %v2963 = vld [vmem:[#allocation2 + $0x108] sm:$0xff]
        %v2964 = vld [vmem:[#allocation2 + $0x110] sm:$0xff]
        %v2965 = vld [vmem:[#allocation2 + $0x118] sm:$0xff]
        %v2966 = vld [vmem:[#allocation2 + $0x120] sm:$0xff]
        %v2967 = vld [vmem:[#allocation2 + $0x128] sm:$0xff]
        %v2968 = vadd.f32 %v2952, %v2936
        %v2969 = vadd.f32 %v2953, %v2937
        %v2970 = vadd.f32 %v2954, %v2938
        %v2971 = vadd.f32 %v2955, %v2939
        %v2972 = vadd.f32 %v2956, %v2940
        %v2973 = vadd.f32 %v2957, %v2941
        %v2974 = vadd.f32 %v2958, %v2942
        %v2975 = vadd.f32 %v2959, %v2943
        %v2976 = vadd.f32 %v2960, %v2944
        %v2977 = vadd.f32 %v2961, %v2945
        %v2978 = vadd.f32 %v2962, %v2946
        %v2979 = vadd.f32 %v2963, %v2947
        %v2980 = vadd.f32 %v2964, %v2948
        %v2981 = vadd.f32 %v2965, %v2949
        %v2982 = vadd.f32 %v2966, %v2950
        %v2983 = vadd.f32 %v2967, %v2951
        %2984 = vst [vmem:[#allocation2 + $0xb0] sm:$0xff] %v2968
        %2985 = vst [vmem:[#allocation2 + $0xb8] sm:$0xff] %v2969
        %2986 = vst [vmem:[#allocation2 + $0xc0] sm:$0xff] %v2970
        %2987 = vst [vmem:[#allocation2 + $0xc8] sm:$0xff] %v2971
        %2988 = vst [vmem:[#allocation2 + $0xd0] sm:$0xff] %v2972
        %2989 = vst [vmem:[#allocation2 + $0xd8] sm:$0xff] %v2973
        %2990 = vst [vmem:[#allocation2 + $0xe0] sm:$0xff] %v2974
        %2991 = vst [vmem:[#allocation2 + $0xe8] sm:$0xff] %v2975
        %2992 = vst [vmem:[#allocation2 + $0xf0] sm:$0xff] %v2976
        %2993 = vst [vmem:[#allocation2 + $0xf8] sm:$0xff] %v2977
        %2994 = vst [vmem:[#allocation2 + $0x100] sm:$0xff] %v2978
        %2995 = vst [vmem:[#allocation2 + $0x108] sm:$0xff] %v2979
        %2996 = vst [vmem:[#allocation2 + $0x110] sm:$0xff] %v2980
        %2997 = vst [vmem:[#allocation2 + $0x118] sm:$0xff] %v2981
        %2998 = vst [vmem:[#allocation2 + $0x120] sm:$0xff] %v2982
        %2999 = vst [vmem:[#allocation2 + $0x128] sm:$0xff] %v2983
        %v3000 = vld [vmem:[%s7] sm:$0xff]
        %v3001 = vld [vmem:[%s7 + $0x8] sm:$0x7f]
        %s3002 = smul.u32 %s23, 2
        %v3003 = vld [vmem:[#allocation2 + $0x29] sm:$0xff]
        %v3004 = vld [vmem:[#allocation2 + $0x31] sm:$0xff]
        %v3005 = vld [vmem:[#allocation2 + $0x39] sm:$0xff]
        %v3006 = vld [vmem:[#allocation2 + $0x41] sm:$0xff]
        %v3007 = vld [vmem:[#allocation2 + $0x49] sm:$0xff]
        %v3008 = vld [vmem:[#allocation2 + $0x51] sm:$0xff]
        %v3009 = vld [vmem:[#allocation2 + $0x59] sm:$0xff]
        %v3010 = vld [vmem:[#allocation2 + $0x61] sm:$0xff]
        %v3011 = vperm.slane %v3000, 0
        %v3012 = vmul.f32 %v3003, %v3011
        %v3013 = vmul.f32 %v3004, %v3011
        %v3014 = vmul.f32 %v3005, %v3011
        %v3015 = vmul.f32 %v3006, %v3011
        %v3016 = vmul.f32 %v3007, %v3011
        %v3017 = vmul.f32 %v3008, %v3011
        %v3018 = vmul.f32 %v3009, %v3011
        %v3019 = vmul.f32 %v3010, %v3011
        %v3020 = vld [vmem:[#allocation2 + $0x2a] sm:$0xff]
        %v3021 = vld [vmem:[#allocation2 + $0x32] sm:$0xff]
        %v3022 = vld [vmem:[#allocation2 + $0x3a] sm:$0xff]
        %v3023 = vld [vmem:[#allocation2 + $0x42] sm:$0xff]
        %v3024 = vld [vmem:[#allocation2 + $0x4a] sm:$0xff]
        %v3025 = vld [vmem:[#allocation2 + $0x52] sm:$0xff]
        %v3026 = vld [vmem:[#allocation2 + $0x5a] sm:$0xff]
        %v3027 = vld [vmem:[#allocation2 + $0x62] sm:$0xff]
        %v3028 = vperm.slane %v3000, 1
        %v3029 = vmul.f32 %v3020, %v3028
        %v3030 = vmul.f32 %v3021, %v3028
        %v3031 = vmul.f32 %v3022, %v3028
        %v3032 = vmul.f32 %v3023, %v3028
        %v3033 = vmul.f32 %v3024, %v3028
        %v3034 = vmul.f32 %v3025, %v3028
        %v3035 = vmul.f32 %v3026, %v3028
        %v3036 = vmul.f32 %v3027, %v3028
        %v3037 = vadd.f32 %v3012, %v3029
        %v3038 = vadd.f32 %v3013, %v3030
        %v3039 = vadd.f32 %v3014, %v3031
        %v3040 = vadd.f32 %v3015, %v3032
        %v3041 = vadd.f32 %v3016, %v3033
        %v3042 = vadd.f32 %v3017, %v3034
        %v3043 = vadd.f32 %v3018, %v3035
        %v3044 = vadd.f32 %v3019, %v3036
        %v3045 = vld [vmem:[#allocation2 + $0x2b] sm:$0xff]
        %v3046 = vld [vmem:[#allocation2 + $0x33] sm:$0xff]
        %v3047 = vld [vmem:[#allocation2 + $0x3b] sm:$0xff]
        %v3048 = vld [vmem:[#allocation2 + $0x43] sm:$0xff]
        %v3049 = vld [vmem:[#allocation2 + $0x4b] sm:$0xff]
        %v3050 = vld [vmem:[#allocation2 + $0x53] sm:$0xff]
        %v3051 = vld [vmem:[#allocation2 + $0x5b] sm:$0xff]
        %v3052 = vld [vmem:[#allocation2 + $0x63] sm:$0xff]
        %v3053 = vperm.slane %v3000, 2
        %v3054 = vmul.f32 %v3045, %v3053
        %v3055 = vmul.f32 %v3046, %v3053
        %v3056 = vmul.f32 %v3047, %v3053
        %v3057 = vmul.f32 %v3048, %v3053
        %v3058 = vmul.f32 %v3049, %v3053
        %v3059 = vmul.f32 %v3050, %v3053
        %v3060 = vmul.f32 %v3051, %v3053
        %v3061 = vmul.f32 %v3052, %v3053
        %v3062 = vadd.f32 %v3037, %v3054
        %v3063 = vadd.f32 %v3038, %v3055
        %v3064 = vadd.f32 %v3039, %v3056
        %v3065 = vadd.f32 %v3040, %v3057
        %v3066 = vadd.f32 %v3041, %v3058
        %v3067 = vadd.f32 %v3042, %v3059
        %v3068 = vadd.f32 %v3043, %v3060
        %v3069 = vadd.f32 %v3044, %v3061
        %v3070 = vld [vmem:[#allocation2 + $0x2c] sm:$0xff]
        %v3071 = vld [vmem:[#allocation2 + $0x34] sm:$0xff]
        %v3072 = vld [vmem:[#allocation2 + $0x3c] sm:$0xff]
        %v3073 = vld [vmem:[#allocation2 + $0x44] sm:$0xff]
        %v3074 = vld [vmem:[#allocation2 + $0x4c] sm:$0xff]
        %v3075 = vld [vmem:[#allocation2 + $0x54] sm:$0xff]
        %v3076 = vld [vmem:[#allocation2 + $0x5c] sm:$0xff]
        %v3077 = vld [vmem:[#allocation2 + $0x64] sm:$0xff]
        %v3078 = vperm.slane %v3000, 3
        %v3079 = vmul.f32 %v3070, %v3078
        %v3080 = vmul.f32 %v3071, %v3078
        %v3081 = vmul.f32 %v3072, %v3078
        %v3082 = vmul.f32 %v3073, %v3078
        %v3083 = vmul.f32 %v3074, %v3078
        %v3084 = vmul.f32 %v3075, %v3078
        %v3085 = vmul.f32 %v3076, %v3078
        %v3086 = vmul.f32 %v3077, %v3078
        %v3087 = vadd.f32 %v3062, %v3079
        %v3088 = vadd.f32 %v3063, %v3080
        %v3089 = vadd.f32 %v3064, %v3081
        %v3090 = vadd.f32 %v3065, %v3082
        %v3091 = vadd.f32 %v3066, %v3083
        %v3092 = vadd.f32 %v3067, %v3084
        %v3093 = vadd.f32 %v3068, %v3085
        %v3094 = vadd.f32 %v3069, %v3086
        %v3095 = vld [vmem:[#allocation2 + $0x2d] sm:$0xff]
        %v3096 = vld [vmem:[#allocation2 + $0x35] sm:$0xff]
        %v3097 = vld [vmem:[#allocation2 + $0x3d] sm:$0xff]
        %v3098 = vld [vmem:[#allocation2 + $0x45] sm:$0xff]
        %v3099 = vld [vmem:[#allocation2 + $0x4d] sm:$0xff]
        %v3100 = vld [vmem:[#allocation2 + $0x55] sm:$0xff]
        %v3101 = vld [vmem:[#allocation2 + $0x5d] sm:$0xff]
        %v3102 = vld [vmem:[#allocation2 + $0x65] sm:$0xff]
        %v3103 = vperm.slane %v3000, 4
        %v3104 = vmul.f32 %v3095, %v3103
        %v3105 = vmul.f32 %v3096, %v3103
        %v3106 = vmul.f32 %v3097, %v3103
        %v3107 = vmul.f32 %v3098, %v3103
        %v3108 = vmul.f32 %v3099, %v3103
        %v3109 = vmul.f32 %v3100, %v3103
        %v3110 = vmul.f32 %v3101, %v3103
        %v3111 = vmul.f32 %v3102, %v3103
        %v3112 = vadd.f32 %v3087, %v3104
        %v3113 = vadd.f32 %v3088, %v3105
        %v3114 = vadd.f32 %v3089, %v3106
        %v3115 = vadd.f32 %v3090, %v3107
        %v3116 = vadd.f32 %v3091, %v3108
        %v3117 = vadd.f32 %v3092, %v3109
        %v3118 = vadd.f32 %v3093, %v3110
        %v3119 = vadd.f32 %v3094, %v3111
        %v3120 = vld [vmem:[#allocation2 + $0x2e] sm:$0xff]
        %v3121 = vld [vmem:[#allocation2 + $0x36] sm:$0xff]
        %v3122 = vld [vmem:[#allocation2 + $0x3e] sm:$0xff]
        %v3123 = vld [vmem:[#allocation2 + $0x46] sm:$0xff]
        %v3124 = vld [vmem:[#allocation2 + $0x4e] sm:$0xff]
        %v3125 = vld [vmem:[#allocation2 + $0x56] sm:$0xff]
        %v3126 = vld [vmem:[#allocation2 + $0x5e] sm:$0xff]
        %v3127 = vld [vmem:[#allocation2 + $0x66] sm:$0xff]
        %v3128 = vperm.slane %v3000, 5
        %v3129 = vmul.f32 %v3120, %v3128
        %v3130 = vmul.f32 %v3121, %v3128
        %v3131 = vmul.f32 %v3122, %v3128
        %v3132 = vmul.f32 %v3123, %v3128
        %v3133 = vmul.f32 %v3124, %v3128
        %v3134 = vmul.f32 %v3125, %v3128
        %v3135 = vmul.f32 %v3126, %v3128
        %v3136 = vmul.f32 %v3127, %v3128
        %v3137 = vadd.f32 %v3112, %v3129
        %v3138 = vadd.f32 %v3113, %v3130
        %v3139 = vadd.f32 %v3114, %v3131
        %v3140 = vadd.f32 %v3115, %v3132
        %v3141 = vadd.f32 %v3116, %v3133
        %v3142 = vadd.f32 %v3117, %v3134
        %v3143 = vadd.f32 %v3118, %v3135
        %v3144 = vadd.f32 %v3119, %v3136
        %v3145 = vld [vmem:[#allocation2 + $0x2f] sm:$0xff]
        %v3146 = vld [vmem:[#allocation2 + $0x37] sm:$0xff]
        %v3147 = vld [vmem:[#allocation2 + $0x3f] sm:$0xff]
        %v3148 = vld [vmem:[#allocation2 + $0x47] sm:$0xff]
        %v3149 = vld [vmem:[#allocation2 + $0x4f] sm:$0xff]
        %v3150 = vld [vmem:[#allocation2 + $0x57] sm:$0xff]
        %v3151 = vld [vmem:[#allocation2 + $0x5f] sm:$0xff]
        %v3152 = vld [vmem:[#allocation2 + $0x67] sm:$0xff]
        %v3153 = vperm.slane %v3000, 6
        %v3154 = vmul.f32 %v3145, %v3153
        %v3155 = vmul.f32 %v3146, %v3153
        %v3156 = vmul.f32 %v3147, %v3153
        %v3157 = vmul.f32 %v3148, %v3153
        %v3158 = vmul.f32 %v3149, %v3153
        %v3159 = vmul.f32 %v3150, %v3153
        %v3160 = vmul.f32 %v3151, %v3153
        %v3161 = vmul.f32 %v3152, %v3153
        %v3162 = vadd.f32 %v3137, %v3154
        %v3163 = vadd.f32 %v3138, %v3155
        %v3164 = vadd.f32 %v3139, %v3156
        %v3165 = vadd.f32 %v3140, %v3157
        %v3166 = vadd.f32 %v3141, %v3158
        %v3167 = vadd.f32 %v3142, %v3159
        %v3168 = vadd.f32 %v3143, %v3160
        %v3169 = vadd.f32 %v3144, %v3161
        %v3170 = vld [vmem:[#allocation2 + $0x30] sm:$0xff]
        %v3171 = vld [vmem:[#allocation2 + $0x38] sm:$0xff]
        %v3172 = vld [vmem:[#allocation2 + $0x40] sm:$0xff]
        %v3173 = vld [vmem:[#allocation2 + $0x48] sm:$0xff]
        %v3174 = vld [vmem:[#allocation2 + $0x50] sm:$0xff]
        %v3175 = vld [vmem:[#allocation2 + $0x58] sm:$0xff]
        %v3176 = vld [vmem:[#allocation2 + $0x60] sm:$0xff]
        %v3177 = vld [vmem:[#allocation2 + $0x68] sm:$0xff]
        %v3178 = vperm.slane %v3000, 7
        %v3179 = vmul.f32 %v3170, %v3178
        %v3180 = vmul.f32 %v3171, %v3178
        %v3181 = vmul.f32 %v3172, %v3178
        %v3182 = vmul.f32 %v3173, %v3178
        %v3183 = vmul.f32 %v3174, %v3178
        %v3184 = vmul.f32 %v3175, %v3178
        %v3185 = vmul.f32 %v3176, %v3178
        %v3186 = vmul.f32 %v3177, %v3178
        %v3187 = vadd.f32 %v3162, %v3179
        %v3188 = vadd.f32 %v3163, %v3180
        %v3189 = vadd.f32 %v3164, %v3181
        %v3190 = vadd.f32 %v3165, %v3182
        %v3191 = vadd.f32 %v3166, %v3183
        %v3192 = vadd.f32 %v3167, %v3184
        %v3193 = vadd.f32 %v3168, %v3185
        %v3194 = vadd.f32 %v3169, %v3186
        %v3195 = vld [vmem:[#allocation2 + $0x69] sm:$0xff]
        %v3196 = vperm.slane %v3001, 0
        %v3197 = vmul.f32 %v3004, %v3196
        %v3198 = vmul.f32 %v3005, %v3196
        %v3199 = vmul.f32 %v3006, %v3196
        %v3200 = vmul.f32 %v3007, %v3196
        %v3201 = vmul.f32 %v3008, %v3196
        %v3202 = vmul.f32 %v3009, %v3196
        %v3203 = vmul.f32 %v3010, %v3196
        %v3204 = vmul.f32 %v3195, %v3196
        %v3205 = vadd.f32 %v3187, %v3197
        %v3206 = vadd.f32 %v3188, %v3198
        %v3207 = vadd.f32 %v3189, %v3199
        %v3208 = vadd.f32 %v3190, %v3200
        %v3209 = vadd.f32 %v3191, %v3201
        %v3210 = vadd.f32 %v3192, %v3202
        %v3211 = vadd.f32 %v3193, %v3203
        %v3212 = vadd.f32 %v3194, %v3204
        %v3213 = vld [vmem:[#allocation2 + $0x6a] sm:$0xff]
        %v3214 = vperm.slane %v3001, 1
        %v3215 = vmul.f32 %v3021, %v3214
        %v3216 = vmul.f32 %v3022, %v3214
        %v3217 = vmul.f32 %v3023, %v3214
        %v3218 = vmul.f32 %v3024, %v3214
        %v3219 = vmul.f32 %v3025, %v3214
        %v3220 = vmul.f32 %v3026, %v3214
        %v3221 = vmul.f32 %v3027, %v3214
        %v3222 = vmul.f32 %v3213, %v3214
        %v3223 = vadd.f32 %v3205, %v3215
        %v3224 = vadd.f32 %v3206, %v3216
        %v3225 = vadd.f32 %v3207, %v3217
        %v3226 = vadd.f32 %v3208, %v3218
        %v3227 = vadd.f32 %v3209, %v3219
        %v3228 = vadd.f32 %v3210, %v3220
        %v3229 = vadd.f32 %v3211, %v3221
        %v3230 = vadd.f32 %v3212, %v3222
        %v3231 = vld [vmem:[#allocation2 + $0x6b] sm:$0xff]
        %v3232 = vperm.slane %v3001, 2
        %v3233 = vmul.f32 %v3046, %v3232
        %v3234 = vmul.f32 %v3047, %v3232
        %v3235 = vmul.f32 %v3048, %v3232
        %v3236 = vmul.f32 %v3049, %v3232
        %v3237 = vmul.f32 %v3050, %v3232
        %v3238 = vmul.f32 %v3051, %v3232
        %v3239 = vmul.f32 %v3052, %v3232
        %v3240 = vmul.f32 %v3231, %v3232
        %v3241 = vadd.f32 %v3223, %v3233
        %v3242 = vadd.f32 %v3224, %v3234
        %v3243 = vadd.f32 %v3225, %v3235
        %v3244 = vadd.f32 %v3226, %v3236
        %v3245 = vadd.f32 %v3227, %v3237
        %v3246 = vadd.f32 %v3228, %v3238
        %v3247 = vadd.f32 %v3229, %v3239
        %v3248 = vadd.f32 %v3230, %v3240
        %v3249 = vld [vmem:[#allocation2 + $0x6c] sm:$0xff]
        %v3250 = vperm.slane %v3001, 3
        %v3251 = vmul.f32 %v3071, %v3250
        %v3252 = vmul.f32 %v3072, %v3250
        %v3253 = vmul.f32 %v3073, %v3250
        %v3254 = vmul.f32 %v3074, %v3250
        %v3255 = vmul.f32 %v3075, %v3250
        %v3256 = vmul.f32 %v3076, %v3250
        %v3257 = vmul.f32 %v3077, %v3250
        %v3258 = vmul.f32 %v3249, %v3250
        %v3259 = vadd.f32 %v3241, %v3251
        %v3260 = vadd.f32 %v3242, %v3252
        %v3261 = vadd.f32 %v3243, %v3253
        %v3262 = vadd.f32 %v3244, %v3254
        %v3263 = vadd.f32 %v3245, %v3255
        %v3264 = vadd.f32 %v3246, %v3256
        %v3265 = vadd.f32 %v3247, %v3257
        %v3266 = vadd.f32 %v3248, %v3258
        %v3267 = vld [vmem:[#allocation2 + $0x6d] sm:$0xff]
        %v3268 = vperm.slane %v3001, 4
        %v3269 = vmul.f32 %v3096, %v3268
        %v3270 = vmul.f32 %v3097, %v3268
        %v3271 = vmul.f32 %v3098, %v3268
        %v3272 = vmul.f32 %v3099, %v3268
        %v3273 = vmul.f32 %v3100, %v3268
        %v3274 = vmul.f32 %v3101, %v3268
        %v3275 = vmul.f32 %v3102, %v3268
        %v3276 = vmul.f32 %v3267, %v3268
        %v3277 = vadd.f32 %v3259, %v3269
        %v3278 = vadd.f32 %v3260, %v3270
        %v3279 = vadd.f32 %v3261, %v3271
        %v3280 = vadd.f32 %v3262, %v3272
        %v3281 = vadd.f32 %v3263, %v3273
        %v3282 = vadd.f32 %v3264, %v3274
        %v3283 = vadd.f32 %v3265, %v3275
        %v3284 = vadd.f32 %v3266, %v3276
        %v3285 = vld [vmem:[#allocation2 + $0x6e] sm:$0xff]
        %v3286 = vperm.slane %v3001, 5
        %v3287 = vmul.f32 %v3121, %v3286
        %v3288 = vmul.f32 %v3122, %v3286
        %v3289 = vmul.f32 %v3123, %v3286
        %v3290 = vmul.f32 %v3124, %v3286
        %v3291 = vmul.f32 %v3125, %v3286
        %v3292 = vmul.f32 %v3126, %v3286
        %v3293 = vmul.f32 %v3127, %v3286
        %v3294 = vmul.f32 %v3285, %v3286
        %v3295 = vadd.f32 %v3277, %v3287
        %v3296 = vadd.f32 %v3278, %v3288
        %v3297 = vadd.f32 %v3279, %v3289
        %v3298 = vadd.f32 %v3280, %v3290
        %v3299 = vadd.f32 %v3281, %v3291
        %v3300 = vadd.f32 %v3282, %v3292
        %v3301 = vadd.f32 %v3283, %v3293
        %v3302 = vadd.f32 %v3284, %v3294
        %v3303 = vld [vmem:[#allocation2 + $0x6f] sm:$0xff]
        %v3304 = vperm.slane %v3001, 6
        %v3305 = vmul.f32 %v3146, %v3304
        %v3306 = vmul.f32 %v3147, %v3304
        %v3307 = vmul.f32 %v3148, %v3304
        %v3308 = vmul.f32 %v3149, %v3304
        %v3309 = vmul.f32 %v3150, %v3304
        %v3310 = vmul.f32 %v3151, %v3304
        %v3311 = vmul.f32 %v3152, %v3304
        %v3312 = vmul.f32 %v3303, %v3304
        %v3313 = vadd.f32 %v3295, %v3305
        %v3314 = vadd.f32 %v3296, %v3306
        %v3315 = vadd.f32 %v3297, %v3307
        %v3316 = vadd.f32 %v3298, %v3308
        %v3317 = vadd.f32 %v3299, %v3309
        %v3318 = vadd.f32 %v3300, %v3310
        %v3319 = vadd.f32 %v3301, %v3311
        %v3320 = vadd.f32 %v3302, %v3312
        %3321 = vadd.xlane.f32.xlu0 %v3313
        %v3322 = vpop.xlane.xlu0 %3321
        %3323 = vadd.xlane.f32.xlu0 %v3314
        %v3324 = vpop.xlane.xlu0 %3323
        %3325 = vadd.xlane.f32.xlu0 %v3315
        %v3326 = vpop.xlane.xlu0 %3325
        %3327 = vadd.xlane.f32.xlu0 %v3316
        %v3328 = vpop.xlane.xlu0 %3327
        %3329 = vadd.xlane.f32.xlu0 %v3317
        %v3330 = vpop.xlane.xlu0 %3329
        %3331 = vadd.xlane.f32.xlu0 %v3318
        %v3332 = vpop.xlane.xlu0 %3331
        %3333 = vadd.xlane.f32.xlu0 %v3319
        %v3334 = vpop.xlane.xlu0 %3333
        %3335 = vadd.xlane.f32.xlu0 %v3320
        %v3336 = vpop.xlane.xlu0 %3335
        %s3337 = smul.u32 %s3002, 128
        %s3338 = sld [smem:[#allocation4 + %s3337]]
        %v3339 = vstv %s3338
        %v3340 = vadd.f32 %v3339, %v3322
        %v3341 = vadd.f32 %v3339, %v3324
        %v3342 = vadd.f32 %v3339, %v3326
        %v3343 = vadd.f32 %v3339, %v3328
        %v3344 = vadd.f32 %v3339, %v3330
        %v3345 = vadd.f32 %v3339, %v3332
        %v3346 = vadd.f32 %v3339, %v3334
        %v3347 = vadd.f32 %v3339, %v3336
        %v3356 = vlaneseq
        %v3357 = vand.u32 %v3356, 127
        %v3358 = vperm.slane %v3340, %v3357
        %v3359 = vadd.s32 %v3357, 4294967288
        %v3360 = vperm.slane %v3341, %v3359
        %vm3361 = vcmask 130112
        %v3362 = vsel %vm3361, %v3360, %v3358
        %v3363 = vadd.s32 %v3357, 4294967280
        %v3364 = vperm.slane %v3342, %v3363
        %vm3365 = vcmask 195712
        %v3366 = vsel %vm3365, %v3364, %v3362
        %v3367 = vadd.s32 %v3357, 4294967272
        %v3368 = vperm.slane %v3343, %v3367
        %vm3369 = vcmask 261312
        %v3370 = vsel %vm3369, %v3368, %v3366
        %v3371 = vadd.s32 %v3357, 4294967264
        %v3372 = vperm.slane %v3344, %v3371
        %vm3373 = vcmask 326912
        %v3374 = vsel %vm3373, %v3372, %v3370
        %v3375 = vadd.s32 %v3357, 4294967256
        %v3376 = vperm.slane %v3345, %v3375
        %vm3377 = vcmask 392512
        %v3378 = vsel %vm3377, %v3376, %v3374
        %v3379 = vadd.s32 %v3357, 4294967248
        %v3380 = vperm.slane %v3346, %v3379
        %vm3381 = vcmask 458112
        %v3382 = vsel %vm3381, %v3380, %v3378
        %v3383 = vadd.s32 %v3357, 4294967240
        %v3384 = vperm.slane %v3347, %v3383
        %vm3385 = vcmask 523712
        %v3386 = vsel %vm3385, %v3384, %v3382
        %vm3388 = vcmask 516096
        %3389 = vst.msk [vmem:[%s331] sm:$0x1] %vm3388, %v3386
        %v3390 = vld [vmem:[#allocation2 + $0xc9] sm:$0xff]
        %v3391 = vld [vmem:[#allocation2 + $0xd1] sm:$0xff]
        %v3392 = vld [vmem:[#allocation2 + $0xd9] sm:$0xff]
        %v3393 = vld [vmem:[#allocation2 + $0xe1] sm:$0xff]
        %v3394 = vld [vmem:[#allocation2 + $0xe9] sm:$0xff]
        %v3395 = vld [vmem:[#allocation2 + $0xf1] sm:$0xff]
        %v3396 = vld [vmem:[#allocation2 + $0xf9] sm:$0xff]
        %v3397 = vld [vmem:[#allocation2 + $0x101] sm:$0xff]
        %v3398 = vmul.f32 %v3390, %v3011
        %v3399 = vmul.f32 %v3391, %v3011
        %v3400 = vmul.f32 %v3392, %v3011
        %v3401 = vmul.f32 %v3393, %v3011
        %v3402 = vmul.f32 %v3394, %v3011
        %v3403 = vmul.f32 %v3395, %v3011
        %v3404 = vmul.f32 %v3396, %v3011
        %v3405 = vmul.f32 %v3397, %v3011
        %v3406 = vld [vmem:[#allocation2 + $0xca] sm:$0xff]
        %v3407 = vld [vmem:[#allocation2 + $0xd2] sm:$0xff]
        %v3408 = vld [vmem:[#allocation2 + $0xda] sm:$0xff]
        %v3409 = vld [vmem:[#allocation2 + $0xe2] sm:$0xff]
        %v3410 = vld [vmem:[#allocation2 + $0xea] sm:$0xff]
        %v3411 = vld [vmem:[#allocation2 + $0xf2] sm:$0xff]
        %v3412 = vld [vmem:[#allocation2 + $0xfa] sm:$0xff]
        %v3413 = vld [vmem:[#allocation2 + $0x102] sm:$0xff]
        %v3414 = vmul.f32 %v3406, %v3028
        %v3415 = vmul.f32 %v3407, %v3028
        %v3416 = vmul.f32 %v3408, %v3028
        %v3417 = vmul.f32 %v3409, %v3028
        %v3418 = vmul.f32 %v3410, %v3028
        %v3419 = vmul.f32 %v3411, %v3028
        %v3420 = vmul.f32 %v3412, %v3028
        %v3421 = vmul.f32 %v3413, %v3028
        %v3422 = vadd.f32 %v3398, %v3414
        %v3423 = vadd.f32 %v3399, %v3415
        %v3424 = vadd.f32 %v3400, %v3416
        %v3425 = vadd.f32 %v3401, %v3417
        %v3426 = vadd.f32 %v3402, %v3418
        %v3427 = vadd.f32 %v3403, %v3419
        %v3428 = vadd.f32 %v3404, %v3420
        %v3429 = vadd.f32 %v3405, %v3421
        %v3430 = vld [vmem:[#allocation2 + $0xcb] sm:$0xff]
        %v3431 = vld [vmem:[#allocation2 + $0xd3] sm:$0xff]
        %v3432 = vld [vmem:[#allocation2 + $0xdb] sm:$0xff]
        %v3433 = vld [vmem:[#allocation2 + $0xe3] sm:$0xff]
        %v3434 = vld [vmem:[#allocation2 + $0xeb] sm:$0xff]
        %v3435 = vld [vmem:[#allocation2 + $0xf3] sm:$0xff]
        %v3436 = vld [vmem:[#allocation2 + $0xfb] sm:$0xff]
        %v3437 = vld [vmem:[#allocation2 + $0x103] sm:$0xff]
        %v3438 = vmul.f32 %v3430, %v3053
        %v3439 = vmul.f32 %v3431, %v3053
        %v3440 = vmul.f32 %v3432, %v3053
        %v3441 = vmul.f32 %v3433, %v3053
        %v3442 = vmul.f32 %v3434, %v3053
        %v3443 = vmul.f32 %v3435, %v3053
        %v3444 = vmul.f32 %v3436, %v3053
        %v3445 = vmul.f32 %v3437, %v3053
        %v3446 = vadd.f32 %v3422, %v3438
        %v3447 = vadd.f32 %v3423, %v3439
        %v3448 = vadd.f32 %v3424, %v3440
        %v3449 = vadd.f32 %v3425, %v3441
        %v3450 = vadd.f32 %v3426, %v3442
        %v3451 = vadd.f32 %v3427, %v3443
        %v3452 = vadd.f32 %v3428, %v3444
        %v3453 = vadd.f32 %v3429, %v3445
        %v3454 = vld [vmem:[#allocation2 + $0xcc] sm:$0xff]
        %v3455 = vld [vmem:[#allocation2 + $0xd4] sm:$0xff]
        %v3456 = vld [vmem:[#allocation2 + $0xdc] sm:$0xff]
        %v3457 = vld [vmem:[#allocation2 + $0xe4] sm:$0xff]
        %v3458 = vld [vmem:[#allocation2 + $0xec] sm:$0xff]
        %v3459 = vld [vmem:[#allocation2 + $0xf4] sm:$0xff]
        %v3460 = vld [vmem:[#allocation2 + $0xfc] sm:$0xff]
        %v3461 = vld [vmem:[#allocation2 + $0x104] sm:$0xff]
        %v3462 = vmul.f32 %v3454, %v3078
        %v3463 = vmul.f32 %v3455, %v3078
        %v3464 = vmul.f32 %v3456, %v3078
        %v3465 = vmul.f32 %v3457, %v3078
        %v3466 = vmul.f32 %v3458, %v3078
        %v3467 = vmul.f32 %v3459, %v3078
        %v3468 = vmul.f32 %v3460, %v3078
        %v3469 = vmul.f32 %v3461, %v3078
        %v3470 = vadd.f32 %v3446, %v3462
        %v3471 = vadd.f32 %v3447, %v3463
        %v3472 = vadd.f32 %v3448, %v3464
        %v3473 = vadd.f32 %v3449, %v3465
        %v3474 = vadd.f32 %v3450, %v3466
        %v3475 = vadd.f32 %v3451, %v3467
        %v3476 = vadd.f32 %v3452, %v3468
        %v3477 = vadd.f32 %v3453, %v3469
        %v3478 = vld [vmem:[#allocation2 + $0xcd] sm:$0xff]
        %v3479 = vld [vmem:[#allocation2 + $0xd5] sm:$0xff]
        %v3480 = vld [vmem:[#allocation2 + $0xdd] sm:$0xff]
        %v3481 = vld [vmem:[#allocation2 + $0xe5] sm:$0xff]
        %v3482 = vld [vmem:[#allocation2 + $0xed] sm:$0xff]
        %v3483 = vld [vmem:[#allocation2 + $0xf5] sm:$0xff]
        %v3484 = vld [vmem:[#allocation2 + $0xfd] sm:$0xff]
        %v3485 = vld [vmem:[#allocation2 + $0x105] sm:$0xff]
        %v3486 = vmul.f32 %v3478, %v3103
        %v3487 = vmul.f32 %v3479, %v3103
        %v3488 = vmul.f32 %v3480, %v3103
        %v3489 = vmul.f32 %v3481, %v3103
        %v3490 = vmul.f32 %v3482, %v3103
        %v3491 = vmul.f32 %v3483, %v3103
        %v3492 = vmul.f32 %v3484, %v3103
        %v3493 = vmul.f32 %v3485, %v3103
        %v3494 = vadd.f32 %v3470, %v3486
        %v3495 = vadd.f32 %v3471, %v3487
        %v3496 = vadd.f32 %v3472, %v3488
        %v3497 = vadd.f32 %v3473, %v3489
        %v3498 = vadd.f32 %v3474, %v3490
        %v3499 = vadd.f32 %v3475, %v3491
        %v3500 = vadd.f32 %v3476, %v3492
        %v3501 = vadd.f32 %v3477, %v3493
        %v3502 = vld [vmem:[#allocation2 + $0xce] sm:$0xff]
        %v3503 = vld [vmem:[#allocation2 + $0xd6] sm:$0xff]
        %v3504 = vld [vmem:[#allocation2 + $0xde] sm:$0xff]
        %v3505 = vld [vmem:[#allocation2 + $0xe6] sm:$0xff]
        %v3506 = vld [vmem:[#allocation2 + $0xee] sm:$0xff]
        %v3507 = vld [vmem:[#allocation2 + $0xf6] sm:$0xff]
        %v3508 = vld [vmem:[#allocation2 + $0xfe] sm:$0xff]
        %v3509 = vld [vmem:[#allocation2 + $0x106] sm:$0xff]
        %v3510 = vmul.f32 %v3502, %v3128
        %v3511 = vmul.f32 %v3503, %v3128
        %v3512 = vmul.f32 %v3504, %v3128
        %v3513 = vmul.f32 %v3505, %v3128
        %v3514 = vmul.f32 %v3506, %v3128
        %v3515 = vmul.f32 %v3507, %v3128
        %v3516 = vmul.f32 %v3508, %v3128
        %v3517 = vmul.f32 %v3509, %v3128
        %v3518 = vadd.f32 %v3494, %v3510
        %v3519 = vadd.f32 %v3495, %v3511
        %v3520 = vadd.f32 %v3496, %v3512
        %v3521 = vadd.f32 %v3497, %v3513
        %v3522 = vadd.f32 %v3498, %v3514
        %v3523 = vadd.f32 %v3499, %v3515
        %v3524 = vadd.f32 %v3500, %v3516
        %v3525 = vadd.f32 %v3501, %v3517
        %v3526 = vld [vmem:[#allocation2 + $0xcf] sm:$0xff]
        %v3527 = vld [vmem:[#allocation2 + $0xd7] sm:$0xff]
        %v3528 = vld [vmem:[#allocation2 + $0xdf] sm:$0xff]
        %v3529 = vld [vmem:[#allocation2 + $0xe7] sm:$0xff]
        %v3530 = vld [vmem:[#allocation2 + $0xef] sm:$0xff]
        %v3531 = vld [vmem:[#allocation2 + $0xf7] sm:$0xff]
        %v3532 = vld [vmem:[#allocation2 + $0xff] sm:$0xff]
        %v3533 = vld [vmem:[#allocation2 + $0x107] sm:$0xff]
        %v3534 = vmul.f32 %v3526, %v3153
        %v3535 = vmul.f32 %v3527, %v3153
        %v3536 = vmul.f32 %v3528, %v3153
        %v3537 = vmul.f32 %v3529, %v3153
        %v3538 = vmul.f32 %v3530, %v3153
        %v3539 = vmul.f32 %v3531, %v3153
        %v3540 = vmul.f32 %v3532, %v3153
        %v3541 = vmul.f32 %v3533, %v3153
        %v3542 = vadd.f32 %v3518, %v3534
        %v3543 = vadd.f32 %v3519, %v3535
        %v3544 = vadd.f32 %v3520, %v3536
        %v3545 = vadd.f32 %v3521, %v3537
        %v3546 = vadd.f32 %v3522, %v3538
        %v3547 = vadd.f32 %v3523, %v3539
        %v3548 = vadd.f32 %v3524, %v3540
        %v3549 = vadd.f32 %v3525, %v3541
        %v3550 = vld [vmem:[#allocation2 + $0xd0] sm:$0xff]
        %v3551 = vld [vmem:[#allocation2 + $0xd8] sm:$0xff]
        %v3552 = vld [vmem:[#allocation2 + $0xe0] sm:$0xff]
        %v3553 = vld [vmem:[#allocation2 + $0xe8] sm:$0xff]
        %v3554 = vld [vmem:[#allocation2 + $0xf0] sm:$0xff]
        %v3555 = vld [vmem:[#allocation2 + $0xf8] sm:$0xff]
        %v3556 = vld [vmem:[#allocation2 + $0x100] sm:$0xff]
        %v3557 = vld [vmem:[#allocation2 + $0x108] sm:$0xff]
        %v3558 = vmul.f32 %v3550, %v3178
        %v3559 = vmul.f32 %v3551, %v3178
        %v3560 = vmul.f32 %v3552, %v3178
        %v3561 = vmul.f32 %v3553, %v3178
        %v3562 = vmul.f32 %v3554, %v3178
        %v3563 = vmul.f32 %v3555, %v3178
        %v3564 = vmul.f32 %v3556, %v3178
        %v3565 = vmul.f32 %v3557, %v3178
        %v3566 = vadd.f32 %v3542, %v3558
        %v3567 = vadd.f32 %v3543, %v3559
        %v3568 = vadd.f32 %v3544, %v3560
        %v3569 = vadd.f32 %v3545, %v3561
        %v3570 = vadd.f32 %v3546, %v3562
        %v3571 = vadd.f32 %v3547, %v3563
        %v3572 = vadd.f32 %v3548, %v3564
        %v3573 = vadd.f32 %v3549, %v3565
        %v3574 = vld [vmem:[#allocation2 + $0x109] sm:$0xff]
        %v3575 = vmul.f32 %v3391, %v3196
        %v3576 = vmul.f32 %v3392, %v3196
        %v3577 = vmul.f32 %v3393, %v3196
        %v3578 = vmul.f32 %v3394, %v3196
        %v3579 = vmul.f32 %v3395, %v3196
        %v3580 = vmul.f32 %v3396, %v3196
        %v3581 = vmul.f32 %v3397, %v3196
        %v3582 = vmul.f32 %v3574, %v3196
        %v3583 = vadd.f32 %v3566, %v3575
        %v3584 = vadd.f32 %v3567, %v3576
        %v3585 = vadd.f32 %v3568, %v3577
        %v3586 = vadd.f32 %v3569, %v3578
        %v3587 = vadd.f32 %v3570, %v3579
        %v3588 = vadd.f32 %v3571, %v3580
        %v3589 = vadd.f32 %v3572, %v3581
        %v3590 = vadd.f32 %v3573, %v3582
        %v3591 = vld [vmem:[#allocation2 + $0x10a] sm:$0xff]
        %v3592 = vmul.f32 %v3407, %v3214
        %v3593 = vmul.f32 %v3408, %v3214
        %v3594 = vmul.f32 %v3409, %v3214
        %v3595 = vmul.f32 %v3410, %v3214
        %v3596 = vmul.f32 %v3411, %v3214
        %v3597 = vmul.f32 %v3412, %v3214
        %v3598 = vmul.f32 %v3413, %v3214
        %v3599 = vmul.f32 %v3591, %v3214
        %v3600 = vadd.f32 %v3583, %v3592
        %v3601 = vadd.f32 %v3584, %v3593
        %v3602 = vadd.f32 %v3585, %v3594
        %v3603 = vadd.f32 %v3586, %v3595
        %v3604 = vadd.f32 %v3587, %v3596
        %v3605 = vadd.f32 %v3588, %v3597
        %v3606 = vadd.f32 %v3589, %v3598
        %v3607 = vadd.f32 %v3590, %v3599
        %v3608 = vld [vmem:[#allocation2 + $0x10b] sm:$0xff]
        %v3609 = vmul.f32 %v3431, %v3232
        %v3610 = vmul.f32 %v3432, %v3232
        %v3611 = vmul.f32 %v3433, %v3232
        %v3612 = vmul.f32 %v3434, %v3232
        %v3613 = vmul.f32 %v3435, %v3232
        %v3614 = vmul.f32 %v3436, %v3232
        %v3615 = vmul.f32 %v3437, %v3232
        %v3616 = vmul.f32 %v3608, %v3232
        %v3617 = vadd.f32 %v3600, %v3609
        %v3618 = vadd.f32 %v3601, %v3610
        %v3619 = vadd.f32 %v3602, %v3611
        %v3620 = vadd.f32 %v3603, %v3612
        %v3621 = vadd.f32 %v3604, %v3613
        %v3622 = vadd.f32 %v3605, %v3614
        %v3623 = vadd.f32 %v3606, %v3615
        %v3624 = vadd.f32 %v3607, %v3616
        %v3625 = vld [vmem:[#allocation2 + $0x10c] sm:$0xff]
        %v3626 = vmul.f32 %v3455, %v3250
        %v3627 = vmul.f32 %v3456, %v3250
        %v3628 = vmul.f32 %v3457, %v3250
        %v3629 = vmul.f32 %v3458, %v3250
        %v3630 = vmul.f32 %v3459, %v3250
        %v3631 = vmul.f32 %v3460, %v3250
        %v3632 = vmul.f32 %v3461, %v3250
        %v3633 = vmul.f32 %v3625, %v3250
        %v3634 = vadd.f32 %v3617, %v3626
        %v3635 = vadd.f32 %v3618, %v3627
        %v3636 = vadd.f32 %v3619, %v3628
        %v3637 = vadd.f32 %v3620, %v3629
        %v3638 = vadd.f32 %v3621, %v3630
        %v3639 = vadd.f32 %v3622, %v3631
        %v3640 = vadd.f32 %v3623, %v3632
        %v3641 = vadd.f32 %v3624, %v3633
        %v3642 = vld [vmem:[#allocation2 + $0x10d] sm:$0xff]
        %v3643 = vmul.f32 %v3479, %v3268
        %v3644 = vmul.f32 %v3480, %v3268
        %v3645 = vmul.f32 %v3481, %v3268
        %v3646 = vmul.f32 %v3482, %v3268
        %v3647 = vmul.f32 %v3483, %v3268
        %v3648 = vmul.f32 %v3484, %v3268
        %v3649 = vmul.f32 %v3485, %v3268
        %v3650 = vmul.f32 %v3642, %v3268
        %v3651 = vadd.f32 %v3634, %v3643
        %v3652 = vadd.f32 %v3635, %v3644
        %v3653 = vadd.f32 %v3636, %v3645
        %v3654 = vadd.f32 %v3637, %v3646
        %v3655 = vadd.f32 %v3638, %v3647
        %v3656 = vadd.f32 %v3639, %v3648
        %v3657 = vadd.f32 %v3640, %v3649
        %v3658 = vadd.f32 %v3641, %v3650
        %v3659 = vld [vmem:[#allocation2 + $0x10e] sm:$0xff]
        %v3660 = vmul.f32 %v3503, %v3286
        %v3661 = vmul.f32 %v3504, %v3286
        %v3662 = vmul.f32 %v3505, %v3286
        %v3663 = vmul.f32 %v3506, %v3286
        %v3664 = vmul.f32 %v3507, %v3286
        %v3665 = vmul.f32 %v3508, %v3286
        %v3666 = vmul.f32 %v3509, %v3286
        %v3667 = vmul.f32 %v3659, %v3286
        %v3668 = vadd.f32 %v3651, %v3660
        %v3669 = vadd.f32 %v3652, %v3661
        %v3670 = vadd.f32 %v3653, %v3662
        %v3671 = vadd.f32 %v3654, %v3663
        %v3672 = vadd.f32 %v3655, %v3664
        %v3673 = vadd.f32 %v3656, %v3665
        %v3674 = vadd.f32 %v3657, %v3666
        %v3675 = vadd.f32 %v3658, %v3667
        %v3676 = vld [vmem:[#allocation2 + $0x10f] sm:$0xff]
        %v3677 = vmul.f32 %v3527, %v3304
        %v3678 = vmul.f32 %v3528, %v3304
        %v3679 = vmul.f32 %v3529, %v3304
        %v3680 = vmul.f32 %v3530, %v3304
        %v3681 = vmul.f32 %v3531, %v3304
        %v3682 = vmul.f32 %v3532, %v3304
        %v3683 = vmul.f32 %v3533, %v3304
        %v3684 = vmul.f32 %v3676, %v3304
        %v3685 = vadd.f32 %v3668, %v3677
        %v3686 = vadd.f32 %v3669, %v3678
        %v3687 = vadd.f32 %v3670, %v3679
        %v3688 = vadd.f32 %v3671, %v3680
        %v3689 = vadd.f32 %v3672, %v3681
        %v3690 = vadd.f32 %v3673, %v3682
        %v3691 = vadd.f32 %v3674, %v3683
        %v3692 = vadd.f32 %v3675, %v3684
        %3693 = vadd.xlane.f32.xlu0 %v3685
        %v3694 = vpop.xlane.xlu0 %3693
        %3695 = vadd.xlane.f32.xlu0 %v3686
        %v3696 = vpop.xlane.xlu0 %3695
        %3697 = vadd.xlane.f32.xlu0 %v3687
        %v3698 = vpop.xlane.xlu0 %3697
        %3699 = vadd.xlane.f32.xlu0 %v3688
        %v3700 = vpop.xlane.xlu0 %3699
        %3701 = vadd.xlane.f32.xlu0 %v3689
        %v3702 = vpop.xlane.xlu0 %3701
        %3703 = vadd.xlane.f32.xlu0 %v3690
        %v3704 = vpop.xlane.xlu0 %3703
        %3705 = vadd.xlane.f32.xlu0 %v3691
        %v3706 = vpop.xlane.xlu0 %3705
        %3707 = vadd.xlane.f32.xlu0 %v3692
        %v3708 = vpop.xlane.xlu0 %3707
        %s3709 = sadd.s32 %s3002, 1
        %s3710 = smul.u32 %s3709, 128
        %s3711 = sld [smem:[#allocation4 + %s3710]]
        %v3712 = vstv %s3711
        %v3713 = vadd.f32 %v3712, %v3694
        %v3714 = vadd.f32 %v3712, %v3696
        %v3715 = vadd.f32 %v3712, %v3698
        %v3716 = vadd.f32 %v3712, %v3700
        %v3717 = vadd.f32 %v3712, %v3702
        %v3718 = vadd.f32 %v3712, %v3704
        %v3719 = vadd.f32 %v3712, %v3706
        %v3720 = vadd.f32 %v3712, %v3708
        %v3729 = vperm.slane %v3713, %v3357
        %v3730 = vperm.slane %v3714, %v3359
        %v3731 = vsel %vm3361, %v3730, %v3729
        %v3732 = vperm.slane %v3715, %v3363
        %v3733 = vsel %vm3365, %v3732, %v3731
        %v3734 = vperm.slane %v3716, %v3367
        %v3735 = vsel %vm3369, %v3734, %v3733
        %v3736 = vperm.slane %v3717, %v3371
        %v3737 = vsel %vm3373, %v3736, %v3735
        %v3738 = vperm.slane %v3718, %v3375
        %v3739 = vsel %vm3377, %v3738, %v3737
        %v3740 = vperm.slane %v3719, %v3379
        %v3741 = vsel %vm3381, %v3740, %v3739
        %v3742 = vperm.slane %v3720, %v3383
        %v3743 = vsel %vm3385, %v3742, %v3741
        %3745 = vst.msk [vmem:[%s331 + $0x1] sm:$0x1] %vm3388, %v3743
        %s3746 = sand.u32 %s209, 1
        %s3747 = scalar_lea.sflag [#allocation5], %s3746
        %s3748 = sand.u32 %s209, 1
        %s3749 = smul.addr %s3748, 2
        %s3750 = scalar_lea.vmem [#allocation7], %s3749
        // Predicated region
        $region57: #{dragonnfruit_forward.1} parent=51 // pred_check
          %p3751 = pneg %p219
        $region58: #{dragonnfruit_forward.1} parent=51 // pred_check_branch
          %3753 = sbr.rel (%p3751) target = $region60
        $region59: #{dragonnfruit_forward.1} parent=51 // pred_region
          %3755 = vsyncadd %s3747, 0
          %s3756 = smul.addr %s23, 2
          %s3757 = scalar_lea.hbm %s8, %s3756
          %s3759 = sshll.u32 %s3750, 4
          %s3760 = int_to_ptr.vmem [resolvable:$true] %s3759
          %s3761 = sshll.u32 %s3757, 4
          %s3762 = int_to_ptr.hbm [resolvable:$true] %s3761
          %3764 = dma.vmem_to_hbm [thread:$0]  %s3760, 32, %s3762, %s3747
        $region60: #{dragonnfruit_forward.1} parent=51 // pred_fallthru
          _
      $region52: #{dragonnfruit_forward.1} parent=5 // pred_fallthru
        _
      %p3765 = scmp.le.s32.totalorder 2, %s18
      // Predicated region
      $region61: #{dragonnfruit_forward.1} parent=5 // pred_check
        %p3766 = pneg %p3765
      $region62: #{dragonnfruit_forward.1} parent=5 // pred_check_branch
        %3768 = sbr.rel (%p3766) target = $region64
      $region63: #{dragonnfruit_forward.1} parent=5 // pred_region
        %s3769 = ssub.s32 %s18, 2
        // Predicated region
        $region65: #{dragonnfruit_forward.1} parent=63 // pred_check
          %p3770 = pneg %p225
        $region66: #{dragonnfruit_forward.1} parent=63 // pred_check_branch
          %3772 = sbr.rel (%p3770) target = $region68
        $region67: #{dragonnfruit_forward.1} parent=63 // pred_region
          %s3773 = sand.u32 %s210, 1
          %s3774 = scalar_lea.sflag [#allocation5], %s3773
          %s3775 = sand.u32 %s210, 1
          %s3776 = smul.addr %s3775, 2
          %s3777 = scalar_lea.vmem [#allocation7], %s3776
          %3779 = dma.done %s3774, 32
        $region68: #{dragonnfruit_forward.1} parent=63 // pred_fallthru
          _
      $region64: #{dragonnfruit_forward.1} parent=5 // pred_fallthru
        _
    $region6: #{dragonnfruit_forward.1} parent=1 // loop_footer
      %s22 = sadd.s32 1, %s18
    $region7: #{dragonnfruit_forward.1} parent=1 // loop_footer_branch
      %17 = sbr.rel target = $region3
    $region8: #{dragonnfruit_forward.1} parent=1 // loop_exit
      _
    %3780 = vsyncpa [#allocation5], 1
    %s3781 = scalar_lea.sflag [#allocation5], 1
    %3782 = vsyncpa %s3781, 1
    %3783 = vsyncpa [#allocation6], 1
    %s3784 = scalar_lea.sflag [#allocation6], 1
    %3785 = vsyncpa %s3784, 1

</llo_original>
